<compile_context>
chip_gen: v5e
topology: v5e:2x2
jax: 0.10.0
libtpu: 0.0.40
codegen_flags: <defaults>
</compile_context>

<pallas_src>
import functools

import jax
import jax.numpy as jnp
from jax import lax
from jax.experimental import pallas as pl
from jax.experimental.pallas import tpu as pltpu


# ----------------------------- in-kernel math ------------------------------

def _erf_poly(x):
    # Abramowitz & Stegun 7.1.26, |error| < 1.5e-7 (≈ f32 precision of lax.erf).
    a1, a2, a3, a4, a5 = 0.254829592, -0.284496736, 1.421413741, -1.453152027, 1.061405429
    p = 0.3275911
    ax = jnp.abs(x)
    t = 1.0 / (1.0 + p * ax)
    poly = ((((a5 * t + a4) * t + a3) * t + a2) * t + a1) * t
    y = 1.0 - poly * jnp.exp(-ax * ax)
    return jnp.where(x >= 0, y, -y)


def _gelu_exact(x):
    # nn.GELU() default (approximate='none'): 0.5*x*(1+erf(x/sqrt(2)))
    return 0.5 * x * (1.0 + _erf_poly(x * 0.7071067811865476))


# ------------------------------- the kernel --------------------------------

def transformer_kernel(x_ref,
                       ln1g_ref, ln1b_ref, wqkv_ref, wo_ref, bo_ref,
                       ln2g_ref, ln2b_ref, w1_ref, b1_ref, w2_ref, b2_ref,
                       lnfg_ref, lnfb_ref, wf_ref, bf_ref, neg_ref,
                       out_ref, state_ref, *, n_real):
    l = pl.program_id(0)
    B, EP = state_ref.shape
    inv_n = 1.0 / float(n_real)
    bf16 = jnp.bfloat16

    # validity mask over feature lanes (1 for the n_real real features, 0 padded)
    lane = lax.broadcasted_iota(jnp.int32, (1, EP), 1)
    fmask = (lane < n_real).astype(jnp.float32)

    def layer_norm(v, g, b):
        # PyTorch nn.LayerNorm: biased variance over the n_real features, eps=1e-5.
        # Padded lanes of v are 0 by construction; g/b are zero-padded so the
        # output's padded lanes stay exactly 0.
        mu = jnp.sum(v, axis=-1, keepdims=True) * inv_n
        vc = (v - mu) * fmask
        var = jnp.sum(vc * vc, axis=-1, keepdims=True) * inv_n
        return vc * lax.rsqrt(var + 1e-5) * g + b

    @pl.when(l == 0)
    def _init():
        state_ref[...] = x_ref[...]

    x = state_ref[...]                                       # (B, EP) residual stream

    # ---------------- multi-head self-attention (pre-LN) ----------------
    h = layer_norm(x, ln1g_ref[0], ln1b_ref[0])
    qkv = jnp.dot(h.astype(bf16), wqkv_ref[0],
                  preferred_element_type=jnp.float32)        # (B, 3*EP) fused QKV
    q = qkv[:, :EP]                                          # 1/sqrt(n_embd) folded into Wq
    k = qkv[:, EP:2 * EP]
    v = qkv[:, 2 * EP:]

    # Batched scores s[b,i,j] = q[b,i]*k[b,j]; block-diagonal per head via the
    # additive mask (-1e30 off-head; padded lanes form their own masked blocks).
    s = q[:, :, None] * k[:, None, :] + neg_ref[...][None, :, :]   # (B, EP, EP)
    m = jnp.max(s, axis=-1, keepdims=True)
    p = jnp.exp(s - m)                                       # unnormalized probs
    denom = jnp.sum(p, axis=-1, keepdims=True)               # (B, EP, 1)
    o_un = jnp.sum(p * v[:, None, :], axis=-1, keepdims=True)  # (B, EP, 1)
    o = (o_un * pl.reciprocal(denom, approx=True)).reshape(B, EP)
    # TODO(synk): nn.Dropout(p=0.1) on attn probs / after projection — identity in eval mode.
    attn = jnp.dot(o.astype(bf16), wo_ref[0],
                   preferred_element_type=jnp.float32) + bo_ref[0]
    x = x + attn

    # ------------------------- feed-forward (pre-LN) --------------------
    h2 = layer_norm(x, ln2g_ref[0], ln2b_ref[0])
    f = jnp.dot(h2.astype(bf16), w1_ref[0],
                preferred_element_type=jnp.float32) + b1_ref[0]
    f = _gelu_exact(f)
    f = jnp.dot(f.astype(bf16), w2_ref[0],
                preferred_element_type=jnp.float32) + b2_ref[0]
    x = x + f

    state_ref[...] = x

    @pl.when(l == pl.num_programs(0) - 1)
    def _final():
        hf = layer_norm(x, lnfg_ref[...], lnfb_ref[...])
        out_ref[...] = (jnp.dot(hf.astype(bf16), wf_ref[...],
                                preferred_element_type=jnp.float32) + bf_ref[...])


# ------------------------------- the wrapper --------------------------------

def _round_up(v, m):
    return (v + m - 1) // m * m


def transformer_forward(x, params, n_head, y=None):
    """Returns (logits, loss) like the PyTorch module (y=None path -> loss=None)."""
    # TODO(synk): training-mode cross-entropy loss path (y is not None) not implemented.
    B, E = x.shape
    L, _, H = params["w1"].shape          # H = 4*E
    C = params["wf"].shape[1]
    HS = E // n_head

    EP = _round_up(E, 128)                # 112 -> 128
    HP = _round_up(H, 128)                # 448 -> 512
    CP = _round_up(C, 128)                # 10  -> 128

    f32, bf16 = jnp.float32, jnp.bfloat16
    scale = float(E) ** -0.5              # Head.forward uses N**-0.5 with N = n_embd

    def pad_last2(a, r, c):
        pad = [(0, 0)] * (a.ndim - 2) + [(0, r - a.shape[-2]), (0, c - a.shape[-1])]
        return jnp.pad(a, pad)

    # fused (scaled-Q | K | V) projection, each sub-block lane-padded, streamed as bf16
    wqkv = jnp.concatenate(
        [pad_last2(params["wq"] * scale, EP, EP),
         pad_last2(params["wk"], EP, EP),
         pad_last2(params["wv"], EP, EP)], axis=-1).astype(bf16)      # (L, EP, 3*EP)

    wo = pad_last2(params["wo"], EP, EP).astype(bf16)
    w1 = pad_last2(params["w1"], EP, HP).astype(bf16)
    w2 = pad_last2(params["w2"], HP, EP).astype(bf16)
    wf = pad_last2(params["wf"], EP, CP).astype(bf16)

    bo = pad_last2(params["bo"], 1, EP).astype(f32)
    b1 = pad_last2(params["b1"], 1, HP).astype(f32)
    b2 = pad_last2(params["b2"], 1, EP).astype(f32)
    bfin = pad_last2(params["bf"], 1, CP).astype(f32)
    ln1g = pad_last2(params["ln1g"], 1, EP).astype(f32)
    ln1b = pad_last2(params["ln1b"], 1, EP).astype(f32)
    ln2g = pad_last2(params["ln2g"], 1, EP).astype(f32)
    ln2b = pad_last2(params["ln2b"], 1, EP).astype(f32)
    lnfg = pad_last2(params["lnfg"], 1, EP).astype(f32)
    lnfb = pad_last2(params["lnfb"], 1, EP).astype(f32)

    xp = pad_last2(x.astype(f32), B, EP)

    # additive attention mask: 0 inside a head block (padded lanes get their own
    # isolated blocks), -1e30 everywhere else.
    hid = jnp.arange(EP) // HS
    neg_mask = jnp.where(hid[:, None] == hid[None, :], 0.0, -1e30).astype(f32)

    args = (xp,
            ln1g, ln1b, wqkv, wo, bo, ln2g, ln2b, w1, b1, w2, b2,
            lnfg, lnfb, wf, bfin, neg_mask)

    def whole(a):
        nd = a.ndim
        return pl.BlockSpec(a.shape, lambda l, nd=nd: (0,) * nd)

    def per_layer(a):
        nd = a.ndim
        return pl.BlockSpec((1,) + a.shape[1:], lambda l, nd=nd: (l,) + (0,) * (nd - 1))

    in_specs = ([whole(xp)]
                + [per_layer(a) for a in args[1:12]]
                + [whole(a) for a in args[12:]])

    grid_spec = pltpu.PrefetchScalarGridSpec(
        num_scalar_prefetch=0,
        grid=(L,),
        in_specs=in_specs,
        out_specs=pl.BlockSpec((B, CP), lambda l: (0, 0)),
        scratch_shapes=[pltpu.VMEM((B, EP), f32)],
    )

    kernel = functools.partial(transformer_kernel, n_real=E)

    logits_p = pl.pallas_call(
        kernel,
        out_shape=jax.ShapeDtypeStruct((B, CP), f32),
        grid_spec=grid_spec,
        compiler_params=pltpu.CompilerParams(dimension_semantics=("arbitrary",)),
    )(*args)

    return logits_p[:, :C], None


# --------------------------- params / reference -----------------------------

def init_params(key, n_layers, n_embd, n_classes):
    """Deterministic, PyTorch-Linear-style uniform(-1/sqrt(fan_in), 1/sqrt(fan_in))."""
    L, E, C = n_layers, n_embd, n_classes
    ks = jax.random.split(key, 11)

    def u(k, shape, fan_in):
        b = 1.0 / (fan_in ** 0.5)
        return jax.random.uniform(k, shape, jnp.float32, -b, b)

    return {
        "ln1g": jnp.ones((L, 1, E), jnp.float32), "ln1b": jnp.zeros((L, 1, E), jnp.float32),
        "wq": u(ks[0], (L, E, E), E),   # (in, out); columns = heads concatenated
        "wk": u(ks[1], (L, E, E), E),
        "wv": u(ks[2], (L, E, E), E),
        "wo": u(ks[3], (L, E, E), E), "bo": u(ks[4], (L, 1, E), E),
        "ln2g": jnp.ones((L, 1, E), jnp.float32), "ln2b": jnp.zeros((L, 1, E), jnp.float32),
        "w1": u(ks[5], (L, E, 4 * E), E), "b1": u(ks[6], (L, 1, 4 * E), E),
        "w2": u(ks[7], (L, 4 * E, E), 4 * E), "b2": u(ks[8], (L, 1, E), 4 * E),
        "lnfg": jnp.ones((1, E), jnp.float32), "lnfb": jnp.zeros((1, E), jnp.float32),
        "wf": u(ks[9], (E, C), E), "bf": u(ks[10], (1, C), E),
    }


def reference_forward(x, params, n_head):
    """Pure-JAX f32 mirror of the PyTorch forward (eval mode), for a sanity check."""
    B, E = x.shape
    HS = E // n_head
    L = params["wq"].shape[0]

    def ln(v, g, b):
        mu = v.mean(-1, keepdims=True)
        vc = v - mu
        var = (vc * vc).mean(-1, keepdims=True)
        return vc / jnp.sqrt(var + 1e-5) * g + b

    for l in range(L):
        h = ln(x, params["ln1g"][l, 0], params["ln1b"][l, 0])
        q = h @ params["wq"][l]
        k = h @ params["wk"][l]
        v = h @ params["wv"][l]
        qh = q.reshape(B, n_head, HS)
        kh = k.reshape(B, n_head, HS)
        vh = v.reshape(B, n_head, HS)
        s = jnp.einsum("bhi,bhj->bhij", qh, kh) * (E ** -0.5)
        p = jax.nn.softmax(s, axis=-1)
        o = jnp.einsum("bhij,bhj->bhi", p, vh).reshape(B, E)
        x = x + o @ params["wo"][l] + params["bo"][l, 0]
        h2 = ln(x, params["ln2g"][l, 0], params["ln2b"][l, 0])
        f = jax.nn.gelu(h2 @ params["w1"][l] + params["b1"][l, 0], approximate=False)
        x = x + f @ params["w2"][l] + params["b2"][l, 0]
    hf = ln(x, params["lnfg"][0], params["lnfb"][0])
    return hf @ params["wf"] + params["bf"][0]


# ----------------------------------- main ------------------------------------

if __name__ == "__main__":
    # Small config consistent with the module: img_size == n_embd (projection is
    # skipped), n_embd divisible by n_head=14, scaled down from 784/16 layers.
    B, n_embd, n_head, n_layers, n_classes = 2, 112, 14, 4, 10
    assert n_embd % n_head == 0

    key = jax.random.PRNGKey(0)
    kx, kp = jax.random.split(key)
    x = jax.random.normal(kx, (B, n_embd), jnp.float32)
    params = init_params(kp, n_layers, n_embd, n_classes)

    logits, loss = transformer_forward(x, params, n_head)
    logits = jax.block_until_ready(logits)
    assert logits.shape == (B, n_classes)
    assert loss is None

    ref = jax.block_until_ready(reference_forward(x, params, n_head))
    max_err = float(jnp.max(jnp.abs(logits - ref)))
    # Tolerance accounts for deliberate bf16 weight/activation streaming (f32
    # accumulation) and the approximate EUP reciprocal vs the f32 reference.
    if max_err > 1e-1:
        raise AssertionError(f"kernel/reference mismatch, max |err| = {max_err}")

    print("KERNEL_OK")
</pallas_src>

<mosaic_0001>
module attributes {stable_mosaic.version = 11 : i64} {
  func.func @transformer_kernel(%arg0: i32, %arg1: memref<2x128xf32, #tpu.memory_space<vmem>>, %arg2: memref<1x1x128xf32, #tpu.memory_space<vmem>>, %arg3: memref<1x1x128xf32, #tpu.memory_space<vmem>>, %arg4: memref<1x128x384xbf16, #tpu.memory_space<vmem>>, %arg5: memref<1x128x128xbf16, #tpu.memory_space<vmem>>, %arg6: memref<1x1x128xf32, #tpu.memory_space<vmem>>, %arg7: memref<1x1x128xf32, #tpu.memory_space<vmem>>, %arg8: memref<1x1x128xf32, #tpu.memory_space<vmem>>, %arg9: memref<1x128x512xbf16, #tpu.memory_space<vmem>>, %arg10: memref<1x1x512xf32, #tpu.memory_space<vmem>>, %arg11: memref<1x512x128xbf16, #tpu.memory_space<vmem>>, %arg12: memref<1x1x128xf32, #tpu.memory_space<vmem>>, %arg13: memref<1x128xf32, #tpu.memory_space<vmem>>, %arg14: memref<1x128xf32, #tpu.memory_space<vmem>>, %arg15: memref<128x128xbf16, #tpu.memory_space<vmem>>, %arg16: memref<1x128xf32, #tpu.memory_space<vmem>>, %arg17: memref<128x128xf32, #tpu.memory_space<vmem>>, %arg18: memref<2x128xf32, #tpu.memory_space<vmem>>, %arg19: memref<2x128xf32, #tpu.memory_space<vmem>>) attributes {dimension_semantics = [#tpu.dimension_semantics<arbitrary>], iteration_bounds = array<i64: 4>, scalar_prefetch = 0 : i64, scratch_operands = 1 : i64, tpu.core_type = #tpu.core_type<tc>, window_params = [{pipeline_mode = #tpu.pipeline_mode<synchronous>, transform_indices = @transform_0, window_bounds = array<i64: 2, 128>}, {transform_indices = @transform_1, window_bounds = array<i64: 1, 1, 128>}, {transform_indices = @transform_2, window_bounds = array<i64: 1, 1, 128>}, {transform_indices = @transform_3, window_bounds = array<i64: 1, 128, 384>}, {transform_indices = @transform_4, window_bounds = array<i64: 1, 128, 128>}, {transform_indices = @transform_5, window_bounds = array<i64: 1, 1, 128>}, {transform_indices = @transform_6, window_bounds = array<i64: 1, 1, 128>}, {transform_indices = @transform_7, window_bounds = array<i64: 1, 1, 128>}, {transform_indices = @transform_8, window_bounds = array<i64: 1, 128, 512>}, {transform_indices = @transform_9, window_bounds = array<i64: 1, 1, 512>}, {transform_indices = @transform_10, window_bounds = array<i64: 1, 512, 128>}, {transform_indices = @transform_11, window_bounds = array<i64: 1, 1, 128>}, {pipeline_mode = #tpu.pipeline_mode<synchronous>, transform_indices = @transform_12, window_bounds = array<i64: 1, 128>}, {pipeline_mode = #tpu.pipeline_mode<synchronous>, transform_indices = @transform_13, window_bounds = array<i64: 1, 128>}, {pipeline_mode = #tpu.pipeline_mode<synchronous>, transform_indices = @transform_14, window_bounds = array<i64: 128, 128>}, {pipeline_mode = #tpu.pipeline_mode<synchronous>, transform_indices = @transform_15, window_bounds = array<i64: 1, 128>}, {pipeline_mode = #tpu.pipeline_mode<synchronous>, transform_indices = @transform_16, window_bounds = array<i64: 128, 128>}, {pipeline_mode = #tpu.pipeline_mode<synchronous>, transform_indices = @transform_17, window_bounds = array<i64: 2, 128>}]} {
    %0 = tpu.iota {dimensions = array<i32: 1>} : vector<1x128xi32>
    %c112_i32 = arith.constant 112 : i32
    %1 = vector.broadcast %c112_i32 : i32 to vector<1x128xi32>
    %2 = arith.cmpi slt, %0, %1 : vector<1x128xi32>
    %3 = arith.extui %2 : vector<1x128xi1> to vector<1x128xi32>
    %4 = arith.sitofp %3 : vector<1x128xi32> to vector<1x128xf32>
    %c0_i32 = arith.constant 0 : i32
    %5 = arith.cmpi eq, %arg0, %c0_i32 : i32
    %6 = arith.extui %5 : i1 to i32
    %c0_i32_0 = arith.constant 0 : i32
    %7 = arith.cmpi ne, %6, %c0_i32_0 : i32
    scf.if %7 {
      %c0_71 = arith.constant 0 : index
      %c0_72 = arith.constant 0 : index
      %162 = vector.load %arg1[%c0_71, %c0_72] : memref<2x128xf32, #tpu.memory_space<vmem>>, vector<2x128xf32>
      %c0_73 = arith.constant 0 : index
      %c0_74 = arith.constant 0 : index
      %163 = vector.load %arg19[%c0_73, %c0_74] : memref<2x128xf32, #tpu.memory_space<vmem>>, vector<2x128xf32>
      tpu.vector_store %arg19[%c0_73, %c0_74], %162 {strides = array<i32>} : memref<2x128xf32, #tpu.memory_space<vmem>>, vector<2x128xf32>,
    } else {
    }
    %c0 = arith.constant 0 : index
    %c0_1 = arith.constant 0 : index
    %8 = vector.load %arg19[%c0, %c0_1] : memref<2x128xf32, #tpu.memory_space<vmem>>, vector<2x128xf32>
    %c0_2 = arith.constant 0 : index
    %c0_3 = arith.constant 0 : index
    %c0_4 = arith.constant 0 : index
    %9 = vector.load %arg2[%c0_2, %c0_3, %c0_4] : memref<1x1x128xf32, #tpu.memory_space<vmem>>, vector<1x1x128xf32>
    %10 = vector.shape_cast %9 : vector<1x1x128xf32> to vector<1x128xf32>
    %c0_5 = arith.constant 0 : index
    %c0_6 = arith.constant 0 : index
    %c0_7 = arith.constant 0 : index
    %11 = vector.load %arg3[%c0_5, %c0_6, %c0_7] : memref<1x1x128xf32, #tpu.memory_space<vmem>>, vector<1x1x128xf32>
    %12 = vector.shape_cast %11 : vector<1x1x128xf32> to vector<1x128xf32>
    %cst = arith.constant dense<0.000000e+00> : vector<2xf32>
    %13 = vector.multi_reduction <add>, %8, %cst [1] : vector<2x128xf32> to vector<2xf32>
    %14 = vector.shape_cast %13 : vector<2xf32> to vector<2x1xf32>
    %cst_8 = arith.constant 0.00892857183 : f32
    %15 = vector.broadcast %cst_8 : f32 to vector<2x1xf32>
    %16 = arith.mulf %14, %15 : vector<2x1xf32>
    %17 = vector.broadcast %16 : vector<2x1xf32> to vector<2x128xf32>
    %18 = arith.subf %8, %17 : vector<2x128xf32>
    %19 = vector.broadcast %4 : vector<1x128xf32> to vector<2x128xf32>
    %20 = arith.mulf %18, %19 : vector<2x128xf32>
    %21 = arith.mulf %20, %20 : vector<2x128xf32>
    %cst_9 = arith.constant dense<0.000000e+00> : vector<2xf32>
    %22 = vector.multi_reduction <add>, %21, %cst_9 [1] : vector<2x128xf32> to vector<2xf32>
    %23 = vector.shape_cast %22 : vector<2xf32> to vector<2x1xf32>
    %cst_10 = arith.constant 0.00892857183 : f32
    %24 = vector.broadcast %cst_10 : f32 to vector<2x1xf32>
    %25 = arith.mulf %23, %24 : vector<2x1xf32>
    %cst_11 = arith.constant 9.99999974E-6 : f32
    %26 = vector.broadcast %cst_11 : f32 to vector<2x1xf32>
    %27 = arith.addf %25, %26 : vector<2x1xf32>
    %28 = math.rsqrt %27 : vector<2x1xf32>
    %29 = vector.broadcast %28 : vector<2x1xf32> to vector<2x128xf32>
    %30 = arith.mulf %20, %29 : vector<2x128xf32>
    %31 = vector.broadcast %10 : vector<1x128xf32> to vector<2x128xf32>
    %32 = arith.mulf %30, %31 : vector<2x128xf32>
    %33 = vector.broadcast %12 : vector<1x128xf32> to vector<2x128xf32>
    %34 = arith.addf %32, %33 : vector<2x128xf32>
    %35 = arith.truncf %34 : vector<2x128xf32> to vector<2x128xbf16>
    %c0_12 = arith.constant 0 : index
    %c0_13 = arith.constant 0 : index
    %c0_14 = arith.constant 0 : index
    %36 = vector.load %arg4[%c0_12, %c0_13, %c0_14] : memref<1x128x384xbf16, #tpu.memory_space<vmem>>, vector<1x128x384xbf16>
    %37 = vector.shape_cast %36 : vector<1x128x384xbf16> to vector<128x384xbf16>
    %cst_15 = arith.constant dense<0.000000e+00> : vector<2x384xf32>
    %38 = tpu.matmul %35, %37, %cst_15 {dimension_numbers = #tpu.dot_dimension_numbers<[1], [0], [0], [1], [0, 0, 1, 1], [], []>} : vector<2x128xbf16>, vector<128x384xbf16>, vector<2x384xf32> -> vector<2x384xf32>
    %39 = vector.extract_strided_slice %38 {offsets = [0, 0], sizes = [2, 128], strides = [1, 1]} : vector<2x384xf32> to vector<2x128xf32>
    %40 = vector.extract_strided_slice %38 {offsets = [0, 128], sizes = [2, 128], strides = [1, 1]} : vector<2x384xf32> to vector<2x128xf32>
    %41 = vector.extract_strided_slice %38 {offsets = [0, 256], sizes = [2, 128], strides = [1, 1]} : vector<2x384xf32> to vector<2x128xf32>
    %42 = vector.shape_cast %39 : vector<2x128xf32> to vector<2x128x1xf32>
    %43 = vector.shape_cast %40 : vector<2x128xf32> to vector<2x1x128xf32>
    %44 = vector.broadcast %42 : vector<2x128x1xf32> to vector<2x128x128xf32>
    %45 = vector.broadcast %43 : vector<2x1x128xf32> to vector<2x128x128xf32>
    %46 = arith.mulf %44, %45 : vector<2x128x128xf32>
    %c0_16 = arith.constant 0 : index
    %c0_17 = arith.constant 0 : index
    %47 = vector.load %arg17[%c0_16, %c0_17] : memref<128x128xf32, #tpu.memory_space<vmem>>, vector<128x128xf32>
    %48 = vector.shape_cast %47 : vector<128x128xf32> to vector<1x128x128xf32>
    %49 = vector.broadcast %48 : vector<1x128x128xf32> to vector<2x128x128xf32>
    %50 = arith.addf %46, %49 : vector<2x128x128xf32>
    %cst_18 = arith.constant dense<0xFF800000> : vector<2x128xf32>
    %51 = vector.multi_reduction <maximumf>, %50, %cst_18 [2] : vector<2x128x128xf32> to vector<2x128xf32>
    %52 = vector.shape_cast %51 : vector<2x128xf32> to vector<2x128x1xf32>
    %53 = vector.broadcast %52 : vector<2x128x1xf32> to vector<2x128x128xf32>
    %54 = arith.subf %50, %53 : vector<2x128x128xf32>
    %55 = math.exp %54 : vector<2x128x128xf32>
    %cst_19 = arith.constant dense<0.000000e+00> : vector<2x128xf32>
    %56 = vector.multi_reduction <add>, %55, %cst_19 [2] : vector<2x128x128xf32> to vector<2x128xf32>
    %57 = vector.shape_cast %56 : vector<2x128xf32> to vector<2x128x1xf32>
    %58 = vector.shape_cast %41 : vector<2x128xf32> to vector<2x1x128xf32>
    %59 = vector.broadcast %58 : vector<2x1x128xf32> to vector<2x128x128xf32>
    %60 = arith.mulf %55, %59 : vector<2x128x128xf32>
    %cst_20 = arith.constant dense<0.000000e+00> : vector<2x128xf32>
    %61 = vector.multi_reduction <add>, %60, %cst_20 [2] : vector<2x128x128xf32> to vector<2x128xf32>
    %62 = vector.shape_cast %61 : vector<2x128xf32> to vector<2x128x1xf32>
    %63 = tpu.reciprocal %57 {approx = true} : vector<2x128x1xf32> -> vector<2x128x1xf32>
    %64 = arith.mulf %62, %63 : vector<2x128x1xf32>
    %65 = vector.shape_cast %64 : vector<2x128x1xf32> to vector<2x128xf32>
    %66 = arith.truncf %65 : vector<2x128xf32> to vector<2x128xbf16>
    %c0_21 = arith.constant 0 : index
    %c0_22 = arith.constant 0 : index
    %c0_23 = arith.constant 0 : index
    %67 = vector.load %arg5[%c0_21, %c0_22, %c0_23] : memref<1x128x128xbf16, #tpu.memory_space<vmem>>, vector<1x128x128xbf16>
    %68 = vector.shape_cast %67 : vector<1x128x128xbf16> to vector<128x128xbf16>
    %cst_24 = arith.constant dense<0.000000e+00> : vector<2x128xf32>
    %69 = tpu.matmul %66, %68, %cst_24 {dimension_numbers = #tpu.dot_dimension_numbers<[1], [0], [0], [1], [0, 0, 1, 1], [], []>} : vector<2x128xbf16>, vector<128x128xbf16>, vector<2x128xf32> -> vector<2x128xf32>
    %c0_25 = arith.constant 0 : index
    %c0_26 = arith.constant 0 : index
    %c0_27 = arith.constant 0 : index
    %70 = vector.load %arg6[%c0_25, %c0_26, %c0_27] : memref<1x1x128xf32, #tpu.memory_space<vmem>>, vector<1x1x128xf32>
    %71 = vector.shape_cast %70 : vector<1x1x128xf32> to vector<1x128xf32>
    %72 = vector.broadcast %71 : vector<1x128xf32> to vector<2x128xf32>
    %73 = arith.addf %69, %72 : vector<2x128xf32>
    %74 = arith.addf %8, %73 : vector<2x128xf32>
    %c0_28 = arith.constant 0 : index
    %c0_29 = arith.constant 0 : index
    %c0_30 = arith.constant 0 : index
    %75 = vector.load %arg7[%c0_28, %c0_29, %c0_30] : memref<1x1x128xf32, #tpu.memory_space<vmem>>, vector<1x1x128xf32>
    %76 = vector.shape_cast %75 : vector<1x1x128xf32> to vector<1x128xf32>
    %c0_31 = arith.constant 0 : index
    %c0_32 = arith.constant 0 : index
    %c0_33 = arith.constant 0 : index
    %77 = vector.load %arg8[%c0_31, %c0_32, %c0_33] : memref<1x1x128xf32, #tpu.memory_space<vmem>>, vector<1x1x128xf32>
    %78 = vector.shape_cast %77 : vector<1x1x128xf32> to vector<1x128xf32>
    %cst_34 = arith.constant dense<0.000000e+00> : vector<2xf32>
    %79 = vector.multi_reduction <add>, %74, %cst_34 [1] : vector<2x128xf32> to vector<2xf32>
    %80 = vector.shape_cast %79 : vector<2xf32> to vector<2x1xf32>
    %cst_35 = arith.constant 0.00892857183 : f32
    %81 = vector.broadcast %cst_35 : f32 to vector<2x1xf32>
    %82 = arith.mulf %80, %81 : vector<2x1xf32>
    %83 = vector.broadcast %82 : vector<2x1xf32> to vector<2x128xf32>
    %84 = arith.subf %74, %83 : vector<2x128xf32>
    %85 = vector.broadcast %4 : vector<1x128xf32> to vector<2x128xf32>
    %86 = arith.mulf %84, %85 : vector<2x128xf32>
    %87 = arith.mulf %86, %86 : vector<2x128xf32>
    %cst_36 = arith.constant dense<0.000000e+00> : vector<2xf32>
    %88 = vector.multi_reduction <add>, %87, %cst_36 [1] : vector<2x128xf32> to vector<2xf32>
    %89 = vector.shape_cast %88 : vector<2xf32> to vector<2x1xf32>
    %cst_37 = arith.constant 0.00892857183 : f32
    %90 = vector.broadcast %cst_37 : f32 to vector<2x1xf32>
    %91 = arith.mulf %89, %90 : vector<2x1xf32>
    %cst_38 = arith.constant 9.99999974E-6 : f32
    %92 = vector.broadcast %cst_38 : f32 to vector<2x1xf32>
    %93 = arith.addf %91, %92 : vector<2x1xf32>
    %94 = math.rsqrt %93 : vector<2x1xf32>
    %95 = vector.broadcast %94 : vector<2x1xf32> to vector<2x128xf32>
    %96 = arith.mulf %86, %95 : vector<2x128xf32>
    %97 = vector.broadcast %76 : vector<1x128xf32> to vector<2x128xf32>
    %98 = arith.mulf %96, %97 : vector<2x128xf32>
    %99 = vector.broadcast %78 : vector<1x128xf32> to vector<2x128xf32>
    %100 = arith.addf %98, %99 : vector<2x128xf32>
    %101 = arith.truncf %100 : vector<2x128xf32> to vector<2x128xbf16>
    %c0_39 = arith.constant 0 : index
    %c0_40 = arith.constant 0 : index
    %c0_41 = arith.constant 0 : index
    %102 = vector.load %arg9[%c0_39, %c0_40, %c0_41] : memref<1x128x512xbf16, #tpu.memory_space<vmem>>, vector<1x128x512xbf16>
    %103 = vector.shape_cast %102 : vector<1x128x512xbf16> to vector<128x512xbf16>
    %cst_42 = arith.constant dense<0.000000e+00> : vector<2x512xf32>
    %104 = tpu.matmul %101, %103, %cst_42 {dimension_numbers = #tpu.dot_dimension_numbers<[1], [0], [0], [1], [0, 0, 1, 1], [], []>} : vector<2x128xbf16>, vector<128x512xbf16>, vector<2x512xf32> -> vector<2x512xf32>
    %c0_43 = arith.constant 0 : index
    %c0_44 = arith.constant 0 : index
    %c0_45 = arith.constant 0 : index
    %105 = vector.load %arg10[%c0_43, %c0_44, %c0_45] : memref<1x1x512xf32, #tpu.memory_space<vmem>>, vector<1x1x512xf32>
    %106 = vector.shape_cast %105 : vector<1x1x512xf32> to vector<1x512xf32>
    %107 = vector.broadcast %106 : vector<1x512xf32> to vector<2x512xf32>
    %108 = arith.addf %104, %107 : vector<2x512xf32>
    %cst_46 = arith.constant 5.000000e-01 : f32
    %109 = vector.broadcast %cst_46 : f32 to vector<2x512xf32>
    %110 = arith.mulf %109, %108 : vector<2x512xf32>
    %cst_47 = arith.constant 0.707106769 : f32
    %111 = vector.broadcast %cst_47 : f32 to vector<2x512xf32>
    %112 = arith.mulf %108, %111 : vector<2x512xf32>
    %113 = math.absf %112 : vector<2x512xf32>
    %cst_48 = arith.constant 0.327591091 : f32
    %114 = vector.broadcast %cst_48 : f32 to vector<2x512xf32>
    %115 = arith.mulf %114, %113 : vector<2x512xf32>
    %cst_49 = arith.constant 1.000000e+00 : f32
    %116 = vector.broadcast %cst_49 : f32 to vector<2x512xf32>
    %117 = arith.addf %116, %115 : vector<2x512xf32>
    %cst_50 = arith.constant 1.000000e+00 : f32
    %118 = vector.broadcast %cst_50 : f32 to vector<2x512xf32>
    %119 = arith.divf %118, %117 : vector<2x512xf32>
    %cst_51 = arith.constant 1.06140542 : f32
    %120 = vector.broadcast %cst_51 : f32 to vector<2x512xf32>
    %121 = arith.mulf %120, %119 : vector<2x512xf32>
    %cst_52 = arith.constant -1.45315206 : f32
    %122 = vector.broadcast %cst_52 : f32 to vector<2x512xf32>
    %123 = arith.addf %121, %122 : vector<2x512xf32>
    %124 = arith.mulf %123, %119 : vector<2x512xf32>
    %cst_53 = arith.constant 1.42141378 : f32
    %125 = vector.broadcast %cst_53 : f32 to vector<2x512xf32>
    %126 = arith.addf %124, %125 : vector<2x512xf32>
    %127 = arith.mulf %126, %119 : vector<2x512xf32>
    %cst_54 = arith.constant -0.284496725 : f32
    %128 = vector.broadcast %cst_54 : f32 to vector<2x512xf32>
    %129 = arith.addf %127, %128 : vector<2x512xf32>
    %130 = arith.mulf %129, %119 : vector<2x512xf32>
    %cst_55 = arith.constant 0.254829586 : f32
    %131 = vector.broadcast %cst_55 : f32 to vector<2x512xf32>
    %132 = arith.addf %130, %131 : vector<2x512xf32>
    %133 = arith.mulf %132, %119 : vector<2x512xf32>
    %cst_56 = arith.constant 0.000000e+00 : f32
    %134 = vector.broadcast %cst_56 : f32 to vector<2x512xf32>
    %135 = arith.subf %134, %113 : vector<2x512xf32>
    %136 = arith.mulf %135, %113 : vector<2x512xf32>
    %137 = math.exp %136 : vector<2x512xf32>
    %138 = arith.mulf %133, %137 : vector<2x512xf32>
    %cst_57 = arith.constant 1.000000e+00 : f32
    %139 = vector.broadcast %cst_57 : f32 to vector<2x512xf32>
    %140 = arith.subf %139, %138 : vector<2x512xf32>
    %cst_58 = arith.constant 0.000000e+00 : f32
    %141 = vector.broadcast %cst_58 : f32 to vector<2x512xf32>
    %142 = arith.cmpf oge, %112, %141 : vector<2x512xf32>
    %cst_59 = arith.constant 0.000000e+00 : f32
    %143 = vector.broadcast %cst_59 : f32 to vector<2x512xf32>
    %144 = arith.subf %143, %140 : vector<2x512xf32>
    %145 = arith.select %142, %140, %144 : vector<2x512xi1>, vector<2x512xf32>
    %cst_60 = arith.constant 1.000000e+00 : f32
    %146 = vector.broadcast %cst_60 : f32 to vector<2x512xf32>
    %147 = arith.addf %146, %145 : vector<2x512xf32>
    %148 = arith.mulf %110, %147 : vector<2x512xf32>
    %149 = arith.truncf %148 : vector<2x512xf32> to vector<2x512xbf16>
    %c0_61 = arith.constant 0 : index
    %c0_62 = arith.constant 0 : index
    %c0_63 = arith.constant 0 : index
    %150 = vector.load %arg11[%c0_61, %c0_62, %c0_63] : memref<1x512x128xbf16, #tpu.memory_space<vmem>>, vector<1x512x128xbf16>
    %151 = vector.shape_cast %150 : vector<1x512x128xbf16> to vector<512x128xbf16>
    %cst_64 = arith.constant dense<0.000000e+00> : vector<2x128xf32>
    %152 = tpu.matmul %149, %151, %cst_64 {dimension_numbers = #tpu.dot_dimension_numbers<[1], [0], [0], [1], [0, 0, 1, 1], [], []>} : vector<2x512xbf16>, vector<512x128xbf16>, vector<2x128xf32> -> vector<2x128xf32>
    %c0_65 = arith.constant 0 : index
    %c0_66 = arith.constant 0 : index
    %c0_67 = arith.constant 0 : index
    %153 = vector.load %arg12[%c0_65, %c0_66, %c0_67] : memref<1x1x128xf32, #tpu.memory_space<vmem>>, vector<1x1x128xf32>
    %154 = vector.shape_cast %153 : vector<1x1x128xf32> to vector<1x128xf32>
    %155 = vector.broadcast %154 : vector<1x128xf32> to vector<2x128xf32>
    %156 = arith.addf %152, %155 : vector<2x128xf32>
    %157 = arith.addf %74, %156 : vector<2x128xf32>
    %c0_68 = arith.constant 0 : index
    %c0_69 = arith.constant 0 : index
    %158 = vector.load %arg19[%c0_68, %c0_69] : memref<2x128xf32, #tpu.memory_space<vmem>>, vector<2x128xf32>
    tpu.vector_store %arg19[%c0_68, %c0_69], %157 {strides = array<i32>} : memref<2x128xf32, #tpu.memory_space<vmem>>, vector<2x128xf32>,
    %c3_i32 = arith.constant 3 : i32
    %159 = arith.cmpi eq, %arg0, %c3_i32 : i32
    %160 = arith.extui %159 : i1 to i32
    %c0_i32_70 = arith.constant 0 : i32
    %161 = arith.cmpi ne, %160, %c0_i32_70 : i32
    scf.if %161 {
      %c0_71 = arith.constant 0 : index
      %c0_72 = arith.constant 0 : index
      %162 = vector.load %arg13[%c0_71, %c0_72] : memref<1x128xf32, #tpu.memory_space<vmem>>, vector<1x128xf32>
      %c0_73 = arith.constant 0 : index
      %c0_74 = arith.constant 0 : index
      %163 = vector.load %arg14[%c0_73, %c0_74] : memref<1x128xf32, #tpu.memory_space<vmem>>, vector<1x128xf32>
      %cst_75 = arith.constant dense<0.000000e+00> : vector<2xf32>
      %164 = vector.multi_reduction <add>, %157, %cst_75 [1] : vector<2x128xf32> to vector<2xf32>
      %165 = vector.shape_cast %164 : vector<2xf32> to vector<2x1xf32>
      %cst_76 = arith.constant 0.00892857183 : f32
      %166 = vector.broadcast %cst_76 : f32 to vector<2x1xf32>
      %167 = arith.mulf %165, %166 : vector<2x1xf32>
      %168 = vector.broadcast %167 : vector<2x1xf32> to vector<2x128xf32>
      %169 = arith.subf %157, %168 : vector<2x128xf32>
      %170 = vector.broadcast %4 : vector<1x128xf32> to vector<2x128xf32>
      %171 = arith.mulf %169, %170 : vector<2x128xf32>
      %172 = arith.mulf %171, %171 : vector<2x128xf32>
      %cst_77 = arith.constant dense<0.000000e+00> : vector<2xf32>
      %173 = vector.multi_reduction <add>, %172, %cst_77 [1] : vector<2x128xf32> to vector<2xf32>
      %174 = vector.shape_cast %173 : vector<2xf32> to vector<2x1xf32>
      %cst_78 = arith.constant 0.00892857183 : f32
      %175 = vector.broadcast %cst_78 : f32 to vector<2x1xf32>
      %176 = arith.mulf %174, %175 : vector<2x1xf32>
      %cst_79 = arith.constant 9.99999974E-6 : f32
      %177 = vector.broadcast %cst_79 : f32 to vector<2x1xf32>
      %178 = arith.addf %176, %177 : vector<2x1xf32>
      %179 = math.rsqrt %178 : vector<2x1xf32>
      %180 = vector.broadcast %179 : vector<2x1xf32> to vector<2x128xf32>
      %181 = arith.mulf %171, %180 : vector<2x128xf32>
      %182 = vector.broadcast %162 : vector<1x128xf32> to vector<2x128xf32>
      %183 = arith.mulf %181, %182 : vector<2x128xf32>
      %184 = vector.broadcast %163 : vector<1x128xf32> to vector<2x128xf32>
      %185 = arith.addf %183, %184 : vector<2x128xf32>
      %186 = arith.truncf %185 : vector<2x128xf32> to vector<2x128xbf16>
      %c0_80 = arith.constant 0 : index
      %c0_81 = arith.constant 0 : index
      %187 = vector.load %arg15[%c0_80, %c0_81] : memref<128x128xbf16, #tpu.memory_space<vmem>>, vector<128x128xbf16>
      %cst_82 = arith.constant dense<0.000000e+00> : vector<2x128xf32>
      %188 = tpu.matmul %186, %187, %cst_82 {dimension_numbers = #tpu.dot_dimension_numbers<[1], [0], [0], [1], [0, 0, 1, 1], [], []>} : vector<2x128xbf16>, vector<128x128xbf16>, vector<2x128xf32> -> vector<2x128xf32>
      %c0_83 = arith.constant 0 : index
      %c0_84 = arith.constant 0 : index
      %189 = vector.load %arg16[%c0_83, %c0_84] : memref<1x128xf32, #tpu.memory_space<vmem>>, vector<1x128xf32>
      %190 = vector.broadcast %189 : vector<1x128xf32> to vector<2x128xf32>
      %191 = arith.addf %188, %190 : vector<2x128xf32>
      %c0_85 = arith.constant 0 : index
      %c0_86 = arith.constant 0 : index
      %192 = vector.load %arg18[%c0_85, %c0_86] : memref<2x128xf32, #tpu.memory_space<vmem>>, vector<2x128xf32>
      tpu.vector_store %arg18[%c0_85, %c0_86], %191 {strides = array<i32>} : memref<2x128xf32, #tpu.memory_space<vmem>>, vector<2x128xf32>,
    } else {
    }
    return
  }
  func.func @transform_0(%arg0: i32) -> (i32, i32) {
    %c0_i32 = arith.constant 0 : i32
    %c0_i32_0 = arith.constant 0 : i32
    %c0_i32_1 = arith.constant 0 : i32
    return %c0_i32, %c0_i32_0 : i32, i32
  }
  func.func @transform_1(%arg0: i32) -> (i32, i32, i32) {
    %c0_i32 = arith.constant 0 : i32
    %c0_i32_0 = arith.constant 0 : i32
    %c0_i32_1 = arith.constant 0 : i32
    return %arg0, %c0_i32, %c0_i32_0 : i32, i32, i32
  }
  func.func @transform_2(%arg0: i32) -> (i32, i32, i32) {
    %c0_i32 = arith.constant 0 : i32
    %c0_i32_0 = arith.constant 0 : i32
    %c0_i32_1 = arith.constant 0 : i32
    return %arg0, %c0_i32, %c0_i32_0 : i32, i32, i32
  }
  func.func @transform_3(%arg0: i32) -> (i32, i32, i32) {
    %c0_i32 = arith.constant 0 : i32
    %c0_i32_0 = arith.constant 0 : i32
    %c0_i32_1 = arith.constant 0 : i32
    return %arg0, %c0_i32, %c0_i32_0 : i32, i32, i32
  }
  func.func @transform_4(%arg0: i32) -> (i32, i32, i32) {
    %c0_i32 = arith.constant 0 : i32
    %c0_i32_0 = arith.constant 0 : i32
    %c0_i32_1 = arith.constant 0 : i32
    return %arg0, %c0_i32, %c0_i32_0 : i32, i32, i32
  }
  func.func @transform_5(%arg0: i32) -> (i32, i32, i32) {
    %c0_i32 = arith.constant 0 : i32
    %c0_i32_0 = arith.constant 0 : i32
    %c0_i32_1 = arith.constant 0 : i32
    return %arg0, %c0_i32, %c0_i32_0 : i32, i32, i32
  }
  func.func @transform_6(%arg0: i32) -> (i32, i32, i32) {
    %c0_i32 = arith.constant 0 : i32
    %c0_i32_0 = arith.constant 0 : i32
    %c0_i32_1 = arith.constant 0 : i32
    return %arg0, %c0_i32, %c0_i32_0 : i32, i32, i32
  }
  func.func @transform_7(%arg0: i32) -> (i32, i32, i32) {
    %c0_i32 = arith.constant 0 : i32
    %c0_i32_0 = arith.constant 0 : i32
    %c0_i32_1 = arith.constant 0 : i32
    return %arg0, %c0_i32, %c0_i32_0 : i32, i32, i32
  }
  func.func @transform_8(%arg0: i32) -> (i32, i32, i32) {
    %c0_i32 = arith.constant 0 : i32
    %c0_i32_0 = arith.constant 0 : i32
    %c0_i32_1 = arith.constant 0 : i32
    return %arg0, %c0_i32, %c0_i32_0 : i32, i32, i32
  }
  func.func @transform_9(%arg0: i32) -> (i32, i32, i32) {
    %c0_i32 = arith.constant 0 : i32
    %c0_i32_0 = arith.constant 0 : i32
    %c0_i32_1 = arith.constant 0 : i32
    return %arg0, %c0_i32, %c0_i32_0 : i32, i32, i32
  }
  func.func @transform_10(%arg0: i32) -> (i32, i32, i32) {
    %c0_i32 = arith.constant 0 : i32
    %c0_i32_0 = arith.constant 0 : i32
    %c0_i32_1 = arith.constant 0 : i32
    return %arg0, %c0_i32, %c0_i32_0 : i32, i32, i32
  }
  func.func @transform_11(%arg0: i32) -> (i32, i32, i32) {
    %c0_i32 = arith.constant 0 : i32
    %c0_i32_0 = arith.constant 0 : i32
    %c0_i32_1 = arith.constant 0 : i32
    return %arg0, %c0_i32, %c0_i32_0 : i32, i32, i32
  }
  func.func @transform_12(%arg0: i32) -> (i32, i32) {
    %c0_i32 = arith.constant 0 : i32
    %c0_i32_0 = arith.constant 0 : i32
    %c0_i32_1 = arith.constant 0 : i32
    return %c0_i32, %c0_i32_0 : i32, i32
  }
  func.func @transform_13(%arg0: i32) -> (i32, i32) {
    %c0_i32 = arith.constant 0 : i32
    %c0_i32_0 = arith.constant 0 : i32
    %c0_i32_1 = arith.constant 0 : i32
    return %c0_i32, %c0_i32_0 : i32, i32
  }
  func.func @transform_14(%arg0: i32) -> (i32, i32) {
    %c0_i32 = arith.constant 0 : i32
    %c0_i32_0 = arith.constant 0 : i32
    %c0_i32_1 = arith.constant 0 : i32
    return %c0_i32, %c0_i32_0 : i32, i32
  }
  func.func @transform_15(%arg0: i32) -> (i32, i32) {
    %c0_i32 = arith.constant 0 : i32
    %c0_i32_0 = arith.constant 0 : i32
    %c0_i32_1 = arith.constant 0 : i32
    return %c0_i32, %c0_i32_0 : i32, i32
  }
  func.func @transform_16(%arg0: i32) -> (i32, i32) {
    %c0_i32 = arith.constant 0 : i32
    %c0_i32_0 = arith.constant 0 : i32
    %c0_i32_1 = arith.constant 0 : i32
    return %c0_i32, %c0_i32_0 : i32, i32
  }
  func.func @transform_17(%arg0: i32) -> (i32, i32) {
    %c0_i32 = arith.constant 0 : i32
    %c0_i32_0 = arith.constant 0 : i32
    %c0_i32_1 = arith.constant 0 : i32
    return %c0_i32, %c0_i32_0 : i32, i32
  }
}

</mosaic_0001>

<llo_original>
// kernel: tpu_custom_call.1
$region0: #{tpu_custom_call.1}
  #allocation0 [shape = 'u32[]', space=smem, size = 0x4, offset = 0x4, fixed_abs, tag = 'smem constant byte address 0x4 - core index']
  #allocation1 [shape = 'u32[72,128]{1,0:T(1,128)}', space=vmem, size = 0x9000, scoped, tag = 'internal scratch']
  #allocation2 [shape = 'f32[2,128]{1,0:T(2,128)}', space=vmem, size = 0x400, scoped, tag = 'scratch operand']
  %s0 = inlined_call_operand.hbm [shape: f32[2,128], index: 0, kind: input, shape index: {}]
  %s1 = inlined_call_operand.hbm [shape: f32[4,1,128], index: 1, kind: input, shape index: {}]
  %s2 = inlined_call_operand.hbm [shape: f32[4,1,128], index: 2, kind: input, shape index: {}]
  %s3 = inlined_call_operand.hbm [shape: bf16[4,128,384], index: 3, kind: input, shape index: {}]
  %s4 = inlined_call_operand.hbm [shape: bf16[4,128,128], index: 4, kind: input, shape index: {}]
  %s5 = inlined_call_operand.vmem [shape: f32[4,1,128], index: 5, kind: input, shape index: {}]
  %s6 = inlined_call_operand.hbm [shape: f32[4,1,128], index: 6, kind: input, shape index: {}]
  %s7 = inlined_call_operand.hbm [shape: f32[4,1,128], index: 7, kind: input, shape index: {}]
  %s8 = inlined_call_operand.hbm [shape: bf16[4,128,512], index: 8, kind: input, shape index: {}]
  %s9 = inlined_call_operand.hbm [shape: f32[4,1,512], index: 9, kind: input, shape index: {}]
  %s10 = inlined_call_operand.hbm [shape: bf16[4,512,128], index: 10, kind: input, shape index: {}]
  %s11 = inlined_call_operand.vmem [shape: f32[4,1,128], index: 11, kind: input, shape index: {}]
  %s12 = inlined_call_operand.vmem [shape: f32[1,128], index: 12, kind: input, shape index: {}]
  %s13 = inlined_call_operand.vmem [shape: f32[1,128], index: 13, kind: input, shape index: {}]
  %s14 = inlined_call_operand.hbm [shape: bf16[128,128], index: 14, kind: input, shape index: {}]
  %s15 = inlined_call_operand.vmem [shape: f32[1,128], index: 15, kind: input, shape index: {}]
  %s16 = inlined_call_operand.hbm [shape: f32[128,128], index: 16, kind: input, shape index: {}]
  %s17 = inlined_call_operand.hbm [shape: f32[2,128], index: 17, kind: output, shape index: {}]
  %s18 = sld [smem:[#allocation0]]
  $region157: #{tpu_custom_call.1} parent=0
    _
  %s20 = ssub.s32 1, %s18
  %s21 = scalar_select 0, %s20, %s18
  $region1: #{tpu_custom_call.1} parent=0
    #allocation3 [shape = 'u8[1024]{0}', space=vmem, size = 0x400, scoped, tag = 'input window, operand 0, single buffered']
    #allocation4 [shape = 's32[2]{0}', space=sflag, size = 0x8, scoped, tag = 'scoped memory for tpu_custom_call.1']
    #allocation5 [shape = 's32[2]{0}', space=sflag, size = 0x8, scoped, tag = 'scoped memory for tpu_custom_call.1']
    #allocation6 [shape = 'u8[1024]{0}', space=vmem, size = 0x400, scoped, tag = 'input window, operand 1']
    #allocation7 [shape = 's32[2]{0}', space=sflag, size = 0x8, scoped, tag = 'scoped memory for tpu_custom_call.1']
    #allocation8 [shape = 'u8[1024]{0}', space=vmem, size = 0x400, scoped, tag = 'input window, operand 2']
    #allocation9 [shape = 'u8[196608]{0}', space=vmem, size = 0x30000, scoped, tag = 'input window, operand 3']
    #allocation10 [shape = 's32[2]{0}', space=sflag, size = 0x8, scoped, tag = 'scoped memory for tpu_custom_call.1']
    #allocation11 [shape = 'u8[65536]{0}', space=vmem, size = 0x10000, scoped, tag = 'input window, operand 4']
    #allocation12 [shape = 'u8[1024]{0}', space=vmem, size = 0x400, scoped, tag = 'input window, operand 6']
    #allocation13 [shape = 's32[2]{0}', space=sflag, size = 0x8, scoped, tag = 'scoped memory for tpu_custom_call.1']
    #allocation14 [shape = 'u8[1024]{0}', space=vmem, size = 0x400, scoped, tag = 'input window, operand 7']
    #allocation15 [shape = 'u8[262144]{0}', space=vmem, size = 0x40000, scoped, tag = 'input window, operand 8']
    #allocation16 [shape = 's32[2]{0}', space=sflag, size = 0x8, scoped, tag = 'scoped memory for tpu_custom_call.1']
    #allocation17 [shape = 'u8[4096]{0}', space=vmem, size = 0x1000, scoped, tag = 'input window, operand 9']
    #allocation18 [shape = 'u8[262144]{0}', space=vmem, size = 0x40000, scoped, tag = 'input window, operand 10']
    #allocation19 [shape = 's32[2]{0}', space=sflag, size = 0x8, scoped, tag = 'scoped memory for tpu_custom_call.1']
    #allocation20 [shape = 'u8[32768]{0}', space=vmem, size = 0x8000, scoped, tag = 'input window, operand 14, single buffered']
    #allocation21 [shape = 'u8[65536]{0}', space=vmem, size = 0x10000, scoped, tag = 'input window, operand 16, single buffered']
    #allocation22 [shape = 's32[1]{0}', space=sflag, size = 0x4, scoped, tag = 'scoped memory for tpu_custom_call.1']
    #allocation23 [shape = 'u8[1024]{0}', space=vmem, size = 0x400, scoped, tag = 'output window, operand 0, single buffered']
    %22 = vsyncpa [#allocation4], 0
    %23 = vsyncpa [#allocation7], 0
    %s24 = scalar_lea.sflag [#allocation7], 1
    %25 = vsyncpa %s24, 0
    %26 = vsyncpa [#allocation10], 0
    %s27 = scalar_lea.sflag [#allocation10], 1
    %28 = vsyncpa %s27, 0
    %29 = vsyncpa [#allocation13], 0
    %s30 = scalar_lea.sflag [#allocation13], 1
    %31 = vsyncpa %s30, 0
    %32 = vsyncpa [#allocation16], 0
    %s33 = scalar_lea.sflag [#allocation16], 1
    %34 = vsyncpa %s33, 0
    %35 = vsyncpa [#allocation19], 0
    %s36 = scalar_lea.sflag [#allocation19], 1
    %37 = vsyncpa %s36, 0
    %38 = vsyncpa [#allocation22], 0
    %39 = vsyncpa [#allocation5], 0
    loop: start=0, step=1, limit=6
    $region2: #{tpu_custom_call.1} parent=1 // loop_pre_header
      _
    $region3: #{tpu_custom_call.1} parent=1 // loop_header
      %s41 = sphi 0, %s45
      %p42 = scmp.ge.s32.totalorder %s41, 6
      %s49 = sphi 0, %s49
      %s51 = sphi 0, %s49
      %s52 = sphi 0, %s51
      %s66 = sphi 0, %s52
      %s72 = sphi 0, %s74
      %s75 = sphi 0, %s72
      %s76 = sphi 0, %s75
      %s92 = sphi 0, %s76
      %s98 = sphi 0, %s100
      %s101 = sphi 0, %s98
      %s102 = sphi 0, %s101
      %s118 = sphi 0, %s102
      %s124 = sphi 0, %s126
      %s127 = sphi 0, %s124
      %s128 = sphi 0, %s127
      %s144 = sphi 0, %s128
      %s150 = sphi 0, %s152
      %s153 = sphi 0, %s150
      %s154 = sphi 0, %s153
      %s170 = sphi 0, %s154
      %s176 = sphi 0, %s178
      %s179 = sphi 0, %s176
      %s180 = sphi 0, %s179
      %s196 = sphi 0, %s180
      %s202 = sphi 0, %s204
      %s205 = sphi 0, %s202
      %s206 = sphi 0, %s205
      %s222 = sphi 0, %s206
      %s228 = sphi 0, %s230
      %s231 = sphi 0, %s228
      %s232 = sphi 0, %s231
      %s248 = sphi 0, %s232
      %s254 = sphi 0, %s256
      %s257 = sphi 0, %s254
      %s258 = sphi 0, %s257
      %s274 = sphi 0, %s258
      %s280 = sphi 0, %s282
      %s283 = sphi 0, %s280
      %s284 = sphi 0, %s283
      %s300 = sphi 0, %s284
      %s306 = sphi 0, %s308
      %s309 = sphi 0, %s306
      %s310 = sphi 0, %s309
      %s326 = sphi 0, %s310
      %s332 = sphi 0, %s334
      %s335 = sphi 0, %s332
      %s336 = sphi 0, %s335
      %s352 = sphi 0, %s336
      %s356 = sphi 0, %s356
      %s358 = sphi 0, %s356
      %s359 = sphi 0, %s358
      %s373 = sphi 0, %s359
      %s377 = sphi 0, %s377
      %s379 = sphi 0, %s377
      %s380 = sphi 0, %s379
      %s394 = sphi 0, %s380
      %s398 = sphi 0, %s398
      %s400 = sphi 0, %s398
      %s401 = sphi 0, %s400
      %s415 = sphi 0, %s401
      %s419 = sphi 0, %s419
      %s421 = sphi 0, %s419
      %s422 = sphi 0, %s421
      %s436 = sphi 0, %s422
      %s440 = sphi 0, %s440
      %s442 = sphi 0, %s440
      %s443 = sphi 0, %s442
      %s457 = sphi 0, %s443
      %s461 = sphi 0, %s461
      %s463 = sphi 0, %s461
      %s464 = sphi 0, %s463
      %s478 = sphi 0, %s464
    $region4: #{tpu_custom_call.1} parent=1 // loop_header_branch
      %44 = sbr.rel (%p42) target = $region8
    $region5: #{tpu_custom_call.1} parent=1 // loop_body
      %s46 = ssub.s32 %s41, 1
      %s47 = ssub.s32 %s41, 2
      %s48 = sadd.s32 %s41, 1
      %s50 = sadd.s32 %s49, 1
      %p53 = scmp.eq.s32.totalorder %s41, 3
      %p54 = scmp.ne.s32.totalorder %s49, %s51
      %p55 = scmp.eq.s32.totalorder %s41, 0
      %p56 = por %p54, %p55
      %p57 = scmp.ne.s32.totalorder %s49, %s51
      %p58 = scmp.eq.s32.totalorder %s46, 3
      %p59 = por %p57, %p58
      %p60 = scmp.ne.s32.totalorder %s51, %s52
      %p61 = scmp.eq.s32.totalorder %s46, 0
      %p62 = por %p60, %p61
      %p63 = scmp.ne.s32.totalorder %s51, %s52
      %p64 = scmp.eq.s32.totalorder %s47, 3
      %p65 = por %p63, %p64
      %p67 = scmp.ne.s32.totalorder %s52, %s66
      %p68 = scmp.eq.s32.totalorder %s47, 0
      %p69 = por %p67, %p68
      %s70 = ssub.s32 %s41, %s48
      %p71 = scmp.eq.s32.totalorder %s70, 0
      %s73 = sadd.s32 %s72, 1
      %s74 = scalar_select %p71, %s72, %s73
      %p77 = pneg %p71
      %p78 = scmp.eq.s32.totalorder %s41, 3
      %p79 = por %p77, %p78
      %p80 = scmp.ne.s32.totalorder %s72, %s75
      %p81 = scmp.eq.s32.totalorder %s41, 0
      %p82 = por %p80, %p81
      %p83 = scmp.ne.s32.totalorder %s72, %s75
      %p84 = scmp.eq.s32.totalorder %s46, 3
      %p85 = por %p83, %p84
      %p86 = scmp.ne.s32.totalorder %s75, %s76
      %p87 = scmp.eq.s32.totalorder %s46, 0
      %p88 = por %p86, %p87
      %p89 = scmp.ne.s32.totalorder %s75, %s76
      %p90 = scmp.eq.s32.totalorder %s47, 3
      %p91 = por %p89, %p90
      %p93 = scmp.ne.s32.totalorder %s76, %s92
      %p94 = scmp.eq.s32.totalorder %s47, 0
      %p95 = por %p93, %p94
      %s96 = ssub.s32 %s41, %s48
      %p97 = scmp.eq.s32.totalorder %s96, 0
      %s99 = sadd.s32 %s98, 1
      %s100 = scalar_select %p97, %s98, %s99
      %p103 = pneg %p97
      %p104 = scmp.eq.s32.totalorder %s41, 3
      %p105 = por %p103, %p104
      %p106 = scmp.ne.s32.totalorder %s98, %s101
      %p107 = scmp.eq.s32.totalorder %s41, 0
      %p108 = por %p106, %p107
      %p109 = scmp.ne.s32.totalorder %s98, %s101
      %p110 = scmp.eq.s32.totalorder %s46, 3
      %p111 = por %p109, %p110
      %p112 = scmp.ne.s32.totalorder %s101, %s102
      %p113 = scmp.eq.s32.totalorder %s46, 0
      %p114 = por %p112, %p113
      %p115 = scmp.ne.s32.totalorder %s101, %s102
      %p116 = scmp.eq.s32.totalorder %s47, 3
      %p117 = por %p115, %p116
      %p119 = scmp.ne.s32.totalorder %s102, %s118
      %p120 = scmp.eq.s32.totalorder %s47, 0
      %p121 = por %p119, %p120
      %s122 = ssub.s32 %s41, %s48
      %p123 = scmp.eq.s32.totalorder %s122, 0
      %s125 = sadd.s32 %s124, 1
      %s126 = scalar_select %p123, %s124, %s125
      %p129 = pneg %p123
      %p130 = scmp.eq.s32.totalorder %s41, 3
      %p131 = por %p129, %p130
      %p132 = scmp.ne.s32.totalorder %s124, %s127
      %p133 = scmp.eq.s32.totalorder %s41, 0
      %p134 = por %p132, %p133
      %p135 = scmp.ne.s32.totalorder %s124, %s127
      %p136 = scmp.eq.s32.totalorder %s46, 3
      %p137 = por %p135, %p136
      %p138 = scmp.ne.s32.totalorder %s127, %s128
      %p139 = scmp.eq.s32.totalorder %s46, 0
      %p140 = por %p138, %p139
      %p141 = scmp.ne.s32.totalorder %s127, %s128
      %p142 = scmp.eq.s32.totalorder %s47, 3
      %p143 = por %p141, %p142
      %p145 = scmp.ne.s32.totalorder %s128, %s144
      %p146 = scmp.eq.s32.totalorder %s47, 0
      %p147 = por %p145, %p146
      %s148 = ssub.s32 %s41, %s48
      %p149 = scmp.eq.s32.totalorder %s148, 0
      %s151 = sadd.s32 %s150, 1
      %s152 = scalar_select %p149, %s150, %s151
      %p155 = pneg %p149
      %p156 = scmp.eq.s32.totalorder %s41, 3
      %p157 = por %p155, %p156
      %p158 = scmp.ne.s32.totalorder %s150, %s153
      %p159 = scmp.eq.s32.totalorder %s41, 0
      %p160 = por %p158, %p159
      %p161 = scmp.ne.s32.totalorder %s150, %s153
      %p162 = scmp.eq.s32.totalorder %s46, 3
      %p163 = por %p161, %p162
      %p164 = scmp.ne.s32.totalorder %s153, %s154
      %p165 = scmp.eq.s32.totalorder %s46, 0
      %p166 = por %p164, %p165
      %p167 = scmp.ne.s32.totalorder %s153, %s154
      %p168 = scmp.eq.s32.totalorder %s47, 3
      %p169 = por %p167, %p168
      %p171 = scmp.ne.s32.totalorder %s154, %s170
      %p172 = scmp.eq.s32.totalorder %s47, 0
      %p173 = por %p171, %p172
      %s174 = ssub.s32 %s41, %s48
      %p175 = scmp.eq.s32.totalorder %s174, 0
      %s177 = sadd.s32 %s176, 1
      %s178 = scalar_select %p175, %s176, %s177
      %p181 = pneg %p175
      %p182 = scmp.eq.s32.totalorder %s41, 3
      %p183 = por %p181, %p182
      %p184 = scmp.ne.s32.totalorder %s176, %s179
      %p185 = scmp.eq.s32.totalorder %s41, 0
      %p186 = por %p184, %p185
      %p187 = scmp.ne.s32.totalorder %s176, %s179
      %p188 = scmp.eq.s32.totalorder %s46, 3
      %p189 = por %p187, %p188
      %p190 = scmp.ne.s32.totalorder %s179, %s180
      %p191 = scmp.eq.s32.totalorder %s46, 0
      %p192 = por %p190, %p191
      %p193 = scmp.ne.s32.totalorder %s179, %s180
      %p194 = scmp.eq.s32.totalorder %s47, 3
      %p195 = por %p193, %p194
      %p197 = scmp.ne.s32.totalorder %s180, %s196
      %p198 = scmp.eq.s32.totalorder %s47, 0
      %p199 = por %p197, %p198
      %s200 = ssub.s32 %s41, %s48
      %p201 = scmp.eq.s32.totalorder %s200, 0
      %s203 = sadd.s32 %s202, 1
      %s204 = scalar_select %p201, %s202, %s203
      %p207 = pneg %p201
      %p208 = scmp.eq.s32.totalorder %s41, 3
      %p209 = por %p207, %p208
      %p210 = scmp.ne.s32.totalorder %s202, %s205
      %p211 = scmp.eq.s32.totalorder %s41, 0
      %p212 = por %p210, %p211
      %p213 = scmp.ne.s32.totalorder %s202, %s205
      %p214 = scmp.eq.s32.totalorder %s46, 3
      %p215 = por %p213, %p214
      %p216 = scmp.ne.s32.totalorder %s205, %s206
      %p217 = scmp.eq.s32.totalorder %s46, 0
      %p218 = por %p216, %p217
      %p219 = scmp.ne.s32.totalorder %s205, %s206
      %p220 = scmp.eq.s32.totalorder %s47, 3
      %p221 = por %p219, %p220
      %p223 = scmp.ne.s32.totalorder %s206, %s222
      %p224 = scmp.eq.s32.totalorder %s47, 0
      %p225 = por %p223, %p224
      %s226 = ssub.s32 %s41, %s48
      %p227 = scmp.eq.s32.totalorder %s226, 0
      %s229 = sadd.s32 %s228, 1
      %s230 = scalar_select %p227, %s228, %s229
      %p233 = pneg %p227
      %p234 = scmp.eq.s32.totalorder %s41, 3
      %p235 = por %p233, %p234
      %p236 = scmp.ne.s32.totalorder %s228, %s231
      %p237 = scmp.eq.s32.totalorder %s41, 0
      %p238 = por %p236, %p237
      %p239 = scmp.ne.s32.totalorder %s228, %s231
      %p240 = scmp.eq.s32.totalorder %s46, 3
      %p241 = por %p239, %p240
      %p242 = scmp.ne.s32.totalorder %s231, %s232
      %p243 = scmp.eq.s32.totalorder %s46, 0
      %p244 = por %p242, %p243
      %p245 = scmp.ne.s32.totalorder %s231, %s232
      %p246 = scmp.eq.s32.totalorder %s47, 3
      %p247 = por %p245, %p246
      %p249 = scmp.ne.s32.totalorder %s232, %s248
      %p250 = scmp.eq.s32.totalorder %s47, 0
      %p251 = por %p249, %p250
      %s252 = ssub.s32 %s41, %s48
      %p253 = scmp.eq.s32.totalorder %s252, 0
      %s255 = sadd.s32 %s254, 1
      %s256 = scalar_select %p253, %s254, %s255
      %p259 = pneg %p253
      %p260 = scmp.eq.s32.totalorder %s41, 3
      %p261 = por %p259, %p260
      %p262 = scmp.ne.s32.totalorder %s254, %s257
      %p263 = scmp.eq.s32.totalorder %s41, 0
      %p264 = por %p262, %p263
      %p265 = scmp.ne.s32.totalorder %s254, %s257
      %p266 = scmp.eq.s32.totalorder %s46, 3
      %p267 = por %p265, %p266
      %p268 = scmp.ne.s32.totalorder %s257, %s258
      %p269 = scmp.eq.s32.totalorder %s46, 0
      %p270 = por %p268, %p269
      %p271 = scmp.ne.s32.totalorder %s257, %s258
      %p272 = scmp.eq.s32.totalorder %s47, 3
      %p273 = por %p271, %p272
      %p275 = scmp.ne.s32.totalorder %s258, %s274
      %p276 = scmp.eq.s32.totalorder %s47, 0
      %p277 = por %p275, %p276
      %s278 = ssub.s32 %s41, %s48
      %p279 = scmp.eq.s32.totalorder %s278, 0
      %s281 = sadd.s32 %s280, 1
      %s282 = scalar_select %p279, %s280, %s281
      %p285 = pneg %p279
      %p286 = scmp.eq.s32.totalorder %s41, 3
      %p287 = por %p285, %p286
      %p288 = scmp.ne.s32.totalorder %s280, %s283
      %p289 = scmp.eq.s32.totalorder %s41, 0
      %p290 = por %p288, %p289
      %p291 = scmp.ne.s32.totalorder %s280, %s283
      %p292 = scmp.eq.s32.totalorder %s46, 3
      %p293 = por %p291, %p292
      %p294 = scmp.ne.s32.totalorder %s283, %s284
      %p295 = scmp.eq.s32.totalorder %s46, 0
      %p296 = por %p294, %p295
      %p297 = scmp.ne.s32.totalorder %s283, %s284
      %p298 = scmp.eq.s32.totalorder %s47, 3
      %p299 = por %p297, %p298
      %p301 = scmp.ne.s32.totalorder %s284, %s300
      %p302 = scmp.eq.s32.totalorder %s47, 0
      %p303 = por %p301, %p302
      %s304 = ssub.s32 %s41, %s48
      %p305 = scmp.eq.s32.totalorder %s304, 0
      %s307 = sadd.s32 %s306, 1
      %s308 = scalar_select %p305, %s306, %s307
      %p311 = pneg %p305
      %p312 = scmp.eq.s32.totalorder %s41, 3
      %p313 = por %p311, %p312
      %p314 = scmp.ne.s32.totalorder %s306, %s309
      %p315 = scmp.eq.s32.totalorder %s41, 0
      %p316 = por %p314, %p315
      %p317 = scmp.ne.s32.totalorder %s306, %s309
      %p318 = scmp.eq.s32.totalorder %s46, 3
      %p319 = por %p317, %p318
      %p320 = scmp.ne.s32.totalorder %s309, %s310
      %p321 = scmp.eq.s32.totalorder %s46, 0
      %p322 = por %p320, %p321
      %p323 = scmp.ne.s32.totalorder %s309, %s310
      %p324 = scmp.eq.s32.totalorder %s47, 3
      %p325 = por %p323, %p324
      %p327 = scmp.ne.s32.totalorder %s310, %s326
      %p328 = scmp.eq.s32.totalorder %s47, 0
      %p329 = por %p327, %p328
      %s330 = ssub.s32 %s41, %s48
      %p331 = scmp.eq.s32.totalorder %s330, 0
      %s333 = sadd.s32 %s332, 1
      %s334 = scalar_select %p331, %s332, %s333
      %p337 = pneg %p331
      %p338 = scmp.eq.s32.totalorder %s41, 3
      %p339 = por %p337, %p338
      %p340 = scmp.ne.s32.totalorder %s332, %s335
      %p341 = scmp.eq.s32.totalorder %s41, 0
      %p342 = por %p340, %p341
      %p343 = scmp.ne.s32.totalorder %s332, %s335
      %p344 = scmp.eq.s32.totalorder %s46, 3
      %p345 = por %p343, %p344
      %p346 = scmp.ne.s32.totalorder %s335, %s336
      %p347 = scmp.eq.s32.totalorder %s46, 0
      %p348 = por %p346, %p347
      %p349 = scmp.ne.s32.totalorder %s335, %s336
      %p350 = scmp.eq.s32.totalorder %s47, 3
      %p351 = por %p349, %p350
      %p353 = scmp.ne.s32.totalorder %s336, %s352
      %p354 = scmp.eq.s32.totalorder %s47, 0
      %p355 = por %p353, %p354
      %s357 = sadd.s32 %s356, 1
      %p360 = scmp.eq.s32.totalorder %s41, 3
      %p361 = scmp.ne.s32.totalorder %s356, %s358
      %p362 = scmp.eq.s32.totalorder %s41, 0
      %p363 = por %p361, %p362
      %p364 = scmp.ne.s32.totalorder %s356, %s358
      %p365 = scmp.eq.s32.totalorder %s46, 3
      %p366 = por %p364, %p365
      %p367 = scmp.ne.s32.totalorder %s358, %s359
      %p368 = scmp.eq.s32.totalorder %s46, 0
      %p369 = por %p367, %p368
      %p370 = scmp.ne.s32.totalorder %s358, %s359
      %p371 = scmp.eq.s32.totalorder %s47, 3
      %p372 = por %p370, %p371
      %p374 = scmp.ne.s32.totalorder %s359, %s373
      %p375 = scmp.eq.s32.totalorder %s47, 0
      %p376 = por %p374, %p375
      %s378 = sadd.s32 %s377, 1
      %p381 = scmp.eq.s32.totalorder %s41, 3
      %p382 = scmp.ne.s32.totalorder %s377, %s379
      %p383 = scmp.eq.s32.totalorder %s41, 0
      %p384 = por %p382, %p383
      %p385 = scmp.ne.s32.totalorder %s377, %s379
      %p386 = scmp.eq.s32.totalorder %s46, 3
      %p387 = por %p385, %p386
      %p388 = scmp.ne.s32.totalorder %s379, %s380
      %p389 = scmp.eq.s32.totalorder %s46, 0
      %p390 = por %p388, %p389
      %p391 = scmp.ne.s32.totalorder %s379, %s380
      %p392 = scmp.eq.s32.totalorder %s47, 3
      %p393 = por %p391, %p392
      %p395 = scmp.ne.s32.totalorder %s380, %s394
      %p396 = scmp.eq.s32.totalorder %s47, 0
      %p397 = por %p395, %p396
      %s399 = sadd.s32 %s398, 1
      %p402 = scmp.eq.s32.totalorder %s41, 3
      %p403 = scmp.ne.s32.totalorder %s398, %s400
      %p404 = scmp.eq.s32.totalorder %s41, 0
      %p405 = por %p403, %p404
      %p406 = scmp.ne.s32.totalorder %s398, %s400
      %p407 = scmp.eq.s32.totalorder %s46, 3
      %p408 = por %p406, %p407
      %p409 = scmp.ne.s32.totalorder %s400, %s401
      %p410 = scmp.eq.s32.totalorder %s46, 0
      %p411 = por %p409, %p410
      %p412 = scmp.ne.s32.totalorder %s400, %s401
      %p413 = scmp.eq.s32.totalorder %s47, 3
      %p414 = por %p412, %p413
      %p416 = scmp.ne.s32.totalorder %s401, %s415
      %p417 = scmp.eq.s32.totalorder %s47, 0
      %p418 = por %p416, %p417
      %s420 = sadd.s32 %s419, 1
      %p423 = scmp.eq.s32.totalorder %s41, 3
      %p424 = scmp.ne.s32.totalorder %s419, %s421
      %p425 = scmp.eq.s32.totalorder %s41, 0
      %p426 = por %p424, %p425
      %p427 = scmp.ne.s32.totalorder %s419, %s421
      %p428 = scmp.eq.s32.totalorder %s46, 3
      %p429 = por %p427, %p428
      %p430 = scmp.ne.s32.totalorder %s421, %s422
      %p431 = scmp.eq.s32.totalorder %s46, 0
      %p432 = por %p430, %p431
      %p433 = scmp.ne.s32.totalorder %s421, %s422
      %p434 = scmp.eq.s32.totalorder %s47, 3
      %p435 = por %p433, %p434
      %p437 = scmp.ne.s32.totalorder %s422, %s436
      %p438 = scmp.eq.s32.totalorder %s47, 0
      %p439 = por %p437, %p438
      %s441 = sadd.s32 %s440, 1
      %p444 = scmp.eq.s32.totalorder %s41, 3
      %p445 = scmp.ne.s32.totalorder %s440, %s442
      %p446 = scmp.eq.s32.totalorder %s41, 0
      %p447 = por %p445, %p446
      %p448 = scmp.ne.s32.totalorder %s440, %s442
      %p449 = scmp.eq.s32.totalorder %s46, 3
      %p450 = por %p448, %p449
      %p451 = scmp.ne.s32.totalorder %s442, %s443
      %p452 = scmp.eq.s32.totalorder %s46, 0
      %p453 = por %p451, %p452
      %p454 = scmp.ne.s32.totalorder %s442, %s443
      %p455 = scmp.eq.s32.totalorder %s47, 3
      %p456 = por %p454, %p455
      %p458 = scmp.ne.s32.totalorder %s443, %s457
      %p459 = scmp.eq.s32.totalorder %s47, 0
      %p460 = por %p458, %p459
      %s462 = sadd.s32 %s461, 1
      %p465 = scmp.eq.s32.totalorder %s41, 3
      %p466 = scmp.ne.s32.totalorder %s461, %s463
      %p467 = scmp.eq.s32.totalorder %s41, 0
      %p468 = por %p466, %p467
      %p469 = scmp.ne.s32.totalorder %s461, %s463
      %p470 = scmp.eq.s32.totalorder %s46, 3
      %p471 = por %p469, %p470
      %p472 = scmp.ne.s32.totalorder %s463, %s464
      %p473 = scmp.eq.s32.totalorder %s46, 0
      %p474 = por %p472, %p473
      %p475 = scmp.ne.s32.totalorder %s463, %s464
      %p476 = scmp.eq.s32.totalorder %s47, 3
      %p477 = por %p475, %p476
      %p479 = scmp.ne.s32.totalorder %s464, %s478
      %p480 = scmp.eq.s32.totalorder %s47, 0
      %p481 = por %p479, %p480
      %p482 = scmp.le.s32.totalorder 1, %s41
      %p483 = scmp.lt.s32.totalorder %s41, 5
      %p484 = pnand %p482, %p483
      %p485 = pneg %p484
      // Predicated region
      $region9: #{tpu_custom_call.1} parent=5 // pred_check
        _
      $region10: #{tpu_custom_call.1} parent=5 // pred_check_branch
        %487 = sbr.rel (%p484) target = $region12
      $region11: #{tpu_custom_call.1} parent=5 // pred_region
        %s488 = ssub.s32 %s41, 1
        // Predicated region
        $region13: #{tpu_custom_call.1} parent=11 // pred_check
          %p489 = pneg %p62
        $region14: #{tpu_custom_call.1} parent=11 // pred_check_branch
          %491 = sbr.rel (%p489) target = $region16
        $region15: #{tpu_custom_call.1} parent=11 // pred_region
          %493 = vsyncadd [#allocation4], 0
          %s495 = sshll.u32 %s0, 4
          %s496 = int_to_ptr.hbm [resolvable:$true] %s495
          %s497 = sshll.u32 [#allocation3], 4
          %s498 = int_to_ptr.vmem [resolvable:$true] %s497
          %500 = dma.hbm_to_vmem [thread:$0]  %s496, 32, %s498, [#allocation4]
        $region16: #{tpu_custom_call.1} parent=11 // pred_fallthru
          _
        // Predicated region
        $region17: #{tpu_custom_call.1} parent=11 // pred_check
          %p501 = pneg %p369
        $region18: #{tpu_custom_call.1} parent=11 // pred_check_branch
          %503 = sbr.rel (%p501) target = $region20
        $region19: #{tpu_custom_call.1} parent=11 // pred_region
          _
        $region20: #{tpu_custom_call.1} parent=11 // pred_fallthru
          _
        // Predicated region
        $region21: #{tpu_custom_call.1} parent=11 // pred_check
          %p504 = pneg %p390
        $region22: #{tpu_custom_call.1} parent=11 // pred_check_branch
          %506 = sbr.rel (%p504) target = $region24
        $region23: #{tpu_custom_call.1} parent=11 // pred_region
          _
        $region24: #{tpu_custom_call.1} parent=11 // pred_fallthru
          _
        // Predicated region
        $region25: #{tpu_custom_call.1} parent=11 // pred_check
          %p507 = pneg %p411
        $region26: #{tpu_custom_call.1} parent=11 // pred_check_branch
          %509 = sbr.rel (%p507) target = $region28
        $region27: #{tpu_custom_call.1} parent=11 // pred_region
          %511 = vsyncadd [#allocation19], 0
          %s512 = sshll.u32 %s14, 4
          %s513 = int_to_ptr.hbm [resolvable:$true] %s512
          %s514 = sshll.u32 [#allocation20], 4
          %s515 = int_to_ptr.vmem [resolvable:$true] %s514
          %520 = dma.hbm_to_vmem [thread:$0]  %s513, 1024, %s515, [#allocation19], 64, 64, 4
        $region28: #{tpu_custom_call.1} parent=11 // pred_fallthru
          _
        // Predicated region
        $region29: #{tpu_custom_call.1} parent=11 // pred_check
          %p521 = pneg %p432
        $region30: #{tpu_custom_call.1} parent=11 // pred_check_branch
          %523 = sbr.rel (%p521) target = $region32
        $region31: #{tpu_custom_call.1} parent=11 // pred_region
          _
        $region32: #{tpu_custom_call.1} parent=11 // pred_fallthru
          _
        // Predicated region
        $region33: #{tpu_custom_call.1} parent=11 // pred_check
          %p524 = pneg %p453
        $region34: #{tpu_custom_call.1} parent=11 // pred_check_branch
          %526 = sbr.rel (%p524) target = $region36
        $region35: #{tpu_custom_call.1} parent=11 // pred_region
          %528 = vsyncadd [#allocation22], 0
          %s529 = sshll.u32 %s16, 4
          %s530 = int_to_ptr.hbm [resolvable:$true] %s529
          %s531 = sshll.u32 [#allocation21], 4
          %s532 = int_to_ptr.vmem [resolvable:$true] %s531
          %537 = dma.hbm_to_vmem [thread:$0]  %s530, 2048, %s532, [#allocation22], 128, 128, 8
        $region36: #{tpu_custom_call.1} parent=11 // pred_fallthru
          _
      $region12: #{tpu_custom_call.1} parent=5 // pred_fallthru
        _
      %p538 = scmp.lt.s32.totalorder %s41, 4
      // Predicated region
      $region37: #{tpu_custom_call.1} parent=5 // pred_check
        %p539 = pneg %p538
      $region38: #{tpu_custom_call.1} parent=5 // pred_check_branch
        %541 = sbr.rel (%p539) target = $region40
      $region39: #{tpu_custom_call.1} parent=5 // pred_region
        // Predicated region
        $region41: #{tpu_custom_call.1} parent=39 // pred_check
          %p542 = pneg %p82
        $region42: #{tpu_custom_call.1} parent=39 // pred_check_branch
          %544 = sbr.rel (%p542) target = $region44
        $region43: #{tpu_custom_call.1} parent=39 // pred_region
          %s545 = sand.u32 %s41, 1
          %s546 = scalar_lea.sflag [#allocation7], %s545
          %s547 = sand.u32 %s72, 1
          %s548 = scalar_lea.vmem [#allocation6], %s547
          %550 = vsyncadd %s546, 0
          %s551 = scalar_lea.hbm %s1, %s41
          %s553 = sshll.u32 %s551, 4
          %s554 = int_to_ptr.hbm [resolvable:$true] %s553
          %s555 = sshll.u32 %s548, 4
          %s556 = int_to_ptr.vmem [resolvable:$true] %s555
          %558 = dma.hbm_to_vmem [thread:$0]  %s554, 16, %s556, %s546
        $region44: #{tpu_custom_call.1} parent=39 // pred_fallthru
          _
        // Predicated region
        $region45: #{tpu_custom_call.1} parent=39 // pred_check
          %p559 = pneg %p108
        $region46: #{tpu_custom_call.1} parent=39 // pred_check_branch
          %561 = sbr.rel (%p559) target = $region48
        $region47: #{tpu_custom_call.1} parent=39 // pred_region
          %s562 = sand.u32 %s41, 1
          %s563 = scalar_lea.sflag [#allocation7], %s562
          %s564 = sand.u32 %s98, 1
          %s565 = scalar_lea.vmem [#allocation8], %s564
          %567 = vsyncadd %s563, 0
          %s568 = scalar_lea.hbm %s2, %s41
          %s570 = sshll.u32 %s568, 4
          %s571 = int_to_ptr.hbm [resolvable:$true] %s570
          %s572 = sshll.u32 %s565, 4
          %s573 = int_to_ptr.vmem [resolvable:$true] %s572
          %575 = dma.hbm_to_vmem [thread:$0]  %s571, 16, %s573, %s563
        $region48: #{tpu_custom_call.1} parent=39 // pred_fallthru
          _
        // Predicated region
        $region49: #{tpu_custom_call.1} parent=39 // pred_check
          %p576 = pneg %p134
        $region50: #{tpu_custom_call.1} parent=39 // pred_check_branch
          %578 = sbr.rel (%p576) target = $region52
        $region51: #{tpu_custom_call.1} parent=39 // pred_region
          %s579 = sand.u32 %s41, 1
          %s580 = scalar_lea.sflag [#allocation10], %s579
          %s581 = sand.u32 %s124, 1
          %s582 = smul.addr %s581, 192
          %s583 = scalar_lea.vmem [#allocation9], %s582
          %585 = vsyncadd %s580, 0
          %s586 = smul.addr %s41, 48
          %s587 = smul.addr %s586, 4
          %s588 = scalar_lea.hbm %s3, %s587
          %s589 = sshll.u32 %s588, 4
          %s590 = int_to_ptr.hbm [resolvable:$true] %s589
          %s591 = sshll.u32 %s583, 4
          %s592 = int_to_ptr.vmem [resolvable:$true] %s591
          %597 = dma.hbm_to_vmem [thread:$0]  %s590, 3072, %s592, %s580, 192, 192, 12
        $region52: #{tpu_custom_call.1} parent=39 // pred_fallthru
          _
        // Predicated region
        $region53: #{tpu_custom_call.1} parent=39 // pred_check
          %p598 = pneg %p160
        $region54: #{tpu_custom_call.1} parent=39 // pred_check_branch
          %600 = sbr.rel (%p598) target = $region56
        $region55: #{tpu_custom_call.1} parent=39 // pred_region
          %s601 = sand.u32 %s41, 1
          %s602 = scalar_lea.sflag [#allocation10], %s601
          %s603 = sand.u32 %s150, 1
          %s604 = smul.addr %s603, 64
          %s605 = scalar_lea.vmem [#allocation11], %s604
          %607 = vsyncadd %s602, 0
          %s608 = smul.addr %s41, 16
          %s609 = smul.addr %s608, 4
          %s610 = scalar_lea.hbm %s4, %s609
          %s611 = sshll.u32 %s610, 4
          %s612 = int_to_ptr.hbm [resolvable:$true] %s611
          %s613 = sshll.u32 %s605, 4
          %s614 = int_to_ptr.vmem [resolvable:$true] %s613
          %619 = dma.hbm_to_vmem [thread:$0]  %s612, 1024, %s614, %s602, 64, 64, 4
        $region56: #{tpu_custom_call.1} parent=39 // pred_fallthru
          _
        // Predicated region
        $region57: #{tpu_custom_call.1} parent=39 // pred_check
          %p620 = pneg %p186
        $region58: #{tpu_custom_call.1} parent=39 // pred_check_branch
          %622 = sbr.rel (%p620) target = $region60
        $region59: #{tpu_custom_call.1} parent=39 // pred_region
          %p623 = scmp.lt.s32.totalorder %s41, 3
          %s624 = scalar_select %p623, %s41, 3
          %s625 = scalar_lea.vmem %s5, %s624
        $region60: #{tpu_custom_call.1} parent=39 // pred_fallthru
          _
        // Predicated region
        $region61: #{tpu_custom_call.1} parent=39 // pred_check
          %p626 = pneg %p212
        $region62: #{tpu_custom_call.1} parent=39 // pred_check_branch
          %628 = sbr.rel (%p626) target = $region64
        $region63: #{tpu_custom_call.1} parent=39 // pred_region
          %s629 = sand.u32 %s41, 1
          %s630 = scalar_lea.sflag [#allocation13], %s629
          %s631 = sand.u32 %s202, 1
          %s632 = scalar_lea.vmem [#allocation12], %s631
          %634 = vsyncadd %s630, 0
          %s635 = scalar_lea.hbm %s6, %s41
          %s637 = sshll.u32 %s635, 4
          %s638 = int_to_ptr.hbm [resolvable:$true] %s637
          %s639 = sshll.u32 %s632, 4
          %s640 = int_to_ptr.vmem [resolvable:$true] %s639
          %642 = dma.hbm_to_vmem [thread:$0]  %s638, 16, %s640, %s630
        $region64: #{tpu_custom_call.1} parent=39 // pred_fallthru
          _
        // Predicated region
        $region65: #{tpu_custom_call.1} parent=39 // pred_check
          %p643 = pneg %p238
        $region66: #{tpu_custom_call.1} parent=39 // pred_check_branch
          %645 = sbr.rel (%p643) target = $region68
        $region67: #{tpu_custom_call.1} parent=39 // pred_region
          %s646 = sand.u32 %s41, 1
          %s647 = scalar_lea.sflag [#allocation13], %s646
          %s648 = sand.u32 %s228, 1
          %s649 = scalar_lea.vmem [#allocation14], %s648
          %651 = vsyncadd %s647, 0
          %s652 = scalar_lea.hbm %s7, %s41
          %s654 = sshll.u32 %s652, 4
          %s655 = int_to_ptr.hbm [resolvable:$true] %s654
          %s656 = sshll.u32 %s649, 4
          %s657 = int_to_ptr.vmem [resolvable:$true] %s656
          %659 = dma.hbm_to_vmem [thread:$0]  %s655, 16, %s657, %s647
        $region68: #{tpu_custom_call.1} parent=39 // pred_fallthru
          _
        // Predicated region
        $region69: #{tpu_custom_call.1} parent=39 // pred_check
          %p660 = pneg %p264
        $region70: #{tpu_custom_call.1} parent=39 // pred_check_branch
          %662 = sbr.rel (%p660) target = $region72
        $region71: #{tpu_custom_call.1} parent=39 // pred_region
          %s663 = sand.u32 %s41, 1
          %s664 = scalar_lea.sflag [#allocation16], %s663
          %s665 = sand.u32 %s254, 1
          %s666 = smul.addr %s665, 256
          %s667 = scalar_lea.vmem [#allocation15], %s666
          %669 = vsyncadd %s664, 0
          %s670 = smul.addr %s41, 64
          %s671 = smul.addr %s670, 4
          %s672 = scalar_lea.hbm %s8, %s671
          %s673 = sshll.u32 %s672, 4
          %s674 = int_to_ptr.hbm [resolvable:$true] %s673
          %s675 = sshll.u32 %s667, 4
          %s676 = int_to_ptr.vmem [resolvable:$true] %s675
          %681 = dma.hbm_to_vmem [thread:$0]  %s674, 4096, %s676, %s664, 256, 256, 16
        $region72: #{tpu_custom_call.1} parent=39 // pred_fallthru
          _
        // Predicated region
        $region73: #{tpu_custom_call.1} parent=39 // pred_check
          %p682 = pneg %p290
        $region74: #{tpu_custom_call.1} parent=39 // pred_check_branch
          %684 = sbr.rel (%p682) target = $region76
        $region75: #{tpu_custom_call.1} parent=39 // pred_region
          %s685 = sand.u32 %s41, 1
          %s686 = scalar_lea.sflag [#allocation16], %s685
          %s687 = sand.u32 %s280, 1
          %s688 = smul.addr %s687, 4
          %s689 = scalar_lea.vmem [#allocation17], %s688
          %691 = vsyncadd %s686, 0
          %s692 = smul.addr %s41, 4
          %s693 = scalar_lea.hbm %s9, %s692
          %s695 = sshll.u32 %s693, 4
          %s696 = int_to_ptr.hbm [resolvable:$true] %s695
          %s697 = sshll.u32 %s689, 4
          %s698 = int_to_ptr.vmem [resolvable:$true] %s697
          %700 = dma.hbm_to_vmem [thread:$0]  %s696, 64, %s698, %s686
        $region76: #{tpu_custom_call.1} parent=39 // pred_fallthru
          _
        // Predicated region
        $region77: #{tpu_custom_call.1} parent=39 // pred_check
          %p701 = pneg %p316
        $region78: #{tpu_custom_call.1} parent=39 // pred_check_branch
          %703 = sbr.rel (%p701) target = $region80
        $region79: #{tpu_custom_call.1} parent=39 // pred_region
          %s704 = sand.u32 %s41, 1
          %s705 = scalar_lea.sflag [#allocation19], %s704
          %s706 = sand.u32 %s306, 1
          %s707 = smul.addr %s706, 256
          %s708 = scalar_lea.vmem [#allocation18], %s707
          %710 = vsyncadd %s705, 0
          %s711 = smul.addr %s41, 64
          %s712 = smul.addr %s711, 4
          %s713 = scalar_lea.hbm %s10, %s712
          %s714 = sshll.u32 %s713, 4
          %s715 = int_to_ptr.hbm [resolvable:$true] %s714
          %s716 = sshll.u32 %s708, 4
          %s717 = int_to_ptr.vmem [resolvable:$true] %s716
          %722 = dma.hbm_to_vmem [thread:$0]  %s715, 4096, %s717, %s705, 64, 64, 4
        $region80: #{tpu_custom_call.1} parent=39 // pred_fallthru
          _
        // Predicated region
        $region81: #{tpu_custom_call.1} parent=39 // pred_check
          %p723 = pneg %p342
        $region82: #{tpu_custom_call.1} parent=39 // pred_check_branch
          %725 = sbr.rel (%p723) target = $region84
        $region83: #{tpu_custom_call.1} parent=39 // pred_region
          %p726 = scmp.lt.s32.totalorder %s41, 3
          %s727 = scalar_select %p726, %s41, 3
          %s728 = scalar_lea.vmem %s11, %s727
        $region84: #{tpu_custom_call.1} parent=39 // pred_fallthru
          _
      $region40: #{tpu_custom_call.1} parent=5 // pred_fallthru
        _
      %p729 = scmp.le.s32.totalorder 1, %s41
      %p730 = scmp.lt.s32.totalorder %s41, 5
      %p731 = pnand %p729, %p730
      %p732 = pneg %p731
      // Predicated region
      $region85: #{tpu_custom_call.1} parent=5 // pred_check
        _
      $region86: #{tpu_custom_call.1} parent=5 // pred_check_branch
        %734 = sbr.rel (%p731) target = $region88
      $region87: #{tpu_custom_call.1} parent=5 // pred_region
        %s735 = ssub.s32 %s41, 1
        // Predicated region
        $region89: #{tpu_custom_call.1} parent=87 // pred_check
          %p736 = pneg %p62
        $region90: #{tpu_custom_call.1} parent=87 // pred_check_branch
          %738 = sbr.rel (%p736) target = $region92
        $region91: #{tpu_custom_call.1} parent=87 // pred_region
          %740 = dma.done [#allocation4], 32
        $region92: #{tpu_custom_call.1} parent=87 // pred_fallthru
          _
        %s741 = sand.u32 %s46, 1
        %s742 = scalar_lea.sflag [#allocation7], %s741
        %s743 = sand.u32 %s75, 1
        %s744 = scalar_lea.vmem [#allocation6], %s743
        // Predicated region
        $region93: #{tpu_custom_call.1} parent=87 // pred_check
          %p745 = pneg %p88
        $region94: #{tpu_custom_call.1} parent=87 // pred_check_branch
          %747 = sbr.rel (%p745) target = $region96
        $region95: #{tpu_custom_call.1} parent=87 // pred_region
          %749 = dma.done %s742, 16
        $region96: #{tpu_custom_call.1} parent=87 // pred_fallthru
          _
        %s750 = sand.u32 %s46, 1
        %s751 = scalar_lea.sflag [#allocation7], %s750
        %s752 = sand.u32 %s101, 1
        %s753 = scalar_lea.vmem [#allocation8], %s752
        // Predicated region
        $region97: #{tpu_custom_call.1} parent=87 // pred_check
          %p754 = pneg %p114
        $region98: #{tpu_custom_call.1} parent=87 // pred_check_branch
          %756 = sbr.rel (%p754) target = $region100
        $region99: #{tpu_custom_call.1} parent=87 // pred_region
          %758 = dma.done %s751, 16
        $region100: #{tpu_custom_call.1} parent=87 // pred_fallthru
          _
        %s759 = sand.u32 %s46, 1
        %s760 = scalar_lea.sflag [#allocation10], %s759
        %s761 = sand.u32 %s127, 1
        %s762 = smul.addr %s761, 192
        %s763 = scalar_lea.vmem [#allocation9], %s762
        // Predicated region
        $region101: #{tpu_custom_call.1} parent=87 // pred_check
          %p764 = pneg %p140
        $region102: #{tpu_custom_call.1} parent=87 // pred_check_branch
          %766 = sbr.rel (%p764) target = $region104
        $region103: #{tpu_custom_call.1} parent=87 // pred_region
          %768 = dma.done %s760, 3072
        $region104: #{tpu_custom_call.1} parent=87 // pred_fallthru
          _
        %s769 = sand.u32 %s46, 1
        %s770 = scalar_lea.sflag [#allocation10], %s769
        %s771 = sand.u32 %s153, 1
        %s772 = smul.addr %s771, 64
        %s773 = scalar_lea.vmem [#allocation11], %s772
        // Predicated region
        $region105: #{tpu_custom_call.1} parent=87 // pred_check
          %p774 = pneg %p166
        $region106: #{tpu_custom_call.1} parent=87 // pred_check_branch
          %776 = sbr.rel (%p774) target = $region108
        $region107: #{tpu_custom_call.1} parent=87 // pred_region
          %778 = dma.done %s770, 1024
        $region108: #{tpu_custom_call.1} parent=87 // pred_fallthru
          _
        %s779 = sand.u32 %s46, 1
        %s780 = scalar_lea.sflag [#allocation13], %s779
        %s781 = sand.u32 %s205, 1
        %s782 = scalar_lea.vmem [#allocation12], %s781
        // Predicated region
        $region109: #{tpu_custom_call.1} parent=87 // pred_check
          %p783 = pneg %p218
        $region110: #{tpu_custom_call.1} parent=87 // pred_check_branch
          %785 = sbr.rel (%p783) target = $region112
        $region111: #{tpu_custom_call.1} parent=87 // pred_region
          %787 = dma.done %s780, 16
        $region112: #{tpu_custom_call.1} parent=87 // pred_fallthru
          _
        %s788 = sand.u32 %s46, 1
        %s789 = scalar_lea.sflag [#allocation13], %s788
        %s790 = sand.u32 %s231, 1
        %s791 = scalar_lea.vmem [#allocation14], %s790
        // Predicated region
        $region113: #{tpu_custom_call.1} parent=87 // pred_check
          %p792 = pneg %p244
        $region114: #{tpu_custom_call.1} parent=87 // pred_check_branch
          %794 = sbr.rel (%p792) target = $region116
        $region115: #{tpu_custom_call.1} parent=87 // pred_region
          %796 = dma.done %s789, 16
        $region116: #{tpu_custom_call.1} parent=87 // pred_fallthru
          _
        %s797 = sand.u32 %s46, 1
        %s798 = scalar_lea.sflag [#allocation16], %s797
        %s799 = sand.u32 %s257, 1
        %s800 = smul.addr %s799, 256
        %s801 = scalar_lea.vmem [#allocation15], %s800
        // Predicated region
        $region117: #{tpu_custom_call.1} parent=87 // pred_check
          %p802 = pneg %p270
        $region118: #{tpu_custom_call.1} parent=87 // pred_check_branch
          %804 = sbr.rel (%p802) target = $region120
        $region119: #{tpu_custom_call.1} parent=87 // pred_region
          %806 = dma.done %s798, 4096
        $region120: #{tpu_custom_call.1} parent=87 // pred_fallthru
          _
        %s807 = sand.u32 %s46, 1
        %s808 = scalar_lea.sflag [#allocation16], %s807
        %s809 = sand.u32 %s283, 1
        %s810 = smul.addr %s809, 4
        %s811 = scalar_lea.vmem [#allocation17], %s810
        // Predicated region
        $region121: #{tpu_custom_call.1} parent=87 // pred_check
          %p812 = pneg %p296
        $region122: #{tpu_custom_call.1} parent=87 // pred_check_branch
          %814 = sbr.rel (%p812) target = $region124
        $region123: #{tpu_custom_call.1} parent=87 // pred_region
          %816 = dma.done %s808, 64
        $region124: #{tpu_custom_call.1} parent=87 // pred_fallthru
          _
        %s817 = sand.u32 %s46, 1
        %s818 = scalar_lea.sflag [#allocation19], %s817
        %s819 = sand.u32 %s309, 1
        %s820 = smul.addr %s819, 256
        %s821 = scalar_lea.vmem [#allocation18], %s820
        // Predicated region
        $region125: #{tpu_custom_call.1} parent=87 // pred_check
          %p822 = pneg %p322
        $region126: #{tpu_custom_call.1} parent=87 // pred_check_branch
          %824 = sbr.rel (%p822) target = $region128
        $region127: #{tpu_custom_call.1} parent=87 // pred_region
          %826 = dma.done %s818, 4096
        $region128: #{tpu_custom_call.1} parent=87 // pred_fallthru
          _
        // Predicated region
        $region129: #{tpu_custom_call.1} parent=87 // pred_check
          %p827 = pneg %p411
        $region130: #{tpu_custom_call.1} parent=87 // pred_check_branch
          %829 = sbr.rel (%p827) target = $region132
        $region131: #{tpu_custom_call.1} parent=87 // pred_region
          %831 = dma.done [#allocation19], 1024
        $region132: #{tpu_custom_call.1} parent=87 // pred_fallthru
          _
        // Predicated region
        $region133: #{tpu_custom_call.1} parent=87 // pred_check
          %p832 = pneg %p453
        $region134: #{tpu_custom_call.1} parent=87 // pred_check_branch
          %834 = sbr.rel (%p832) target = $region136
        $region135: #{tpu_custom_call.1} parent=87 // pred_region
          %836 = dma.done [#allocation22], 2048
        $region136: #{tpu_custom_call.1} parent=87 // pred_fallthru
          _
        %p837 = pneg %p62
        %p838 = pneg %p59
        %s839 = sand.u32 %s46, 1
        %s840 = scalar_lea.sflag [#allocation7], %s839
        %s841 = sand.u32 %s75, 1
        %s842 = scalar_lea.vmem [#allocation6], %s841
        %p843 = pneg %p88
        %p844 = pneg %p85
        %s845 = sand.u32 %s46, 1
        %s846 = scalar_lea.sflag [#allocation7], %s845
        %s847 = sand.u32 %s101, 1
        %s848 = scalar_lea.vmem [#allocation8], %s847
        %p849 = pneg %p114
        %p850 = pneg %p111
        %s851 = sand.u32 %s46, 1
        %s852 = scalar_lea.sflag [#allocation10], %s851
        %s853 = sand.u32 %s127, 1
        %s854 = smul.addr %s853, 192
        %s855 = scalar_lea.vmem [#allocation9], %s854
        %p856 = pneg %p140
        %p857 = pneg %p137
        %s858 = sand.u32 %s46, 1
        %s859 = scalar_lea.sflag [#allocation10], %s858
        %s860 = sand.u32 %s153, 1
        %s861 = smul.addr %s860, 64
        %s862 = scalar_lea.vmem [#allocation11], %s861
        %p863 = pneg %p166
        %p864 = pneg %p163
        %p865 = scmp.lt.s32.totalorder %s46, 3
        %s866 = scalar_select %p865, %s46, 3
        %s867 = scalar_lea.vmem %s5, %s866
        %p868 = pneg %p192
        %p869 = pneg %p189
        %s870 = sand.u32 %s46, 1
        %s871 = scalar_lea.sflag [#allocation13], %s870
        %s872 = sand.u32 %s205, 1
        %s873 = scalar_lea.vmem [#allocation12], %s872
        %p874 = pneg %p218
        %p875 = pneg %p215
        %s876 = sand.u32 %s46, 1
        %s877 = scalar_lea.sflag [#allocation13], %s876
        %s878 = sand.u32 %s231, 1
        %s879 = scalar_lea.vmem [#allocation14], %s878
        %p880 = pneg %p244
        %p881 = pneg %p241
        %s882 = sand.u32 %s46, 1
        %s883 = scalar_lea.sflag [#allocation16], %s882
        %s884 = sand.u32 %s257, 1
        %s885 = smul.addr %s884, 256
        %s886 = scalar_lea.vmem [#allocation15], %s885
        %p887 = pneg %p270
        %p888 = pneg %p267
        %s889 = sand.u32 %s46, 1
        %s890 = scalar_lea.sflag [#allocation16], %s889
        %s891 = sand.u32 %s283, 1
        %s892 = smul.addr %s891, 4
        %s893 = scalar_lea.vmem [#allocation17], %s892
        %p894 = pneg %p296
        %p895 = pneg %p293
        %s896 = sand.u32 %s46, 1
        %s897 = scalar_lea.sflag [#allocation19], %s896
        %s898 = sand.u32 %s309, 1
        %s899 = smul.addr %s898, 256
        %s900 = scalar_lea.vmem [#allocation18], %s899
        %p901 = pneg %p322
        %p902 = pneg %p319
        %p903 = scmp.lt.s32.totalorder %s46, 3
        %s904 = scalar_select %p903, %s46, 3
        %s905 = scalar_lea.vmem %s11, %s904
        %p906 = pneg %p348
        %p907 = pneg %p345
        %p908 = pneg %p369
        %p909 = pneg %p366
        %p910 = pneg %p390
        %p911 = pneg %p387
        %p912 = pneg %p411
        %p913 = pneg %p408
        %p914 = pneg %p432
        %p915 = pneg %p429
        %p916 = pneg %p453
        %p917 = pneg %p450
        %p918 = pneg %p474
        %p919 = pneg %p471
        %p920 = scmp.lt.s32.totalorder %s46, 3
        %s921 = scalar_select %p920, %s46, 3
        %s922 = scalar_lea.vmem %s5, %s921
        %p923 = scmp.lt.s32.totalorder %s46, 3
        %s924 = scalar_select %p923, %s46, 3
        %s925 = scalar_lea.vmem %s11, %s924
        %v926 = vlaneseq
        %v927 = vand.u32 %v926, 127
        %vm928 = vcmp.lt.s32.totalorder %v927, 112
        %v929 = vsel %vm928, 1, 0
        %v930 = vcvt.s32.f32 %v929
        %p931 = scmp.eq.s32.totalorder %s46, 0
        // Predicated region
        $region137: #{tpu_custom_call.1} parent=87 // pred_check
          %p932 = pneg %p931
        $region138: #{tpu_custom_call.1} parent=87 // pred_check_branch
          %934 = sbr.rel (%p932) target = $region140
        $region139: #{tpu_custom_call.1} parent=87 // pred_region
          %v935 = vld [vmem:[#allocation3] sm:$0x3]
          %936 = vst [vmem:[#allocation2] sm:$0x3] %v935
        $region140: #{tpu_custom_call.1} parent=87 // pred_fallthru
          _
        %v937 = vld [vmem:[#allocation2] sm:$0x3]
        %v938 = vld [vmem:[%s744] sm:$0x1]
        %v939 = vld [vmem:[%s753] sm:$0x1]
        %vm940 = vcmask 1041408
        %v941 = vsel %vm940, %v937, 0.0
        %942 = vadd.xlane.f32.xlu0 %v941
        %v943 = vpop.xlane.xlu0 %942
        %v944 = vmul.f32 %v943, 0.008928572
        %v945 = vsub.f32 %v937, %v944
        %v946 = vmul.f32 %v945, %v930
        %v947 = vmul.f32 %v946, %v946
        %v948 = vsel %vm940, %v947, 0.0
        %949 = vadd.xlane.f32.xlu0 %v948
        %v950 = vpop.xlane.xlu0 %949
        %v951 = vmul.f32 %v950, 0.008928572
        %v952 = vadd.f32 %v951, 1e-05
        %v953 = vrsqrt.pop %v952
        %v954 = vmul.f32 %v953, %v952
        %v955 = vmul.f32 %v954, %v953
        %v956 = vmul.f32 0.5, %v955
        %v957 = vsub.f32 1.5, %v956
        %v958 = vmul.f32 %v953, %v957
        %vm959 = vweird.f32 %v952
        %vm960 = vweird.f32 %v953
        %vm961 = vmor %vm959, %vm960
        %v962 = vsel %vm961, %v953, %v958
        %v963 = vmul.f32 %v946, %v962
        %v965 = vperm.slane %v938, 0
        %v967 = vmul.f32 %v963, %v965
        %v969 = vperm.slane %v939, 0
        %v971 = vadd.f32 %v967, %v969
        %v972 = vpack.c.bf16 %v971, %v971
        %v973 = vld [vmem:[%s763] sm:$0xff]
        %v974 = vld [vmem:[%s763 + $0x8] sm:$0xf]
        %v975 = vld [vmem:[%s763 + $0xc] sm:$0xff]
        %v976 = vld [vmem:[%s763 + $0x14] sm:$0xf]
        %v977 = vld [vmem:[%s763 + $0x18] sm:$0xff]
        %v978 = vld [vmem:[%s763 + $0x20] sm:$0xf]
        %v979 = vld [vmem:[%s763 + $0x24] sm:$0xff]
        %v980 = vld [vmem:[%s763 + $0x2c] sm:$0xf]
        %v981 = vld [vmem:[%s763 + $0x30] sm:$0xff]
        %v982 = vld [vmem:[%s763 + $0x38] sm:$0xf]
        %v983 = vld [vmem:[%s763 + $0x3c] sm:$0xff]
        %v984 = vld [vmem:[%s763 + $0x44] sm:$0xf]
        %v985 = vld [vmem:[%s763 + $0x48] sm:$0xff]
        %v986 = vld [vmem:[%s763 + $0x50] sm:$0xf]
        %v987 = vld [vmem:[%s763 + $0x54] sm:$0xff]
        %v988 = vld [vmem:[%s763 + $0x5c] sm:$0xf]
        %v989 = vld [vmem:[%s763 + $0x60] sm:$0xff]
        %v990 = vld [vmem:[%s763 + $0x68] sm:$0xf]
        %v991 = vld [vmem:[%s763 + $0x6c] sm:$0xff]
        %v992 = vld [vmem:[%s763 + $0x74] sm:$0xf]
        %v993 = vld [vmem:[%s763 + $0x78] sm:$0xff]
        %v994 = vld [vmem:[%s763 + $0x80] sm:$0xf]
        %v995 = vld [vmem:[%s763 + $0x84] sm:$0xff]
        %v996 = vld [vmem:[%s763 + $0x8c] sm:$0xf]
        %v997 = vld [vmem:[%s763 + $0x90] sm:$0xff]
        %v998 = vld [vmem:[%s763 + $0x98] sm:$0xf]
        %v999 = vld [vmem:[%s763 + $0x9c] sm:$0xff]
        %v1000 = vld [vmem:[%s763 + $0xa4] sm:$0xf]
        %v1001 = vld [vmem:[%s763 + $0xa8] sm:$0xff]
        %v1002 = vld [vmem:[%s763 + $0xb0] sm:$0xf]
        %v1003 = vld [vmem:[%s763 + $0xb4] sm:$0xff]
        %v1004 = vld [vmem:[%s763 + $0xbc] sm:$0xf]
        %v1037 = vunpack.c.l.b16 %v973
        %v1038 = vunpack.c.h.b16 %v973
        %v1039 = vunpack.c.l.b16 %v974
        %v1040 = vunpack.c.l.b16 %v975
        %v1041 = vunpack.c.h.b16 %v975
        %v1042 = vunpack.c.l.b16 %v976
        %v1043 = vunpack.c.l.b16 %v977
        %v1044 = vunpack.c.h.b16 %v977
        %v1045 = vunpack.c.l.b16 %v978
        %v1046 = vunpack.c.l.b16 %v979
        %v1047 = vunpack.c.h.b16 %v979
        %v1048 = vunpack.c.l.b16 %v980
        %v1049 = vunpack.c.l.b16 %v981
        %v1050 = vunpack.c.h.b16 %v981
        %v1051 = vunpack.c.l.b16 %v982
        %v1052 = vunpack.c.l.b16 %v983
        %v1053 = vunpack.c.h.b16 %v983
        %v1054 = vunpack.c.l.b16 %v984
        %v1055 = vunpack.c.l.b16 %v985
        %v1056 = vunpack.c.h.b16 %v985
        %v1057 = vunpack.c.l.b16 %v986
        %v1058 = vunpack.c.l.b16 %v987
        %v1059 = vunpack.c.h.b16 %v987
        %v1060 = vunpack.c.l.b16 %v988
        %v1061 = vunpack.c.l.b16 %v989
        %v1062 = vunpack.c.h.b16 %v989
        %v1063 = vunpack.c.l.b16 %v990
        %v1064 = vunpack.c.l.b16 %v991
        %v1065 = vunpack.c.h.b16 %v991
        %v1066 = vunpack.c.l.b16 %v992
        %v1067 = vunpack.c.l.b16 %v993
        %v1068 = vunpack.c.h.b16 %v993
        %v1069 = vunpack.c.l.b16 %v994
        %v1070 = vunpack.c.l.b16 %v995
        %v1071 = vunpack.c.h.b16 %v995
        %v1072 = vunpack.c.l.b16 %v996
        %v1073 = vunpack.c.l.b16 %v997
        %v1074 = vunpack.c.h.b16 %v997
        %v1075 = vunpack.c.l.b16 %v998
        %v1076 = vunpack.c.l.b16 %v999
        %v1077 = vunpack.c.h.b16 %v999
        %v1078 = vunpack.c.l.b16 %v1000
        %v1079 = vunpack.c.l.b16 %v1001
        %v1080 = vunpack.c.h.b16 %v1001
        %v1081 = vunpack.c.l.b16 %v1002
        %v1082 = vunpack.c.l.b16 %v1003
        %v1083 = vunpack.c.h.b16 %v1003
        %v1084 = vunpack.c.l.b16 %v1004
        %v1085 = vpack.c.b16 %v1040, %v1037
        %v1086 = vpack.c.b16 %v1041, %v1038
        %v1087 = vpack.c.b16 %v1042, %v1039
        %v1088 = vpack.c.b16 %v1046, %v1043
        %v1089 = vpack.c.b16 %v1047, %v1044
        %v1090 = vpack.c.b16 %v1048, %v1045
        %v1091 = vpack.c.b16 %v1052, %v1049
        %v1092 = vpack.c.b16 %v1053, %v1050
        %v1093 = vpack.c.b16 %v1054, %v1051
        %v1094 = vpack.c.b16 %v1058, %v1055
        %v1095 = vpack.c.b16 %v1059, %v1056
        %v1096 = vpack.c.b16 %v1060, %v1057
        %v1097 = vpack.c.b16 %v1064, %v1061
        %v1098 = vpack.c.b16 %v1065, %v1062
        %v1099 = vpack.c.b16 %v1066, %v1063
        %v1100 = vpack.c.b16 %v1070, %v1067
        %v1101 = vpack.c.b16 %v1071, %v1068
        %v1102 = vpack.c.b16 %v1072, %v1069
        %v1103 = vpack.c.b16 %v1076, %v1073
        %v1104 = vpack.c.b16 %v1077, %v1074
        %v1105 = vpack.c.b16 %v1078, %v1075
        %v1106 = vpack.c.b16 %v1082, %v1079
        %v1107 = vpack.c.b16 %v1083, %v1080
        %v1108 = vpack.c.b16 %v1084, %v1081
        %1133 = vmatpush.bf16.msra.mxu0 %v1106
        %1134 = vmatpush.bf16.msra.mxu0 %v1103
        %1135 = vmatpush.bf16.msra.mxu0 %v1100
        %1136 = vmatpush.bf16.msra.mxu0 %v1097
        %1137 = vmatpush.bf16.msra.mxu0 %v1094
        %1138 = vmatpush.bf16.msra.mxu0 %v1091
        %1139 = vmatpush.bf16.msra.mxu0 %v1088
        %1140 = vmatpush.bf16.msra.mxu0 %v1085
        %1141 = vmatmul.bf16.gmra.mxu0 %v972
        %v1142 = vpop.f32.mrf.mxu0
        %v1143 = vadd.f32 0.0, %v1142
        %v1144 = vpop.f32.mrf.mxu0
        %1145 = vdwg.mxu0
        %1146 = vmatpush.bf16.msra.mxu0 %v1107
        %1147 = vmatpush.bf16.msra.mxu0 %v1104
        %1148 = vmatpush.bf16.msra.mxu0 %v1101
        %1149 = vmatpush.bf16.msra.mxu0 %v1098
        %1150 = vmatpush.bf16.msra.mxu0 %v1095
        %1151 = vmatpush.bf16.msra.mxu0 %v1092
        %1152 = vmatpush.bf16.msra.mxu0 %v1089
        %1153 = vmatpush.bf16.msra.mxu0 %v1086
        %1154 = vmatmul.bf16.gmra.mxu0 %v972
        %v1155 = vpop.f32.mrf.mxu0
        %v1156 = vadd.f32 0.0, %v1155
        %v1157 = vpop.f32.mrf.mxu0
        %1158 = vdwg.mxu0
        %1159 = vmatpush.bf16.msra.mxu0 %v1108
        %1160 = vmatpush.bf16.msra.mxu0 %v1105
        %1161 = vmatpush.bf16.msra.mxu0 %v1102
        %1162 = vmatpush.bf16.msra.mxu0 %v1099
        %1163 = vmatpush.bf16.msra.mxu0 %v1096
        %1164 = vmatpush.bf16.msra.mxu0 %v1093
        %1165 = vmatpush.bf16.msra.mxu0 %v1090
        %1166 = vmatpush.bf16.msra.mxu0 %v1087
        %1167 = vmatmul.bf16.gmra.mxu0 %v972
        %v1168 = vpop.f32.mrf.mxu0
        %v1169 = vadd.f32 0.0, %v1168
        %v1170 = vpop.f32.mrf.mxu0
        %1171 = vdwg.mxu0
        %v1172 = vperm.slane %v1143, 0
        %v1173 = vlaneseq
        %v1174 = vshrl.u32 %v1173, 7
        %1176 = vset.pattern.permute.xlu0 %v1174
        %1177 = vperm.xlu0 %1176, %v1172
        %v1178 = vpop.permute.xlu0 %1177
        %v1179 = vlaneseq
        %v1180 = vshrl.u32 %v1179, 7
        %v1181 = vadd.s32 %v1180, 8
        %1182 = vset.pattern.permute.xlu0 %v1181
        %1183 = vperm.xlu0 %1182, %v1172
        %v1184 = vpop.permute.xlu0 %1183
        %v1185 = vlaneseq
        %v1186 = vshrl.u32 %v1185, 7
        %v1187 = vadd.s32 %v1186, 16
        %1188 = vset.pattern.permute.xlu0 %v1187
        %1189 = vperm.xlu0 %1188, %v1172
        %v1190 = vpop.permute.xlu0 %1189
        %v1191 = vlaneseq
        %v1192 = vshrl.u32 %v1191, 7
        %v1193 = vadd.s32 %v1192, 24
        %1194 = vset.pattern.permute.xlu0 %v1193
        %1195 = vperm.xlu0 %1194, %v1172
        %v1196 = vpop.permute.xlu0 %1195
        %v1197 = vlaneseq
        %v1198 = vshrl.u32 %v1197, 7
        %v1199 = vadd.s32 %v1198, 32
        %1200 = vset.pattern.permute.xlu0 %v1199
        %1201 = vperm.xlu0 %1200, %v1172
        %v1202 = vpop.permute.xlu0 %1201
        %v1203 = vlaneseq
        %v1204 = vshrl.u32 %v1203, 7
        %v1205 = vadd.s32 %v1204, 40
        %1206 = vset.pattern.permute.xlu0 %v1205
        %1207 = vperm.xlu0 %1206, %v1172
        %v1208 = vpop.permute.xlu0 %1207
        %v1209 = vlaneseq
        %v1210 = vshrl.u32 %v1209, 7
        %v1211 = vadd.s32 %v1210, 48
        %1212 = vset.pattern.permute.xlu0 %v1211
        %1213 = vperm.xlu0 %1212, %v1172
        %v1214 = vpop.permute.xlu0 %1213
        %v1215 = vlaneseq
        %v1216 = vshrl.u32 %v1215, 7
        %v1217 = vadd.s32 %v1216, 56
        %1218 = vset.pattern.permute.xlu0 %v1217
        %1219 = vperm.xlu0 %1218, %v1172
        %v1220 = vpop.permute.xlu0 %1219
        %v1221 = vlaneseq
        %v1222 = vshrl.u32 %v1221, 7
        %v1223 = vadd.s32 %v1222, 64
        %1224 = vset.pattern.permute.xlu0 %v1223
        %1225 = vperm.xlu0 %1224, %v1172
        %v1226 = vpop.permute.xlu0 %1225
        %v1227 = vlaneseq
        %v1228 = vshrl.u32 %v1227, 7
        %v1229 = vadd.s32 %v1228, 72
        %1230 = vset.pattern.permute.xlu0 %v1229
        %1231 = vperm.xlu0 %1230, %v1172
        %v1232 = vpop.permute.xlu0 %1231
        %v1233 = vlaneseq
        %v1234 = vshrl.u32 %v1233, 7
        %v1235 = vadd.s32 %v1234, 80
        %1236 = vset.pattern.permute.xlu0 %v1235
        %1237 = vperm.xlu0 %1236, %v1172
        %v1238 = vpop.permute.xlu0 %1237
        %v1239 = vlaneseq
        %v1240 = vshrl.u32 %v1239, 7
        %v1241 = vadd.s32 %v1240, 88
        %1242 = vset.pattern.permute.xlu0 %v1241
        %1243 = vperm.xlu0 %1242, %v1172
        %v1244 = vpop.permute.xlu0 %1243
        %v1245 = vlaneseq
        %v1246 = vshrl.u32 %v1245, 7
        %v1247 = vadd.s32 %v1246, 96
        %1248 = vset.pattern.permute.xlu0 %v1247
        %1249 = vperm.xlu0 %1248, %v1172
        %v1250 = vpop.permute.xlu0 %1249
        %v1251 = vlaneseq
        %v1252 = vshrl.u32 %v1251, 7
        %v1253 = vadd.s32 %v1252, 104
        %1254 = vset.pattern.permute.xlu0 %v1253
        %1255 = vperm.xlu0 %1254, %v1172
        %v1256 = vpop.permute.xlu0 %1255
        %v1257 = vlaneseq
        %v1258 = vshrl.u32 %v1257, 7
        %v1259 = vadd.s32 %v1258, 112
        %1260 = vset.pattern.permute.xlu0 %v1259
        %1261 = vperm.xlu0 %1260, %v1172
        %v1262 = vpop.permute.xlu0 %1261
        %v1263 = vlaneseq
        %v1264 = vshrl.u32 %v1263, 7
        %v1265 = vadd.s32 %v1264, 120
        %1266 = vset.pattern.permute.xlu0 %v1265
        %1267 = vperm.xlu0 %1266, %v1172
        %v1268 = vpop.permute.xlu0 %1267
        %v1269 = vperm.slane %v1143, 1
        %v1270 = vlaneseq
        %v1271 = vshrl.u32 %v1270, 7
        %1273 = vset.pattern.permute.xlu0 %v1271
        %1274 = vperm.xlu0 %1273, %v1269
        %v1275 = vpop.permute.xlu0 %1274
        %v1276 = vlaneseq
        %v1277 = vshrl.u32 %v1276, 7
        %v1278 = vadd.s32 %v1277, 8
        %1279 = vset.pattern.permute.xlu0 %v1278
        %1280 = vperm.xlu0 %1279, %v1269
        %v1281 = vpop.permute.xlu0 %1280
        %v1282 = vlaneseq
        %v1283 = vshrl.u32 %v1282, 7
        %v1284 = vadd.s32 %v1283, 16
        %1285 = vset.pattern.permute.xlu0 %v1284
        %1286 = vperm.xlu0 %1285, %v1269
        %v1287 = vpop.permute.xlu0 %1286
        %v1288 = vlaneseq
        %v1289 = vshrl.u32 %v1288, 7
        %v1290 = vadd.s32 %v1289, 24
        %1291 = vset.pattern.permute.xlu0 %v1290
        %1292 = vperm.xlu0 %1291, %v1269
        %v1293 = vpop.permute.xlu0 %1292
        %v1294 = vlaneseq
        %v1295 = vshrl.u32 %v1294, 7
        %v1296 = vadd.s32 %v1295, 32
        %1297 = vset.pattern.permute.xlu0 %v1296
        %1298 = vperm.xlu0 %1297, %v1269
        %v1299 = vpop.permute.xlu0 %1298
        %v1300 = vlaneseq
        %v1301 = vshrl.u32 %v1300, 7
        %v1302 = vadd.s32 %v1301, 40
        %1303 = vset.pattern.permute.xlu0 %v1302
        %1304 = vperm.xlu0 %1303, %v1269
        %v1305 = vpop.permute.xlu0 %1304
        %v1306 = vlaneseq
        %v1307 = vshrl.u32 %v1306, 7
        %v1308 = vadd.s32 %v1307, 48
        %1309 = vset.pattern.permute.xlu0 %v1308
        %1310 = vperm.xlu0 %1309, %v1269
        %v1311 = vpop.permute.xlu0 %1310
        %v1312 = vlaneseq
        %v1313 = vshrl.u32 %v1312, 7
        %v1314 = vadd.s32 %v1313, 56
        %1315 = vset.pattern.permute.xlu0 %v1314
        %1316 = vperm.xlu0 %1315, %v1269
        %v1317 = vpop.permute.xlu0 %1316
        %v1318 = vlaneseq
        %v1319 = vshrl.u32 %v1318, 7
        %v1320 = vadd.s32 %v1319, 64
        %1321 = vset.pattern.permute.xlu0 %v1320
        %1322 = vperm.xlu0 %1321, %v1269
        %v1323 = vpop.permute.xlu0 %1322
        %v1324 = vlaneseq
        %v1325 = vshrl.u32 %v1324, 7
        %v1326 = vadd.s32 %v1325, 72
        %1327 = vset.pattern.permute.xlu0 %v1326
        %1328 = vperm.xlu0 %1327, %v1269
        %v1329 = vpop.permute.xlu0 %1328
        %v1330 = vlaneseq
        %v1331 = vshrl.u32 %v1330, 7
        %v1332 = vadd.s32 %v1331, 80
        %1333 = vset.pattern.permute.xlu0 %v1332
        %1334 = vperm.xlu0 %1333, %v1269
        %v1335 = vpop.permute.xlu0 %1334
        %v1336 = vlaneseq
        %v1337 = vshrl.u32 %v1336, 7
        %v1338 = vadd.s32 %v1337, 88
        %1339 = vset.pattern.permute.xlu0 %v1338
        %1340 = vperm.xlu0 %1339, %v1269
        %v1341 = vpop.permute.xlu0 %1340
        %v1342 = vlaneseq
        %v1343 = vshrl.u32 %v1342, 7
        %v1344 = vadd.s32 %v1343, 96
        %1345 = vset.pattern.permute.xlu0 %v1344
        %1346 = vperm.xlu0 %1345, %v1269
        %v1347 = vpop.permute.xlu0 %1346
        %v1348 = vlaneseq
        %v1349 = vshrl.u32 %v1348, 7
        %v1350 = vadd.s32 %v1349, 104
        %1351 = vset.pattern.permute.xlu0 %v1350
        %1352 = vperm.xlu0 %1351, %v1269
        %v1353 = vpop.permute.xlu0 %1352
        %v1354 = vlaneseq
        %v1355 = vshrl.u32 %v1354, 7
        %v1356 = vadd.s32 %v1355, 112
        %1357 = vset.pattern.permute.xlu0 %v1356
        %1358 = vperm.xlu0 %1357, %v1269
        %v1359 = vpop.permute.xlu0 %1358
        %v1360 = vlaneseq
        %v1361 = vshrl.u32 %v1360, 7
        %v1362 = vadd.s32 %v1361, 120
        %1363 = vset.pattern.permute.xlu0 %v1362
        %1364 = vperm.xlu0 %1363, %v1269
        %v1365 = vpop.permute.xlu0 %1364
        %v1367 = vrot.slane %v1156, 1
        %v1368 = vperm.slane %v1156, 0
        %v1369 = vperm.slane %v1367, 0
        %v1372 = vmul.f32 %v1178, %v1368
        %v1373 = vmul.f32 %v1184, %v1368
        %v1374 = vmul.f32 %v1190, %v1368
        %v1375 = vmul.f32 %v1196, %v1368
        %v1376 = vmul.f32 %v1202, %v1368
        %v1377 = vmul.f32 %v1208, %v1368
        %v1378 = vmul.f32 %v1214, %v1368
        %v1379 = vmul.f32 %v1220, %v1368
        %v1380 = vmul.f32 %v1226, %v1368
        %v1381 = vmul.f32 %v1232, %v1368
        %v1382 = vmul.f32 %v1238, %v1368
        %v1383 = vmul.f32 %v1244, %v1368
        %v1384 = vmul.f32 %v1250, %v1368
        %v1385 = vmul.f32 %v1256, %v1368
        %v1386 = vmul.f32 %v1262, %v1368
        %v1387 = vmul.f32 %v1268, %v1368
        %v1388 = vmul.f32 %v1275, %v1369
        %v1389 = vmul.f32 %v1281, %v1369
        %v1390 = vmul.f32 %v1287, %v1369
        %v1391 = vmul.f32 %v1293, %v1369
        %v1392 = vmul.f32 %v1299, %v1369
        %v1393 = vmul.f32 %v1305, %v1369
        %v1394 = vmul.f32 %v1311, %v1369
        %v1395 = vmul.f32 %v1317, %v1369
        %v1396 = vmul.f32 %v1323, %v1369
        %v1397 = vmul.f32 %v1329, %v1369
        %v1398 = vmul.f32 %v1335, %v1369
        %v1399 = vmul.f32 %v1341, %v1369
        %v1400 = vmul.f32 %v1347, %v1369
        %v1401 = vmul.f32 %v1353, %v1369
        %v1402 = vmul.f32 %v1359, %v1369
        %v1403 = vmul.f32 %v1365, %v1369
        %v1404 = vld [vmem:[#allocation21] sm:$0xff]
        %v1405 = vld [vmem:[#allocation21 + $0x8] sm:$0xff]
        %v1406 = vld [vmem:[#allocation21 + $0x10] sm:$0xff]
        %v1407 = vld [vmem:[#allocation21 + $0x18] sm:$0xff]
        %v1408 = vld [vmem:[#allocation21 + $0x20] sm:$0xff]
        %v1409 = vld [vmem:[#allocation21 + $0x28] sm:$0xff]
        %v1410 = vld [vmem:[#allocation21 + $0x30] sm:$0xff]
        %v1411 = vld [vmem:[#allocation21 + $0x38] sm:$0xff]
        %v1412 = vld [vmem:[#allocation21 + $0x40] sm:$0xff]
        %v1413 = vld [vmem:[#allocation21 + $0x48] sm:$0xff]
        %v1414 = vld [vmem:[#allocation21 + $0x50] sm:$0xff]
        %v1415 = vld [vmem:[#allocation21 + $0x58] sm:$0xff]
        %v1416 = vld [vmem:[#allocation21 + $0x60] sm:$0xff]
        %v1417 = vld [vmem:[#allocation21 + $0x68] sm:$0xff]
        %v1418 = vld [vmem:[#allocation21 + $0x70] sm:$0xff]
        %v1419 = vld [vmem:[#allocation21 + $0x78] sm:$0xff]
        %v1420 = vadd.f32 %v1372, %v1404
        %v1421 = vadd.f32 %v1373, %v1405
        %v1422 = vadd.f32 %v1374, %v1406
        %v1423 = vadd.f32 %v1375, %v1407
        %v1424 = vadd.f32 %v1376, %v1408
        %v1425 = vadd.f32 %v1377, %v1409
        %v1426 = vadd.f32 %v1378, %v1410
        %v1427 = vadd.f32 %v1379, %v1411
        %v1428 = vadd.f32 %v1380, %v1412
        %v1429 = vadd.f32 %v1381, %v1413
        %v1430 = vadd.f32 %v1382, %v1414
        %v1431 = vadd.f32 %v1383, %v1415
        %v1432 = vadd.f32 %v1384, %v1416
        %v1433 = vadd.f32 %v1385, %v1417
        %v1434 = vadd.f32 %v1386, %v1418
        %v1435 = vadd.f32 %v1387, %v1419
        %v1436 = vadd.f32 %v1388, %v1404
        %v1437 = vadd.f32 %v1389, %v1405
        %v1438 = vadd.f32 %v1390, %v1406
        %v1439 = vadd.f32 %v1391, %v1407
        %v1440 = vadd.f32 %v1392, %v1408
        %v1441 = vadd.f32 %v1393, %v1409
        %v1442 = vadd.f32 %v1394, %v1410
        %v1443 = vadd.f32 %v1395, %v1411
        %v1444 = vadd.f32 %v1396, %v1412
        %v1445 = vadd.f32 %v1397, %v1413
        %v1446 = vadd.f32 %v1398, %v1414
        %v1447 = vadd.f32 %v1399, %v1415
        %v1448 = vadd.f32 %v1400, %v1416
        %v1449 = vadd.f32 %v1401, %v1417
        %v1450 = vadd.f32 %v1402, %v1418
        %v1451 = vadd.f32 %v1403, %v1419
        %1452 = vmax.xlane.f32.xlu0 %v1420
        %v1453 = vpop.xlane.xlu0 %1452
        %1454 = vmax.xlane.f32.xlu0 %v1421
        %v1455 = vpop.xlane.xlu0 %1454
        %1456 = vmax.xlane.f32.xlu0 %v1422
        %v1457 = vpop.xlane.xlu0 %1456
        %1458 = vmax.xlane.f32.xlu0 %v1423
        %v1459 = vpop.xlane.xlu0 %1458
        %1460 = vmax.xlane.f32.xlu0 %v1424
        %v1461 = vpop.xlane.xlu0 %1460
        %1462 = vmax.xlane.f32.xlu0 %v1425
        %v1463 = vpop.xlane.xlu0 %1462
        %1464 = vmax.xlane.f32.xlu0 %v1426
        %v1465 = vpop.xlane.xlu0 %1464
        %1466 = vmax.xlane.f32.xlu0 %v1427
        %v1467 = vpop.xlane.xlu0 %1466
        %1468 = vmax.xlane.f32.xlu0 %v1428
        %v1469 = vpop.xlane.xlu0 %1468
        %1470 = vmax.xlane.f32.xlu0 %v1429
        %v1471 = vpop.xlane.xlu0 %1470
        %1472 = vmax.xlane.f32.xlu0 %v1430
        %v1473 = vpop.xlane.xlu0 %1472
        %1474 = vmax.xlane.f32.xlu0 %v1431
        %v1475 = vpop.xlane.xlu0 %1474
        %1476 = vmax.xlane.f32.xlu0 %v1432
        %v1477 = vpop.xlane.xlu0 %1476
        %1478 = vmax.xlane.f32.xlu0 %v1433
        %v1479 = vpop.xlane.xlu0 %1478
        %1480 = vmax.xlane.f32.xlu0 %v1434
        %v1481 = vpop.xlane.xlu0 %1480
        %1482 = vmax.xlane.f32.xlu0 %v1435
        %v1483 = vpop.xlane.xlu0 %1482
        %1484 = vmax.xlane.f32.xlu0 %v1436
        %v1485 = vpop.xlane.xlu0 %1484
        %1486 = vmax.xlane.f32.xlu0 %v1437
        %v1487 = vpop.xlane.xlu0 %1486
        %1488 = vmax.xlane.f32.xlu0 %v1438
        %v1489 = vpop.xlane.xlu0 %1488
        %1490 = vmax.xlane.f32.xlu0 %v1439
        %v1491 = vpop.xlane.xlu0 %1490
        %1492 = vmax.xlane.f32.xlu0 %v1440
        %v1493 = vpop.xlane.xlu0 %1492
        %1494 = vmax.xlane.f32.xlu0 %v1441
        %v1495 = vpop.xlane.xlu0 %1494
        %1496 = vmax.xlane.f32.xlu0 %v1442
        %v1497 = vpop.xlane.xlu0 %1496
        %1498 = vmax.xlane.f32.xlu0 %v1443
        %v1499 = vpop.xlane.xlu0 %1498
        %1500 = vmax.xlane.f32.xlu0 %v1444
        %v1501 = vpop.xlane.xlu0 %1500
        %1502 = vmax.xlane.f32.xlu0 %v1445
        %v1503 = vpop.xlane.xlu0 %1502
        %1504 = vmax.xlane.f32.xlu0 %v1446
        %v1505 = vpop.xlane.xlu0 %1504
        %1506 = vmax.xlane.f32.xlu0 %v1447
        %v1507 = vpop.xlane.xlu0 %1506
        %1508 = vmax.xlane.f32.xlu0 %v1448
        %v1509 = vpop.xlane.xlu0 %1508
        %1510 = vmax.xlane.f32.xlu0 %v1449
        %v1511 = vpop.xlane.xlu0 %1510
        %1512 = vmax.xlane.f32.xlu0 %v1450
        %v1513 = vpop.xlane.xlu0 %1512
        %1514 = vmax.xlane.f32.xlu0 %v1451
        %v1515 = vpop.xlane.xlu0 %1514
        %v1516 = vsub.f32 %v1420, %v1453
        %v1517 = vsub.f32 %v1421, %v1455
        %v1518 = vsub.f32 %v1422, %v1457
        %v1519 = vsub.f32 %v1423, %v1459
        %v1520 = vsub.f32 %v1424, %v1461
        %v1521 = vsub.f32 %v1425, %v1463
        %v1522 = vsub.f32 %v1426, %v1465
        %v1523 = vsub.f32 %v1427, %v1467
        %v1524 = vsub.f32 %v1428, %v1469
        %v1525 = vsub.f32 %v1429, %v1471
        %v1526 = vsub.f32 %v1430, %v1473
        %v1527 = vsub.f32 %v1431, %v1475
        %v1528 = vsub.f32 %v1432, %v1477
        %v1529 = vsub.f32 %v1433, %v1479
        %v1530 = vsub.f32 %v1434, %v1481
        %v1531 = vsub.f32 %v1435, %v1483
        %v1532 = vsub.f32 %v1436, %v1485
        %v1533 = vsub.f32 %v1437, %v1487
        %v1534 = vsub.f32 %v1438, %v1489
        %v1535 = vsub.f32 %v1439, %v1491
        %v1536 = vsub.f32 %v1440, %v1493
        %v1537 = vsub.f32 %v1441, %v1495
        %v1538 = vsub.f32 %v1442, %v1497
        %v1539 = vsub.f32 %v1443, %v1499
        %v1540 = vsub.f32 %v1444, %v1501
        %v1541 = vsub.f32 %v1445, %v1503
        %v1542 = vsub.f32 %v1446, %v1505
        %v1543 = vsub.f32 %v1447, %v1507
        %v1544 = vsub.f32 %v1448, %v1509
        %v1545 = vsub.f32 %v1449, %v1511
        %v1546 = vsub.f32 %v1450, %v1513
        %v1547 = vsub.f32 %v1451, %v1515
        %v1548 = vmul.f32 %v1516, 1.442695
        %v1549 = vpow.pop %v1548
        %v1550 = vmul.f32 %v1517, 1.442695
        %v1551 = vpow.pop %v1550
        %v1552 = vmul.f32 %v1518, 1.442695
        %v1553 = vpow.pop %v1552
        %v1554 = vmul.f32 %v1519, 1.442695
        %v1555 = vpow.pop %v1554
        %v1556 = vmul.f32 %v1520, 1.442695
        %v1557 = vpow.pop %v1556
        %v1558 = vmul.f32 %v1521, 1.442695
        %v1559 = vpow.pop %v1558
        %v1560 = vmul.f32 %v1522, 1.442695
        %v1561 = vpow.pop %v1560
        %v1562 = vmul.f32 %v1523, 1.442695
        %v1563 = vpow.pop %v1562
        %v1564 = vmul.f32 %v1524, 1.442695
        %v1565 = vpow.pop %v1564
        %v1566 = vmul.f32 %v1525, 1.442695
        %v1567 = vpow.pop %v1566
        %v1568 = vmul.f32 %v1526, 1.442695
        %v1569 = vpow.pop %v1568
        %v1570 = vmul.f32 %v1527, 1.442695
        %v1571 = vpow.pop %v1570
        %v1572 = vmul.f32 %v1528, 1.442695
        %v1573 = vpow.pop %v1572
        %v1574 = vmul.f32 %v1529, 1.442695
        %v1575 = vpow.pop %v1574
        %v1576 = vmul.f32 %v1530, 1.442695
        %v1577 = vpow.pop %v1576
        %v1578 = vmul.f32 %v1531, 1.442695
        %v1579 = vpow.pop %v1578
        %v1580 = vmul.f32 %v1532, 1.442695
        %v1581 = vpow.pop %v1580
        %v1582 = vmul.f32 %v1533, 1.442695
        %v1583 = vpow.pop %v1582
        %v1584 = vmul.f32 %v1534, 1.442695
        %v1585 = vpow.pop %v1584
        %v1586 = vmul.f32 %v1535, 1.442695
        %v1587 = vpow.pop %v1586
        %v1588 = vmul.f32 %v1536, 1.442695
        %v1589 = vpow.pop %v1588
        %v1590 = vmul.f32 %v1537, 1.442695
        %v1591 = vpow.pop %v1590
        %v1592 = vmul.f32 %v1538, 1.442695
        %v1593 = vpow.pop %v1592
        %v1594 = vmul.f32 %v1539, 1.442695
        %v1595 = vpow.pop %v1594
        %v1596 = vmul.f32 %v1540, 1.442695
        %v1597 = vpow.pop %v1596
        %v1598 = vmul.f32 %v1541, 1.442695
        %v1599 = vpow.pop %v1598
        %v1600 = vmul.f32 %v1542, 1.442695
        %v1601 = vpow.pop %v1600
        %v1602 = vmul.f32 %v1543, 1.442695
        %v1603 = vpow.pop %v1602
        %v1604 = vmul.f32 %v1544, 1.442695
        %v1605 = vpow.pop %v1604
        %v1606 = vmul.f32 %v1545, 1.442695
        %v1607 = vpow.pop %v1606
        %v1608 = vmul.f32 %v1546, 1.442695
        %v1609 = vpow.pop %v1608
        %v1610 = vmul.f32 %v1547, 1.442695
        %v1611 = vpow.pop %v1610
        %1612 = vadd.xlane.f32.xlu0 %v1549
        %v1613 = vpop.xlane.xlu0 %1612
        %1614 = vadd.xlane.f32.xlu0 %v1551
        %v1615 = vpop.xlane.xlu0 %1614
        %1616 = vadd.xlane.f32.xlu0 %v1553
        %v1617 = vpop.xlane.xlu0 %1616
        %1618 = vadd.xlane.f32.xlu0 %v1555
        %v1619 = vpop.xlane.xlu0 %1618
        %1620 = vadd.xlane.f32.xlu0 %v1557
        %v1621 = vpop.xlane.xlu0 %1620
        %1622 = vadd.xlane.f32.xlu0 %v1559
        %v1623 = vpop.xlane.xlu0 %1622
        %1624 = vadd.xlane.f32.xlu0 %v1561
        %v1625 = vpop.xlane.xlu0 %1624
        %1626 = vadd.xlane.f32.xlu0 %v1563
        %v1627 = vpop.xlane.xlu0 %1626
        %1628 = vadd.xlane.f32.xlu0 %v1565
        %v1629 = vpop.xlane.xlu0 %1628
        %1630 = vadd.xlane.f32.xlu0 %v1567
        %v1631 = vpop.xlane.xlu0 %1630
        %1632 = vadd.xlane.f32.xlu0 %v1569
        %v1633 = vpop.xlane.xlu0 %1632
        %1634 = vadd.xlane.f32.xlu0 %v1571
        %v1635 = vpop.xlane.xlu0 %1634
        %1636 = vadd.xlane.f32.xlu0 %v1573
        %v1637 = vpop.xlane.xlu0 %1636
        %1638 = vadd.xlane.f32.xlu0 %v1575
        %v1639 = vpop.xlane.xlu0 %1638
        %1640 = vadd.xlane.f32.xlu0 %v1577
        %v1641 = vpop.xlane.xlu0 %1640
        %1642 = vadd.xlane.f32.xlu0 %v1579
        %v1643 = vpop.xlane.xlu0 %1642
        %1644 = vadd.xlane.f32.xlu0 %v1581
        %v1645 = vpop.xlane.xlu0 %1644
        %1646 = vadd.xlane.f32.xlu0 %v1583
        %v1647 = vpop.xlane.xlu0 %1646
        %1648 = vadd.xlane.f32.xlu0 %v1585
        %v1649 = vpop.xlane.xlu0 %1648
        %1650 = vadd.xlane.f32.xlu0 %v1587
        %v1651 = vpop.xlane.xlu0 %1650
        %1652 = vadd.xlane.f32.xlu0 %v1589
        %v1653 = vpop.xlane.xlu0 %1652
        %1654 = vadd.xlane.f32.xlu0 %v1591
        %v1655 = vpop.xlane.xlu0 %1654
        %1656 = vadd.xlane.f32.xlu0 %v1593
        %v1657 = vpop.xlane.xlu0 %1656
        %1658 = vadd.xlane.f32.xlu0 %v1595
        %v1659 = vpop.xlane.xlu0 %1658
        %1660 = vadd.xlane.f32.xlu0 %v1597
        %v1661 = vpop.xlane.xlu0 %1660
        %1662 = vadd.xlane.f32.xlu0 %v1599
        %v1663 = vpop.xlane.xlu0 %1662
        %1664 = vadd.xlane.f32.xlu0 %v1601
        %v1665 = vpop.xlane.xlu0 %1664
        %1666 = vadd.xlane.f32.xlu0 %v1603
        %v1667 = vpop.xlane.xlu0 %1666
        %1668 = vadd.xlane.f32.xlu0 %v1605
        %v1669 = vpop.xlane.xlu0 %1668
        %1670 = vadd.xlane.f32.xlu0 %v1607
        %v1671 = vpop.xlane.xlu0 %1670
        %1672 = vadd.xlane.f32.xlu0 %v1609
        %v1673 = vpop.xlane.xlu0 %1672
        %1674 = vadd.xlane.f32.xlu0 %v1611
        %v1675 = vpop.xlane.xlu0 %1674
        %v1677 = vrot.slane %v1169, 1
        %v1678 = vperm.slane %v1169, 0
        %v1679 = vperm.slane %v1677, 0
        %v1682 = vmul.f32 %v1549, %v1678
        %v1683 = vmul.f32 %v1551, %v1678
        %v1684 = vmul.f32 %v1553, %v1678
        %v1685 = vmul.f32 %v1555, %v1678
        %v1686 = vmul.f32 %v1557, %v1678
        %v1687 = vmul.f32 %v1559, %v1678
        %v1688 = vmul.f32 %v1561, %v1678
        %v1689 = vmul.f32 %v1563, %v1678
        %v1690 = vmul.f32 %v1565, %v1678
        %v1691 = vmul.f32 %v1567, %v1678
        %v1692 = vmul.f32 %v1569, %v1678
        %v1693 = vmul.f32 %v1571, %v1678
        %v1694 = vmul.f32 %v1573, %v1678
        %v1695 = vmul.f32 %v1575, %v1678
        %v1696 = vmul.f32 %v1577, %v1678
        %v1697 = vmul.f32 %v1579, %v1678
        %v1698 = vmul.f32 %v1581, %v1679
        %v1699 = vmul.f32 %v1583, %v1679
        %v1700 = vmul.f32 %v1585, %v1679
        %v1701 = vmul.f32 %v1587, %v1679
        %v1702 = vmul.f32 %v1589, %v1679
        %v1703 = vmul.f32 %v1591, %v1679
        %v1704 = vmul.f32 %v1593, %v1679
        %v1705 = vmul.f32 %v1595, %v1679
        %v1706 = vmul.f32 %v1597, %v1679
        %v1707 = vmul.f32 %v1599, %v1679
        %v1708 = vmul.f32 %v1601, %v1679
        %v1709 = vmul.f32 %v1603, %v1679
        %v1710 = vmul.f32 %v1605, %v1679
        %v1711 = vmul.f32 %v1607, %v1679
        %v1712 = vmul.f32 %v1609, %v1679
        %v1713 = vmul.f32 %v1611, %v1679
        %1714 = vadd.xlane.f32.xlu0 %v1682
        %v1715 = vpop.xlane.xlu0 %1714
        %1716 = vadd.xlane.f32.xlu0 %v1683
        %v1717 = vpop.xlane.xlu0 %1716
        %1718 = vadd.xlane.f32.xlu0 %v1684
        %v1719 = vpop.xlane.xlu0 %1718
        %1720 = vadd.xlane.f32.xlu0 %v1685
        %v1721 = vpop.xlane.xlu0 %1720
        %1722 = vadd.xlane.f32.xlu0 %v1686
        %v1723 = vpop.xlane.xlu0 %1722
        %1724 = vadd.xlane.f32.xlu0 %v1687
        %v1725 = vpop.xlane.xlu0 %1724
        %1726 = vadd.xlane.f32.xlu0 %v1688
        %v1727 = vpop.xlane.xlu0 %1726
        %1728 = vadd.xlane.f32.xlu0 %v1689
        %v1729 = vpop.xlane.xlu0 %1728
        %1730 = vadd.xlane.f32.xlu0 %v1690
        %v1731 = vpop.xlane.xlu0 %1730
        %1732 = vadd.xlane.f32.xlu0 %v1691
        %v1733 = vpop.xlane.xlu0 %1732
        %1734 = vadd.xlane.f32.xlu0 %v1692
        %v1735 = vpop.xlane.xlu0 %1734
        %1736 = vadd.xlane.f32.xlu0 %v1693
        %v1737 = vpop.xlane.xlu0 %1736
        %1738 = vadd.xlane.f32.xlu0 %v1694
        %v1739 = vpop.xlane.xlu0 %1738
        %1740 = vadd.xlane.f32.xlu0 %v1695
        %v1741 = vpop.xlane.xlu0 %1740
        %1742 = vadd.xlane.f32.xlu0 %v1696
        %v1743 = vpop.xlane.xlu0 %1742
        %1744 = vadd.xlane.f32.xlu0 %v1697
        %v1745 = vpop.xlane.xlu0 %1744
        %1746 = vadd.xlane.f32.xlu0 %v1698
        %v1747 = vpop.xlane.xlu0 %1746
        %1748 = vadd.xlane.f32.xlu0 %v1699
        %v1749 = vpop.xlane.xlu0 %1748
        %1750 = vadd.xlane.f32.xlu0 %v1700
        %v1751 = vpop.xlane.xlu0 %1750
        %1752 = vadd.xlane.f32.xlu0 %v1701
        %v1753 = vpop.xlane.xlu0 %1752
        %1754 = vadd.xlane.f32.xlu0 %v1702
        %v1755 = vpop.xlane.xlu0 %1754
        %1756 = vadd.xlane.f32.xlu0 %v1703
        %v1757 = vpop.xlane.xlu0 %1756
        %1758 = vadd.xlane.f32.xlu0 %v1704
        %v1759 = vpop.xlane.xlu0 %1758
        %1760 = vadd.xlane.f32.xlu0 %v1705
        %v1761 = vpop.xlane.xlu0 %1760
        %1762 = vadd.xlane.f32.xlu0 %v1706
        %v1763 = vpop.xlane.xlu0 %1762
        %1764 = vadd.xlane.f32.xlu0 %v1707
        %v1765 = vpop.xlane.xlu0 %1764
        %1766 = vadd.xlane.f32.xlu0 %v1708
        %v1767 = vpop.xlane.xlu0 %1766
        %1768 = vadd.xlane.f32.xlu0 %v1709
        %v1769 = vpop.xlane.xlu0 %1768
        %1770 = vadd.xlane.f32.xlu0 %v1710
        %v1771 = vpop.xlane.xlu0 %1770
        %1772 = vadd.xlane.f32.xlu0 %v1711
        %v1773 = vpop.xlane.xlu0 %1772
        %1774 = vadd.xlane.f32.xlu0 %v1712
        %v1775 = vpop.xlane.xlu0 %1774
        %1776 = vadd.xlane.f32.xlu0 %v1713
        %v1777 = vpop.xlane.xlu0 %1776
        %v1778 = vrcp.pop %v1613
        %v1779 = vrcp.pop %v1615
        %v1780 = vrcp.pop %v1617
        %v1781 = vrcp.pop %v1619
        %v1782 = vrcp.pop %v1621
        %v1783 = vrcp.pop %v1623
        %v1784 = vrcp.pop %v1625
        %v1785 = vrcp.pop %v1627
        %v1786 = vrcp.pop %v1629
        %v1787 = vrcp.pop %v1631
        %v1788 = vrcp.pop %v1633
        %v1789 = vrcp.pop %v1635
        %v1790 = vrcp.pop %v1637
        %v1791 = vrcp.pop %v1639
        %v1792 = vrcp.pop %v1641
        %v1793 = vrcp.pop %v1643
        %v1794 = vrcp.pop %v1645
        %v1795 = vrcp.pop %v1647
        %v1796 = vrcp.pop %v1649
        %v1797 = vrcp.pop %v1651
        %v1798 = vrcp.pop %v1653
        %v1799 = vrcp.pop %v1655
        %v1800 = vrcp.pop %v1657
        %v1801 = vrcp.pop %v1659
        %v1802 = vrcp.pop %v1661
        %v1803 = vrcp.pop %v1663
        %v1804 = vrcp.pop %v1665
        %v1805 = vrcp.pop %v1667
        %v1806 = vrcp.pop %v1669
        %v1807 = vrcp.pop %v1671
        %v1808 = vrcp.pop %v1673
        %v1809 = vrcp.pop %v1675
        %v1810 = vmul.f32 %v1715, %v1778
        %v1811 = vmul.f32 %v1717, %v1779
        %v1812 = vmul.f32 %v1719, %v1780
        %v1813 = vmul.f32 %v1721, %v1781
        %v1814 = vmul.f32 %v1723, %v1782
        %v1815 = vmul.f32 %v1725, %v1783
        %v1816 = vmul.f32 %v1727, %v1784
        %v1817 = vmul.f32 %v1729, %v1785
        %v1818 = vmul.f32 %v1731, %v1786
        %v1819 = vmul.f32 %v1733, %v1787
        %v1820 = vmul.f32 %v1735, %v1788
        %v1821 = vmul.f32 %v1737, %v1789
        %v1822 = vmul.f32 %v1739, %v1790
        %v1823 = vmul.f32 %v1741, %v1791
        %v1824 = vmul.f32 %v1743, %v1792
        %v1825 = vmul.f32 %v1745, %v1793
        %v1826 = vmul.f32 %v1747, %v1794
        %v1827 = vmul.f32 %v1749, %v1795
        %v1828 = vmul.f32 %v1751, %v1796
        %v1829 = vmul.f32 %v1753, %v1797
        %v1830 = vmul.f32 %v1755, %v1798
        %v1831 = vmul.f32 %v1757, %v1799
        %v1832 = vmul.f32 %v1759, %v1800
        %v1833 = vmul.f32 %v1761, %v1801
        %v1834 = vmul.f32 %v1763, %v1802
        %v1835 = vmul.f32 %v1765, %v1803
        %v1836 = vmul.f32 %v1767, %v1804
        %v1837 = vmul.f32 %v1769, %v1805
        %v1838 = vmul.f32 %v1771, %v1806
        %v1839 = vmul.f32 %v1773, %v1807
        %v1840 = vmul.f32 %v1775, %v1808
        %v1841 = vmul.f32 %v1777, %v1809
        %v1842 = vpack.c.bf16 %v1811, %v1810
        %v1843 = vpack.c.bf16 %v1813, %v1812
        %v1844 = vpack.c.bf16 %v1815, %v1814
        %v1845 = vpack.c.bf16 %v1817, %v1816
        %v1846 = vpack.c.bf16 %v1819, %v1818
        %v1847 = vpack.c.bf16 %v1821, %v1820
        %v1848 = vpack.c.bf16 %v1823, %v1822
        %v1849 = vpack.c.bf16 %v1825, %v1824
        %v1850 = vpack.c.bf16 %v1827, %v1826
        %v1851 = vpack.c.bf16 %v1829, %v1828
        %v1852 = vpack.c.bf16 %v1831, %v1830
        %v1853 = vpack.c.bf16 %v1833, %v1832
        %v1854 = vpack.c.bf16 %v1835, %v1834
        %v1855 = vpack.c.bf16 %v1837, %v1836
        %v1856 = vpack.c.bf16 %v1839, %v1838
        %v1857 = vpack.c.bf16 %v1841, %v1840
        %v1858 = vld [vmem:[%s773] sm:$0xf]
        %v1859 = vld [vmem:[%s773 + $0x4] sm:$0xf]
        %v1860 = vld [vmem:[%s773 + $0x8] sm:$0xf]
        %v1861 = vld [vmem:[%s773 + $0xc] sm:$0xf]
        %v1862 = vld [vmem:[%s773 + $0x10] sm:$0xf]
        %v1863 = vld [vmem:[%s773 + $0x14] sm:$0xf]
        %v1864 = vld [vmem:[%s773 + $0x18] sm:$0xf]
        %v1865 = vld [vmem:[%s773 + $0x1c] sm:$0xf]
        %v1866 = vld [vmem:[%s773 + $0x20] sm:$0xf]
        %v1867 = vld [vmem:[%s773 + $0x24] sm:$0xf]
        %v1868 = vld [vmem:[%s773 + $0x28] sm:$0xf]
        %v1869 = vld [vmem:[%s773 + $0x2c] sm:$0xf]
        %v1870 = vld [vmem:[%s773 + $0x30] sm:$0xf]
        %v1871 = vld [vmem:[%s773 + $0x34] sm:$0xf]
        %v1872 = vld [vmem:[%s773 + $0x38] sm:$0xf]
        %v1873 = vld [vmem:[%s773 + $0x3c] sm:$0xf]
        %v1874 = vld [vmem:[%s922] sm:$0x1]
        %v1876 = vperm.slane %v1874, 0
        %v1894 = vunpack.c.l.b16 %v1842
        %v1895 = vunpack.c.h.b16 %v1842
        %v1896 = vunpack.c.l.b16 %v1843
        %v1897 = vunpack.c.h.b16 %v1843
        %v1898 = vunpack.c.l.b16 %v1844
        %v1899 = vunpack.c.h.b16 %v1844
        %v1900 = vunpack.c.l.b16 %v1845
        %v1901 = vunpack.c.h.b16 %v1845
        %v1902 = vunpack.c.l.b16 %v1846
        %v1903 = vunpack.c.h.b16 %v1846
        %v1904 = vunpack.c.l.b16 %v1847
        %v1905 = vunpack.c.h.b16 %v1847
        %v1906 = vunpack.c.l.b16 %v1848
        %v1907 = vunpack.c.h.b16 %v1848
        %v1908 = vunpack.c.l.b16 %v1849
        %v1909 = vunpack.c.h.b16 %v1849
        %v1910 = vunpack.c.l.b16 %v1850
        %v1911 = vunpack.c.h.b16 %v1850
        %v1912 = vunpack.c.l.b16 %v1851
        %v1913 = vunpack.c.h.b16 %v1851
        %v1914 = vunpack.c.l.b16 %v1852
        %v1915 = vunpack.c.h.b16 %v1852
        %v1916 = vunpack.c.l.b16 %v1853
        %v1917 = vunpack.c.h.b16 %v1853
        %v1918 = vunpack.c.l.b16 %v1854
        %v1919 = vunpack.c.h.b16 %v1854
        %v1920 = vunpack.c.l.b16 %v1855
        %v1921 = vunpack.c.h.b16 %v1855
        %v1922 = vunpack.c.l.b16 %v1856
        %v1923 = vunpack.c.h.b16 %v1856
        %v1924 = vunpack.c.l.b16 %v1857
        %v1925 = vunpack.c.h.b16 %v1857
        %v1926 = vperm.slane %v1894, %v927
        %v1927 = vadd.s32 %v927, 4294967288
        %v1928 = vperm.slane %v1895, %v1927
        %vm1929 = vcmask 130112
        %v1930 = vsel %vm1929, %v1928, %v1926
        %v1931 = vadd.s32 %v927, 4294967280
        %v1932 = vperm.slane %v1896, %v1931
        %vm1933 = vcmask 195712
        %v1934 = vsel %vm1933, %v1932, %v1930
        %v1935 = vadd.s32 %v927, 4294967272
        %v1936 = vperm.slane %v1897, %v1935
        %vm1937 = vcmask 261312
        %v1938 = vsel %vm1937, %v1936, %v1934
        %v1939 = vadd.s32 %v927, 4294967264
        %v1940 = vperm.slane %v1898, %v1939
        %vm1941 = vcmask 326912
        %v1942 = vsel %vm1941, %v1940, %v1938
        %v1943 = vadd.s32 %v927, 4294967256
        %v1944 = vperm.slane %v1899, %v1943
        %vm1945 = vcmask 392512
        %v1946 = vsel %vm1945, %v1944, %v1942
        %v1947 = vadd.s32 %v927, 4294967248
        %v1948 = vperm.slane %v1900, %v1947
        %vm1949 = vcmask 458112
        %v1950 = vsel %vm1949, %v1948, %v1946
        %v1951 = vadd.s32 %v927, 4294967240
        %v1952 = vperm.slane %v1901, %v1951
        %vm1953 = vcmask 523712
        %v1954 = vsel %vm1953, %v1952, %v1950
        %v1955 = vadd.s32 %v927, 4294967232
        %v1956 = vperm.slane %v1902, %v1955
        %vm1957 = vcmask 589312
        %v1958 = vsel %vm1957, %v1956, %v1954
        %v1959 = vadd.s32 %v927, 4294967224
        %v1960 = vperm.slane %v1903, %v1959
        %vm1961 = vcmask 654912
        %v1962 = vsel %vm1961, %v1960, %v1958
        %v1963 = vadd.s32 %v927, 4294967216
        %v1964 = vperm.slane %v1904, %v1963
        %vm1965 = vcmask 720512
        %v1966 = vsel %vm1965, %v1964, %v1962
        %v1967 = vadd.s32 %v927, 4294967208
        %v1968 = vperm.slane %v1905, %v1967
        %vm1969 = vcmask 786112
        %v1970 = vsel %vm1969, %v1968, %v1966
        %v1971 = vadd.s32 %v927, 4294967200
        %v1972 = vperm.slane %v1906, %v1971
        %vm1973 = vcmask 851712
        %v1974 = vsel %vm1973, %v1972, %v1970
        %v1975 = vadd.s32 %v927, 4294967192
        %v1976 = vperm.slane %v1907, %v1975
        %vm1977 = vcmask 917312
        %v1978 = vsel %vm1977, %v1976, %v1974
        %v1979 = vadd.s32 %v927, 4294967184
        %v1980 = vperm.slane %v1908, %v1979
        %vm1981 = vcmask 982912
        %v1982 = vsel %vm1981, %v1980, %v1978
        %v1983 = vadd.s32 %v927, 4294967176
        %v1984 = vperm.slane %v1909, %v1983
        %vm1985 = vcmask 1048512
        %v1986 = vsel %vm1985, %v1984, %v1982
        %v1987 = vperm.slane %v1910, %v927
        %v1988 = vperm.slane %v1911, %v1927
        %v1989 = vsel %vm1929, %v1988, %v1987
        %v1990 = vperm.slane %v1912, %v1931
        %v1991 = vsel %vm1933, %v1990, %v1989
        %v1992 = vperm.slane %v1913, %v1935
        %v1993 = vsel %vm1937, %v1992, %v1991
        %v1994 = vperm.slane %v1914, %v1939
        %v1995 = vsel %vm1941, %v1994, %v1993
        %v1996 = vperm.slane %v1915, %v1943
        %v1997 = vsel %vm1945, %v1996, %v1995
        %v1998 = vperm.slane %v1916, %v1947
        %v1999 = vsel %vm1949, %v1998, %v1997
        %v2000 = vperm.slane %v1917, %v1951
        %v2001 = vsel %vm1953, %v2000, %v1999
        %v2002 = vperm.slane %v1918, %v1955
        %v2003 = vsel %vm1957, %v2002, %v2001
        %v2004 = vperm.slane %v1919, %v1959
        %v2005 = vsel %vm1961, %v2004, %v2003
        %v2006 = vperm.slane %v1920, %v1963
        %v2007 = vsel %vm1965, %v2006, %v2005
        %v2008 = vperm.slane %v1921, %v1967
        %v2009 = vsel %vm1969, %v2008, %v2007
        %v2010 = vperm.slane %v1922, %v1971
        %v2011 = vsel %vm1973, %v2010, %v2009
        %v2012 = vperm.slane %v1923, %v1975
        %v2013 = vsel %vm1977, %v2012, %v2011
        %v2014 = vperm.slane %v1924, %v1979
        %v2015 = vsel %vm1981, %v2014, %v2013
        %v2016 = vperm.slane %v1925, %v1983
        %v2017 = vsel %vm1985, %v2016, %v2015
        %vm2018 = vcmask 1041409
        %v2019 = vsel %vm2018, %v2017, %v1986
        %v2020 = vpack.c.b16 %v2019, %v2019
        %v2038 = vunpack.c.l.b16 %v1858
        %v2039 = vunpack.c.l.b16 %v1859
        %v2040 = vunpack.c.l.b16 %v1860
        %v2041 = vunpack.c.l.b16 %v1861
        %v2042 = vunpack.c.l.b16 %v1862
        %v2043 = vunpack.c.l.b16 %v1863
        %v2044 = vunpack.c.l.b16 %v1864
        %v2045 = vunpack.c.l.b16 %v1865
        %v2046 = vunpack.c.l.b16 %v1866
        %v2047 = vunpack.c.l.b16 %v1867
        %v2048 = vunpack.c.l.b16 %v1868
        %v2049 = vunpack.c.l.b16 %v1869
        %v2050 = vunpack.c.l.b16 %v1870
        %v2051 = vunpack.c.l.b16 %v1871
        %v2052 = vunpack.c.l.b16 %v1872
        %v2053 = vunpack.c.l.b16 %v1873
        %v2054 = vpack.c.b16 %v2039, %v2038
        %v2055 = vpack.c.b16 %v2041, %v2040
        %v2056 = vpack.c.b16 %v2043, %v2042
        %v2057 = vpack.c.b16 %v2045, %v2044
        %v2058 = vpack.c.b16 %v2047, %v2046
        %v2059 = vpack.c.b16 %v2049, %v2048
        %v2060 = vpack.c.b16 %v2051, %v2050
        %v2061 = vpack.c.b16 %v2053, %v2052
        %2070 = vmatpush.bf16.msra.mxu0 %v2061
        %2071 = vmatpush.bf16.msra.mxu0 %v2060
        %2072 = vmatpush.bf16.msra.mxu0 %v2059
        %2073 = vmatpush.bf16.msra.mxu0 %v2058
        %2074 = vmatpush.bf16.msra.mxu0 %v2057
        %2075 = vmatpush.bf16.msra.mxu0 %v2056
        %2076 = vmatpush.bf16.msra.mxu0 %v2055
        %2077 = vmatpush.bf16.msra.mxu0 %v2054
        %2078 = vmatmul.bf16.gmra.mxu0 %v2020
        %v2079 = vpop.f32.mrf.mxu0
        %v2080 = vadd.f32 %v1876, %v2079
        %v2081 = vpop.f32.mrf.mxu0
        %2082 = vdwg.mxu0
        %v2083 = vadd.f32 %v937, %v2080
        %v2084 = vld [vmem:[%s782] sm:$0x1]
        %v2085 = vld [vmem:[%s791] sm:$0x1]
        %v2086 = vsel %vm940, %v2083, 0.0
        %2087 = vadd.xlane.f32.xlu0 %v2086
        %v2088 = vpop.xlane.xlu0 %2087
        %v2089 = vmul.f32 %v2088, 0.008928572
        %v2090 = vsub.f32 %v2083, %v2089
        %v2091 = vmul.f32 %v2090, %v930
        %v2092 = vmul.f32 %v2091, %v2091
        %v2093 = vsel %vm940, %v2092, 0.0
        %2094 = vadd.xlane.f32.xlu0 %v2093
        %v2095 = vpop.xlane.xlu0 %2094
        %v2096 = vmul.f32 %v2095, 0.008928572
        %v2097 = vadd.f32 %v2096, 1e-05
        %v2098 = vrsqrt.pop %v2097
        %v2099 = vmul.f32 %v2098, %v2097
        %v2100 = vmul.f32 %v2099, %v2098
        %v2101 = vmul.f32 0.5, %v2100
        %v2102 = vsub.f32 1.5, %v2101
        %v2103 = vmul.f32 %v2098, %v2102
        %vm2104 = vweird.f32 %v2097
        %vm2105 = vweird.f32 %v2098
        %vm2106 = vmor %vm2104, %vm2105
        %v2107 = vsel %vm2106, %v2098, %v2103
        %v2108 = vmul.f32 %v2091, %v2107
        %v2110 = vperm.slane %v2084, 0
        %v2112 = vmul.f32 %v2108, %v2110
        %v2114 = vperm.slane %v2085, 0
        %v2116 = vadd.f32 %v2112, %v2114
        %v2117 = vpack.c.bf16 %v2116, %v2116
        %v2118 = vld [vmem:[%s801] sm:$0xff]
        %v2119 = vld [vmem:[%s801 + $0x8] sm:$0xff]
        %v2120 = vld [vmem:[%s801 + $0x10] sm:$0xff]
        %v2121 = vld [vmem:[%s801 + $0x18] sm:$0xff]
        %v2122 = vld [vmem:[%s801 + $0x20] sm:$0xff]
        %v2123 = vld [vmem:[%s801 + $0x28] sm:$0xff]
        %v2124 = vld [vmem:[%s801 + $0x30] sm:$0xff]
        %v2125 = vld [vmem:[%s801 + $0x38] sm:$0xff]
        %v2126 = vld [vmem:[%s801 + $0x40] sm:$0xff]
        %v2127 = vld [vmem:[%s801 + $0x48] sm:$0xff]
        %v2128 = vld [vmem:[%s801 + $0x50] sm:$0xff]
        %v2129 = vld [vmem:[%s801 + $0x58] sm:$0xff]
        %v2130 = vld [vmem:[%s801 + $0x60] sm:$0xff]
        %v2131 = vld [vmem:[%s801 + $0x68] sm:$0xff]
        %v2132 = vld [vmem:[%s801 + $0x70] sm:$0xff]
        %v2133 = vld [vmem:[%s801 + $0x78] sm:$0xff]
        %v2134 = vld [vmem:[%s801 + $0x80] sm:$0xff]
        %v2135 = vld [vmem:[%s801 + $0x88] sm:$0xff]
        %v2136 = vld [vmem:[%s801 + $0x90] sm:$0xff]
        %v2137 = vld [vmem:[%s801 + $0x98] sm:$0xff]
        %v2138 = vld [vmem:[%s801 + $0xa0] sm:$0xff]
        %v2139 = vld [vmem:[%s801 + $0xa8] sm:$0xff]
        %v2140 = vld [vmem:[%s801 + $0xb0] sm:$0xff]
        %v2141 = vld [vmem:[%s801 + $0xb8] sm:$0xff]
        %v2142 = vld [vmem:[%s801 + $0xc0] sm:$0xff]
        %v2143 = vld [vmem:[%s801 + $0xc8] sm:$0xff]
        %v2144 = vld [vmem:[%s801 + $0xd0] sm:$0xff]
        %v2145 = vld [vmem:[%s801 + $0xd8] sm:$0xff]
        %v2146 = vld [vmem:[%s801 + $0xe0] sm:$0xff]
        %v2147 = vld [vmem:[%s801 + $0xe8] sm:$0xff]
        %v2148 = vld [vmem:[%s801 + $0xf0] sm:$0xff]
        %v2149 = vld [vmem:[%s801 + $0xf8] sm:$0xff]
        %v2150 = vld [vmem:[%s811] sm:$0xf]
        %v2152 = vperm.slane %v2150, 0
        %v2153 = vperm.slane %v2150, 1
        %v2154 = vperm.slane %v2150, 2
        %v2155 = vperm.slane %v2150, 3
        %v2192 = vunpack.c.l.b16 %v2118
        %v2193 = vunpack.c.h.b16 %v2118
        %v2194 = vunpack.c.l.b16 %v2119
        %v2195 = vunpack.c.h.b16 %v2119
        %v2196 = vunpack.c.l.b16 %v2120
        %v2197 = vunpack.c.h.b16 %v2120
        %v2198 = vunpack.c.l.b16 %v2121
        %v2199 = vunpack.c.h.b16 %v2121
        %v2200 = vunpack.c.l.b16 %v2122
        %v2201 = vunpack.c.h.b16 %v2122
        %v2202 = vunpack.c.l.b16 %v2123
        %v2203 = vunpack.c.h.b16 %v2123
        %v2204 = vunpack.c.l.b16 %v2124
        %v2205 = vunpack.c.h.b16 %v2124
        %v2206 = vunpack.c.l.b16 %v2125
        %v2207 = vunpack.c.h.b16 %v2125
        %v2208 = vunpack.c.l.b16 %v2126
        %v2209 = vunpack.c.h.b16 %v2126
        %v2210 = vunpack.c.l.b16 %v2127
        %v2211 = vunpack.c.h.b16 %v2127
        %v2212 = vunpack.c.l.b16 %v2128
        %v2213 = vunpack.c.h.b16 %v2128
        %v2214 = vunpack.c.l.b16 %v2129
        %v2215 = vunpack.c.h.b16 %v2129
        %v2216 = vunpack.c.l.b16 %v2130
        %v2217 = vunpack.c.h.b16 %v2130
        %v2218 = vunpack.c.l.b16 %v2131
        %v2219 = vunpack.c.h.b16 %v2131
        %v2220 = vunpack.c.l.b16 %v2132
        %v2221 = vunpack.c.h.b16 %v2132
        %v2222 = vunpack.c.l.b16 %v2133
        %v2223 = vunpack.c.h.b16 %v2133
        %v2224 = vunpack.c.l.b16 %v2134
        %v2225 = vunpack.c.h.b16 %v2134
        %v2226 = vunpack.c.l.b16 %v2135
        %v2227 = vunpack.c.h.b16 %v2135
        %v2228 = vunpack.c.l.b16 %v2136
        %v2229 = vunpack.c.h.b16 %v2136
        %v2230 = vunpack.c.l.b16 %v2137
        %v2231 = vunpack.c.h.b16 %v2137
        %v2232 = vunpack.c.l.b16 %v2138
        %v2233 = vunpack.c.h.b16 %v2138
        %v2234 = vunpack.c.l.b16 %v2139
        %v2235 = vunpack.c.h.b16 %v2139
        %v2236 = vunpack.c.l.b16 %v2140
        %v2237 = vunpack.c.h.b16 %v2140
        %v2238 = vunpack.c.l.b16 %v2141
        %v2239 = vunpack.c.h.b16 %v2141
        %v2240 = vunpack.c.l.b16 %v2142
        %v2241 = vunpack.c.h.b16 %v2142
        %v2242 = vunpack.c.l.b16 %v2143
        %v2243 = vunpack.c.h.b16 %v2143
        %v2244 = vunpack.c.l.b16 %v2144
        %v2245 = vunpack.c.h.b16 %v2144
        %v2246 = vunpack.c.l.b16 %v2145
        %v2247 = vunpack.c.h.b16 %v2145
        %v2248 = vunpack.c.l.b16 %v2146
        %v2249 = vunpack.c.h.b16 %v2146
        %v2250 = vunpack.c.l.b16 %v2147
        %v2251 = vunpack.c.h.b16 %v2147
        %v2252 = vunpack.c.l.b16 %v2148
        %v2253 = vunpack.c.h.b16 %v2148
        %v2254 = vunpack.c.l.b16 %v2149
        %v2255 = vunpack.c.h.b16 %v2149
        %v2256 = vpack.c.b16 %v2196, %v2192
        %v2257 = vpack.c.b16 %v2197, %v2193
        %v2258 = vpack.c.b16 %v2198, %v2194
        %v2259 = vpack.c.b16 %v2199, %v2195
        %v2260 = vpack.c.b16 %v2204, %v2200
        %v2261 = vpack.c.b16 %v2205, %v2201
        %v2262 = vpack.c.b16 %v2206, %v2202
        %v2263 = vpack.c.b16 %v2207, %v2203
        %v2264 = vpack.c.b16 %v2212, %v2208
        %v2265 = vpack.c.b16 %v2213, %v2209
        %v2266 = vpack.c.b16 %v2214, %v2210
        %v2267 = vpack.c.b16 %v2215, %v2211
        %v2268 = vpack.c.b16 %v2220, %v2216
        %v2269 = vpack.c.b16 %v2221, %v2217
        %v2270 = vpack.c.b16 %v2222, %v2218
        %v2271 = vpack.c.b16 %v2223, %v2219
        %v2272 = vpack.c.b16 %v2228, %v2224
        %v2273 = vpack.c.b16 %v2229, %v2225
        %v2274 = vpack.c.b16 %v2230, %v2226
        %v2275 = vpack.c.b16 %v2231, %v2227
        %v2276 = vpack.c.b16 %v2236, %v2232
        %v2277 = vpack.c.b16 %v2237, %v2233
        %v2278 = vpack.c.b16 %v2238, %v2234
        %v2279 = vpack.c.b16 %v2239, %v2235
        %v2280 = vpack.c.b16 %v2244, %v2240
        %v2281 = vpack.c.b16 %v2245, %v2241
        %v2282 = vpack.c.b16 %v2246, %v2242
        %v2283 = vpack.c.b16 %v2247, %v2243
        %v2284 = vpack.c.b16 %v2252, %v2248
        %v2285 = vpack.c.b16 %v2253, %v2249
        %v2286 = vpack.c.b16 %v2254, %v2250
        %v2287 = vpack.c.b16 %v2255, %v2251
        %2320 = vmatpush.bf16.msra.mxu0 %v2284
        %2321 = vmatpush.bf16.msra.mxu0 %v2280
        %2322 = vmatpush.bf16.msra.mxu0 %v2276
        %2323 = vmatpush.bf16.msra.mxu0 %v2272
        %2324 = vmatpush.bf16.msra.mxu0 %v2268
        %2325 = vmatpush.bf16.msra.mxu0 %v2264
        %2326 = vmatpush.bf16.msra.mxu0 %v2260
        %2327 = vmatpush.bf16.msra.mxu0 %v2256
        %2328 = vmatmul.bf16.gmra.mxu0 %v2117
        %v2329 = vpop.f32.mrf.mxu0
        %v2330 = vadd.f32 %v2152, %v2329
        %v2331 = vpop.f32.mrf.mxu0
        %2332 = vdwg.mxu0
        %2333 = vmatpush.bf16.msra.mxu0 %v2285
        %2334 = vmatpush.bf16.msra.mxu0 %v2281
        %2335 = vmatpush.bf16.msra.mxu0 %v2277
        %2336 = vmatpush.bf16.msra.mxu0 %v2273
        %2337 = vmatpush.bf16.msra.mxu0 %v2269
        %2338 = vmatpush.bf16.msra.mxu0 %v2265
        %2339 = vmatpush.bf16.msra.mxu0 %v2261
        %2340 = vmatpush.bf16.msra.mxu0 %v2257
        %2341 = vmatmul.bf16.gmra.mxu0 %v2117
        %v2342 = vpop.f32.mrf.mxu0
        %v2343 = vadd.f32 %v2153, %v2342
        %v2344 = vpop.f32.mrf.mxu0
        %2345 = vdwg.mxu0
        %2346 = vmatpush.bf16.msra.mxu0 %v2286
        %2347 = vmatpush.bf16.msra.mxu0 %v2282
        %2348 = vmatpush.bf16.msra.mxu0 %v2278
        %2349 = vmatpush.bf16.msra.mxu0 %v2274
        %2350 = vmatpush.bf16.msra.mxu0 %v2270
        %2351 = vmatpush.bf16.msra.mxu0 %v2266
        %2352 = vmatpush.bf16.msra.mxu0 %v2262
        %2353 = vmatpush.bf16.msra.mxu0 %v2258
        %2354 = vmatmul.bf16.gmra.mxu0 %v2117
        %v2355 = vpop.f32.mrf.mxu0
        %v2356 = vadd.f32 %v2154, %v2355
        %v2357 = vpop.f32.mrf.mxu0
        %2358 = vdwg.mxu0
        %2359 = vmatpush.bf16.msra.mxu0 %v2287
        %2360 = vmatpush.bf16.msra.mxu0 %v2283
        %2361 = vmatpush.bf16.msra.mxu0 %v2279
        %2362 = vmatpush.bf16.msra.mxu0 %v2275
        %2363 = vmatpush.bf16.msra.mxu0 %v2271
        %2364 = vmatpush.bf16.msra.mxu0 %v2267
        %2365 = vmatpush.bf16.msra.mxu0 %v2263
        %2366 = vmatpush.bf16.msra.mxu0 %v2259
        %2367 = vmatmul.bf16.gmra.mxu0 %v2117
        %v2368 = vpop.f32.mrf.mxu0
        %v2369 = vadd.f32 %v2155, %v2368
        %v2370 = vpop.f32.mrf.mxu0
        %2371 = vdwg.mxu0
        %v2372 = vmul.f32 %v2330, 0.5
        %v2373 = vmul.f32 %v2343, 0.5
        %v2374 = vmul.f32 %v2356, 0.5
        %v2375 = vmul.f32 %v2369, 0.5
        %v2376 = vmul.f32 %v2330, 0.70710677
        %v2377 = vmul.f32 %v2343, 0.70710677
        %v2378 = vmul.f32 %v2356, 0.70710677
        %v2379 = vmul.f32 %v2369, 0.70710677
        %v2380 = vand.u32 2147483647, %v2376
        %v2381 = vand.u32 2147483647, %v2377
        %v2382 = vand.u32 2147483647, %v2378
        %v2383 = vand.u32 2147483647, %v2379
        %v2384 = vmul.f32 %v2380, 0.3275911
        %v2385 = vmul.f32 %v2381, 0.3275911
        %v2386 = vmul.f32 %v2382, 0.3275911
        %v2387 = vmul.f32 %v2383, 0.3275911
        %v2388 = vadd.f32 %v2384, 1.0
        %v2389 = vadd.f32 %v2385, 1.0
        %v2390 = vadd.f32 %v2386, 1.0
        %v2391 = vadd.f32 %v2387, 1.0
        %v2392 = vrcp.pop %v2388
        %v2393 = vmul.f32 %v2388, %v2392
        %v2394 = vsub.f32 1.0, %v2393
        %v2395 = vmul.f32 %v2392, %v2394
        %v2396 = vadd.f32 %v2392, %v2395
        %vm2397 = vweird.f32 %v2388
        %vm2398 = vweird.f32 %v2392
        %vm2399 = vmor %vm2397, %vm2398
        %v2400 = vsel %vm2399, %v2392, %v2396
        %v2401 = vand.u32 2147483647, %v2388
        %vm2402 = vcmp.eq.f32.partialorder %v2401, 8.507059e+37
        %v2403 = vand.u32 %v2388, 2147483648
        %v2404 = vor.u32 1.1754944e-38, %v2403
        %v2405 = vsel %vm2402, %v2404, %v2400
        %v2406 = vmul.f32 1.0, %v2405
        %v2407 = vrcp.pop %v2389
        %v2408 = vmul.f32 %v2389, %v2407
        %v2409 = vsub.f32 1.0, %v2408
        %v2410 = vmul.f32 %v2407, %v2409
        %v2411 = vadd.f32 %v2407, %v2410
        %vm2412 = vweird.f32 %v2389
        %vm2413 = vweird.f32 %v2407
        %vm2414 = vmor %vm2412, %vm2413
        %v2415 = vsel %vm2414, %v2407, %v2411
        %v2416 = vand.u32 2147483647, %v2389
        %vm2417 = vcmp.eq.f32.partialorder %v2416, 8.507059e+37
        %v2418 = vand.u32 %v2389, 2147483648
        %v2419 = vor.u32 1.1754944e-38, %v2418
        %v2420 = vsel %vm2417, %v2419, %v2415
        %v2421 = vmul.f32 1.0, %v2420
        %v2422 = vrcp.pop %v2390
        %v2423 = vmul.f32 %v2390, %v2422
        %v2424 = vsub.f32 1.0, %v2423
        %v2425 = vmul.f32 %v2422, %v2424
        %v2426 = vadd.f32 %v2422, %v2425
        %vm2427 = vweird.f32 %v2390
        %vm2428 = vweird.f32 %v2422
        %vm2429 = vmor %vm2427, %vm2428
        %v2430 = vsel %vm2429, %v2422, %v2426
        %v2431 = vand.u32 2147483647, %v2390
        %vm2432 = vcmp.eq.f32.partialorder %v2431, 8.507059e+37
        %v2433 = vand.u32 %v2390, 2147483648
        %v2434 = vor.u32 1.1754944e-38, %v2433
        %v2435 = vsel %vm2432, %v2434, %v2430
        %v2436 = vmul.f32 1.0, %v2435
        %v2437 = vrcp.pop %v2391
        %v2438 = vmul.f32 %v2391, %v2437
        %v2439 = vsub.f32 1.0, %v2438
        %v2440 = vmul.f32 %v2437, %v2439
        %v2441 = vadd.f32 %v2437, %v2440
        %vm2442 = vweird.f32 %v2391
        %vm2443 = vweird.f32 %v2437
        %vm2444 = vmor %vm2442, %vm2443
        %v2445 = vsel %vm2444, %v2437, %v2441
        %v2446 = vand.u32 2147483647, %v2391
        %vm2447 = vcmp.eq.f32.partialorder %v2446, 8.507059e+37
        %v2448 = vand.u32 %v2391, 2147483648
        %v2449 = vor.u32 1.1754944e-38, %v2448
        %v2450 = vsel %vm2447, %v2449, %v2445
        %v2451 = vmul.f32 1.0, %v2450
        %v2452 = vmul.f32 %v2406, 1.0614054
        %v2453 = vmul.f32 %v2421, 1.0614054
        %v2454 = vmul.f32 %v2436, 1.0614054
        %v2455 = vmul.f32 %v2451, 1.0614054
        %v2456 = vadd.f32 %v2452, -1.4531521
        %v2457 = vadd.f32 %v2453, -1.4531521
        %v2458 = vadd.f32 %v2454, -1.4531521
        %v2459 = vadd.f32 %v2455, -1.4531521
        %v2460 = vmul.f32 %v2456, %v2406
        %v2461 = vmul.f32 %v2457, %v2421
        %v2462 = vmul.f32 %v2458, %v2436
        %v2463 = vmul.f32 %v2459, %v2451
        %v2464 = vadd.f32 %v2460, 1.4214138
        %v2465 = vadd.f32 %v2461, 1.4214138
        %v2466 = vadd.f32 %v2462, 1.4214138
        %v2467 = vadd.f32 %v2463, 1.4214138
        %v2468 = vmul.f32 %v2464, %v2406
        %v2469 = vmul.f32 %v2465, %v2421
        %v2470 = vmul.f32 %v2466, %v2436
        %v2471 = vmul.f32 %v2467, %v2451
        %v2472 = vadd.f32 %v2468, -0.28449672
        %v2473 = vadd.f32 %v2469, -0.28449672
        %v2474 = vadd.f32 %v2470, -0.28449672
        %v2475 = vadd.f32 %v2471, -0.28449672
        %v2476 = vmul.f32 %v2472, %v2406
        %v2477 = vmul.f32 %v2473, %v2421
        %v2478 = vmul.f32 %v2474, %v2436
        %v2479 = vmul.f32 %v2475, %v2451
        %v2480 = vadd.f32 %v2476, 0.2548296
        %v2481 = vadd.f32 %v2477, 0.2548296
        %v2482 = vadd.f32 %v2478, 0.2548296
        %v2483 = vadd.f32 %v2479, 0.2548296
        %v2484 = vmul.f32 %v2480, %v2406
        %v2485 = vmul.f32 %v2481, %v2421
        %v2486 = vmul.f32 %v2482, %v2436
        %v2487 = vmul.f32 %v2483, %v2451
        %v2488 = vsub.f32 0.0, %v2380
        %v2489 = vsub.f32 0.0, %v2381
        %v2490 = vsub.f32 0.0, %v2382
        %v2491 = vsub.f32 0.0, %v2383
        %v2492 = vmul.f32 %v2488, %v2380
        %v2493 = vmul.f32 %v2489, %v2381
        %v2494 = vmul.f32 %v2490, %v2382
        %v2495 = vmul.f32 %v2491, %v2383
        %v2496 = vmul.f32 %v2492, 1.442695
        %v2497 = vpow.pop %v2496
        %v2498 = vmul.f32 %v2493, 1.442695
        %v2499 = vpow.pop %v2498
        %v2500 = vmul.f32 %v2494, 1.442695
        %v2501 = vpow.pop %v2500
        %v2502 = vmul.f32 %v2495, 1.442695
        %v2503 = vpow.pop %v2502
        %v2504 = vmul.f32 %v2484, %v2497
        %v2505 = vmul.f32 %v2485, %v2499
        %v2506 = vmul.f32 %v2486, %v2501
        %v2507 = vmul.f32 %v2487, %v2503
        %v2508 = vsub.f32 1.0, %v2504
        %v2509 = vsub.f32 1.0, %v2505
        %v2510 = vsub.f32 1.0, %v2506
        %v2511 = vsub.f32 1.0, %v2507
        %vm2512 = vcmp.ge.f32.partialorder %v2376, 0.0
        %vm2513 = vcmp.ge.f32.partialorder %v2377, 0.0
        %vm2514 = vcmp.ge.f32.partialorder %v2378, 0.0
        %vm2515 = vcmp.ge.f32.partialorder %v2379, 0.0
        %v2516 = vsub.f32 0.0, %v2508
        %v2517 = vsub.f32 0.0, %v2509
        %v2518 = vsub.f32 0.0, %v2510
        %v2519 = vsub.f32 0.0, %v2511
        %v2520 = vsel %vm2512, %v2508, %v2516
        %v2521 = vsel %vm2513, %v2509, %v2517
        %v2522 = vsel %vm2514, %v2510, %v2518
        %v2523 = vsel %vm2515, %v2511, %v2519
        %v2524 = vadd.f32 %v2520, 1.0
        %v2525 = vadd.f32 %v2521, 1.0
        %v2526 = vadd.f32 %v2522, 1.0
        %v2527 = vadd.f32 %v2523, 1.0
        %v2528 = vmul.f32 %v2372, %v2524
        %v2529 = vmul.f32 %v2373, %v2525
        %v2530 = vmul.f32 %v2374, %v2526
        %v2531 = vmul.f32 %v2375, %v2527
        %v2532 = vpack.c.bf16 %v2528, %v2528
        %v2533 = vpack.c.bf16 %v2529, %v2529
        %v2534 = vpack.c.bf16 %v2530, %v2530
        %v2535 = vpack.c.bf16 %v2531, %v2531
        %v2536 = vld [vmem:[%s821] sm:$0xf]
        %v2537 = vld [vmem:[%s821 + $0x4] sm:$0xf]
        %v2538 = vld [vmem:[%s821 + $0x8] sm:$0xf]
        %v2539 = vld [vmem:[%s821 + $0xc] sm:$0xf]
        %v2540 = vld [vmem:[%s821 + $0x10] sm:$0xf]
        %v2541 = vld [vmem:[%s821 + $0x14] sm:$0xf]
        %v2542 = vld [vmem:[%s821 + $0x18] sm:$0xf]
        %v2543 = vld [vmem:[%s821 + $0x1c] sm:$0xf]
        %v2544 = vld [vmem:[%s821 + $0x20] sm:$0xf]
        %v2545 = vld [vmem:[%s821 + $0x24] sm:$0xf]
        %v2546 = vld [vmem:[%s821 + $0x28] sm:$0xf]
        %v2547 = vld [vmem:[%s821 + $0x2c] sm:$0xf]
        %v2548 = vld [vmem:[%s821 + $0x30] sm:$0xf]
        %v2549 = vld [vmem:[%s821 + $0x34] sm:$0xf]
        %v2550 = vld [vmem:[%s821 + $0x38] sm:$0xf]
        %v2551 = vld [vmem:[%s821 + $0x3c] sm:$0xf]
        %v2552 = vld [vmem:[%s821 + $0x40] sm:$0xf]
        %v2553 = vld [vmem:[%s821 + $0x44] sm:$0xf]
        %v2554 = vld [vmem:[%s821 + $0x48] sm:$0xf]
        %v2555 = vld [vmem:[%s821 + $0x4c] sm:$0xf]
        %v2556 = vld [vmem:[%s821 + $0x50] sm:$0xf]
        %v2557 = vld [vmem:[%s821 + $0x54] sm:$0xf]
        %v2558 = vld [vmem:[%s821 + $0x58] sm:$0xf]
        %v2559 = vld [vmem:[%s821 + $0x5c] sm:$0xf]
        %v2560 = vld [vmem:[%s821 + $0x60] sm:$0xf]
        %v2561 = vld [vmem:[%s821 + $0x64] sm:$0xf]
        %v2562 = vld [vmem:[%s821 + $0x68] sm:$0xf]
        %v2563 = vld [vmem:[%s821 + $0x6c] sm:$0xf]
        %v2564 = vld [vmem:[%s821 + $0x70] sm:$0xf]
        %v2565 = vld [vmem:[%s821 + $0x74] sm:$0xf]
        %v2566 = vld [vmem:[%s821 + $0x78] sm:$0xf]
        %v2567 = vld [vmem:[%s821 + $0x7c] sm:$0xf]
        %v2568 = vld [vmem:[%s821 + $0x80] sm:$0xf]
        %v2569 = vld [vmem:[%s821 + $0x84] sm:$0xf]
        %v2570 = vld [vmem:[%s821 + $0x88] sm:$0xf]
        %v2571 = vld [vmem:[%s821 + $0x8c] sm:$0xf]
        %v2572 = vld [vmem:[%s821 + $0x90] sm:$0xf]
        %v2573 = vld [vmem:[%s821 + $0x94] sm:$0xf]
        %v2574 = vld [vmem:[%s821 + $0x98] sm:$0xf]
        %v2575 = vld [vmem:[%s821 + $0x9c] sm:$0xf]
        %v2576 = vld [vmem:[%s821 + $0xa0] sm:$0xf]
        %v2577 = vld [vmem:[%s821 + $0xa4] sm:$0xf]
        %v2578 = vld [vmem:[%s821 + $0xa8] sm:$0xf]
        %v2579 = vld [vmem:[%s821 + $0xac] sm:$0xf]
        %v2580 = vld [vmem:[%s821 + $0xb0] sm:$0xf]
        %v2581 = vld [vmem:[%s821 + $0xb4] sm:$0xf]
        %v2582 = vld [vmem:[%s821 + $0xb8] sm:$0xf]
        %v2583 = vld [vmem:[%s821 + $0xbc] sm:$0xf]
        %v2584 = vld [vmem:[%s821 + $0xc0] sm:$0xf]
        %v2585 = vld [vmem:[%s821 + $0xc4] sm:$0xf]
        %v2586 = vld [vmem:[%s821 + $0xc8] sm:$0xf]
        %v2587 = vld [vmem:[%s821 + $0xcc] sm:$0xf]
        %v2588 = vld [vmem:[%s821 + $0xd0] sm:$0xf]
        %v2589 = vld [vmem:[%s821 + $0xd4] sm:$0xf]
        %v2590 = vld [vmem:[%s821 + $0xd8] sm:$0xf]
        %v2591 = vld [vmem:[%s821 + $0xdc] sm:$0xf]
        %v2592 = vld [vmem:[%s821 + $0xe0] sm:$0xf]
        %v2593 = vld [vmem:[%s821 + $0xe4] sm:$0xf]
        %v2594 = vld [vmem:[%s821 + $0xe8] sm:$0xf]
        %v2595 = vld [vmem:[%s821 + $0xec] sm:$0xf]
        %v2596 = vld [vmem:[%s821 + $0xf0] sm:$0xf]
        %v2597 = vld [vmem:[%s821 + $0xf4] sm:$0xf]
        %v2598 = vld [vmem:[%s821 + $0xf8] sm:$0xf]
        %v2599 = vld [vmem:[%s821 + $0xfc] sm:$0xf]
        %v2600 = vld [vmem:[%s925] sm:$0x1]
        %v2602 = vperm.slane %v2600, 0
        %v2668 = vunpack.c.l.b16 %v2536
        %v2669 = vunpack.c.l.b16 %v2537
        %v2670 = vunpack.c.l.b16 %v2538
        %v2671 = vunpack.c.l.b16 %v2539
        %v2672 = vunpack.c.l.b16 %v2540
        %v2673 = vunpack.c.l.b16 %v2541
        %v2674 = vunpack.c.l.b16 %v2542
        %v2675 = vunpack.c.l.b16 %v2543
        %v2676 = vunpack.c.l.b16 %v2544
        %v2677 = vunpack.c.l.b16 %v2545
        %v2678 = vunpack.c.l.b16 %v2546
        %v2679 = vunpack.c.l.b16 %v2547
        %v2680 = vunpack.c.l.b16 %v2548
        %v2681 = vunpack.c.l.b16 %v2549
        %v2682 = vunpack.c.l.b16 %v2550
        %v2683 = vunpack.c.l.b16 %v2551
        %v2684 = vunpack.c.l.b16 %v2552
        %v2685 = vunpack.c.l.b16 %v2553
        %v2686 = vunpack.c.l.b16 %v2554
        %v2687 = vunpack.c.l.b16 %v2555
        %v2688 = vunpack.c.l.b16 %v2556
        %v2689 = vunpack.c.l.b16 %v2557
        %v2690 = vunpack.c.l.b16 %v2558
        %v2691 = vunpack.c.l.b16 %v2559
        %v2692 = vunpack.c.l.b16 %v2560
        %v2693 = vunpack.c.l.b16 %v2561
        %v2694 = vunpack.c.l.b16 %v2562
        %v2695 = vunpack.c.l.b16 %v2563
        %v2696 = vunpack.c.l.b16 %v2564
        %v2697 = vunpack.c.l.b16 %v2565
        %v2698 = vunpack.c.l.b16 %v2566
        %v2699 = vunpack.c.l.b16 %v2567
        %v2700 = vunpack.c.l.b16 %v2568
        %v2701 = vunpack.c.l.b16 %v2569
        %v2702 = vunpack.c.l.b16 %v2570
        %v2703 = vunpack.c.l.b16 %v2571
        %v2704 = vunpack.c.l.b16 %v2572
        %v2705 = vunpack.c.l.b16 %v2573
        %v2706 = vunpack.c.l.b16 %v2574
        %v2707 = vunpack.c.l.b16 %v2575
        %v2708 = vunpack.c.l.b16 %v2576
        %v2709 = vunpack.c.l.b16 %v2577
        %v2710 = vunpack.c.l.b16 %v2578
        %v2711 = vunpack.c.l.b16 %v2579
        %v2712 = vunpack.c.l.b16 %v2580
        %v2713 = vunpack.c.l.b16 %v2581
        %v2714 = vunpack.c.l.b16 %v2582
        %v2715 = vunpack.c.l.b16 %v2583
        %v2716 = vunpack.c.l.b16 %v2584
        %v2717 = vunpack.c.l.b16 %v2585
        %v2718 = vunpack.c.l.b16 %v2586
        %v2719 = vunpack.c.l.b16 %v2587
        %v2720 = vunpack.c.l.b16 %v2588
        %v2721 = vunpack.c.l.b16 %v2589
        %v2722 = vunpack.c.l.b16 %v2590
        %v2723 = vunpack.c.l.b16 %v2591
        %v2724 = vunpack.c.l.b16 %v2592
        %v2725 = vunpack.c.l.b16 %v2593
        %v2726 = vunpack.c.l.b16 %v2594
        %v2727 = vunpack.c.l.b16 %v2595
        %v2728 = vunpack.c.l.b16 %v2596
        %v2729 = vunpack.c.l.b16 %v2597
        %v2730 = vunpack.c.l.b16 %v2598
        %v2731 = vunpack.c.l.b16 %v2599
        %v2732 = vpack.c.b16 %v2669, %v2668
        %v2733 = vpack.c.b16 %v2671, %v2670
        %v2734 = vpack.c.b16 %v2673, %v2672
        %v2735 = vpack.c.b16 %v2675, %v2674
        %v2736 = vpack.c.b16 %v2677, %v2676
        %v2737 = vpack.c.b16 %v2679, %v2678
        %v2738 = vpack.c.b16 %v2681, %v2680
        %v2739 = vpack.c.b16 %v2683, %v2682
        %v2740 = vpack.c.b16 %v2685, %v2684
        %v2741 = vpack.c.b16 %v2687, %v2686
        %v2742 = vpack.c.b16 %v2689, %v2688
        %v2743 = vpack.c.b16 %v2691, %v2690
        %v2744 = vpack.c.b16 %v2693, %v2692
        %v2745 = vpack.c.b16 %v2695, %v2694
        %v2746 = vpack.c.b16 %v2697, %v2696
        %v2747 = vpack.c.b16 %v2699, %v2698
        %v2748 = vpack.c.b16 %v2701, %v2700
        %v2749 = vpack.c.b16 %v2703, %v2702
        %v2750 = vpack.c.b16 %v2705, %v2704
        %v2751 = vpack.c.b16 %v2707, %v2706
        %v2752 = vpack.c.b16 %v2709, %v2708
        %v2753 = vpack.c.b16 %v2711, %v2710
        %v2754 = vpack.c.b16 %v2713, %v2712
        %v2755 = vpack.c.b16 %v2715, %v2714
        %v2756 = vpack.c.b16 %v2717, %v2716
        %v2757 = vpack.c.b16 %v2719, %v2718
        %v2758 = vpack.c.b16 %v2721, %v2720
        %v2759 = vpack.c.b16 %v2723, %v2722
        %v2760 = vpack.c.b16 %v2725, %v2724
        %v2761 = vpack.c.b16 %v2727, %v2726
        %v2762 = vpack.c.b16 %v2729, %v2728
        %v2763 = vpack.c.b16 %v2731, %v2730
        %2796 = vmatpush.bf16.msra.mxu0 %v2739
        %2797 = vmatpush.bf16.msra.mxu0 %v2738
        %2798 = vmatpush.bf16.msra.mxu0 %v2737
        %2799 = vmatpush.bf16.msra.mxu0 %v2736
        %2800 = vmatpush.bf16.msra.mxu0 %v2735
        %2801 = vmatpush.bf16.msra.mxu0 %v2734
        %2802 = vmatpush.bf16.msra.mxu0 %v2733
        %2803 = vmatpush.bf16.msra.mxu0 %v2732
        %2804 = vmatmul.bf16.gmra.mxu0 %v2532
        %v2805 = vpop.f32.mrf.mxu0
        %v2806 = vadd.f32 %v2602, %v2805
        %v2807 = vpop.f32.mrf.mxu0
        %2808 = vdwg.mxu0
        %2809 = vmatpush.bf16.msra.mxu0 %v2747
        %2810 = vmatpush.bf16.msra.mxu0 %v2746
        %2811 = vmatpush.bf16.msra.mxu0 %v2745
        %2812 = vmatpush.bf16.msra.mxu0 %v2744
        %2813 = vmatpush.bf16.msra.mxu0 %v2743
        %2814 = vmatpush.bf16.msra.mxu0 %v2742
        %2815 = vmatpush.bf16.msra.mxu0 %v2741
        %2816 = vmatpush.bf16.msra.mxu0 %v2740
        %2817 = vmatmul.bf16.gmra.mxu0 %v2533
        %v2818 = vpop.f32.mrf.mxu0
        %v2819 = vadd.f32 %v2806, %v2818
        %v2820 = vpop.f32.mrf.mxu0
        %2821 = vdwg.mxu0
        %2822 = vmatpush.bf16.msra.mxu0 %v2755
        %2823 = vmatpush.bf16.msra.mxu0 %v2754
        %2824 = vmatpush.bf16.msra.mxu0 %v2753
        %2825 = vmatpush.bf16.msra.mxu0 %v2752
        %2826 = vmatpush.bf16.msra.mxu0 %v2751
        %2827 = vmatpush.bf16.msra.mxu0 %v2750
        %2828 = vmatpush.bf16.msra.mxu0 %v2749
        %2829 = vmatpush.bf16.msra.mxu0 %v2748
        %2830 = vmatmul.bf16.gmra.mxu0 %v2534
        %v2831 = vpop.f32.mrf.mxu0
        %v2832 = vadd.f32 %v2819, %v2831
        %v2833 = vpop.f32.mrf.mxu0
        %2834 = vdwg.mxu0
        %2835 = vmatpush.bf16.msra.mxu0 %v2763
        %2836 = vmatpush.bf16.msra.mxu0 %v2762
        %2837 = vmatpush.bf16.msra.mxu0 %v2761
        %2838 = vmatpush.bf16.msra.mxu0 %v2760
        %2839 = vmatpush.bf16.msra.mxu0 %v2759
        %2840 = vmatpush.bf16.msra.mxu0 %v2758
        %2841 = vmatpush.bf16.msra.mxu0 %v2757
        %2842 = vmatpush.bf16.msra.mxu0 %v2756
        %2843 = vmatmul.bf16.gmra.mxu0 %v2535
        %v2844 = vpop.f32.mrf.mxu0
        %v2845 = vadd.f32 %v2832, %v2844
        %v2846 = vpop.f32.mrf.mxu0
        %2847 = vdwg.mxu0
        %v2848 = vadd.f32 %v2083, %v2845
        %2849 = vst [vmem:[#allocation2] sm:$0x3] %v2848
        %p2850 = scmp.eq.s32.totalorder %s46, 3
        // Predicated region
        $region141: #{tpu_custom_call.1} parent=87 // pred_check
          %p2851 = pneg %p2850
        $region142: #{tpu_custom_call.1} parent=87 // pred_check_branch
          %2853 = sbr.rel (%p2851) target = $region144
        $region143: #{tpu_custom_call.1} parent=87 // pred_region
          %v2854 = vld [vmem:[%s12] sm:$0x1]
          %v2855 = vld [vmem:[%s13] sm:$0x1]
          %v2856 = vsel %vm940, %v2848, 0.0
          %2857 = vadd.xlane.f32.xlu0 %v2856
          %v2858 = vpop.xlane.xlu0 %2857
          %v2859 = vmul.f32 %v2858, 0.008928572
          %v2860 = vsub.f32 %v2848, %v2859
          %v2861 = vmul.f32 %v2860, %v930
          %v2862 = vmul.f32 %v2861, %v2861
          %v2863 = vsel %vm940, %v2862, 0.0
          %2864 = vadd.xlane.f32.xlu0 %v2863
          %v2865 = vpop.xlane.xlu0 %2864
          %v2866 = vmul.f32 %v2865, 0.008928572
          %v2867 = vadd.f32 %v2866, 1e-05
          %v2868 = vrsqrt.pop %v2867
          %v2869 = vmul.f32 %v2868, %v2867
          %v2870 = vmul.f32 %v2869, %v2868
          %v2871 = vmul.f32 0.5, %v2870
          %v2872 = vsub.f32 1.5, %v2871
          %v2873 = vmul.f32 %v2868, %v2872
          %vm2874 = vweird.f32 %v2867
          %vm2875 = vweird.f32 %v2868
          %vm2876 = vmor %vm2874, %vm2875
          %v2877 = vsel %vm2876, %v2868, %v2873
          %v2878 = vmul.f32 %v2861, %v2877
          %v2880 = vperm.slane %v2854, 0
          %v2882 = vmul.f32 %v2878, %v2880
          %v2884 = vperm.slane %v2855, 0
          %v2886 = vadd.f32 %v2882, %v2884
          %v2887 = vpack.c.bf16 %v2886, %v2886
          %v2888 = vld [vmem:[#allocation20] sm:$0xf]
          %v2889 = vld [vmem:[#allocation20 + $0x4] sm:$0xf]
          %v2890 = vld [vmem:[#allocation20 + $0x8] sm:$0xf]
          %v2891 = vld [vmem:[#allocation20 + $0xc] sm:$0xf]
          %v2892 = vld [vmem:[#allocation20 + $0x10] sm:$0xf]
          %v2893 = vld [vmem:[#allocation20 + $0x14] sm:$0xf]
          %v2894 = vld [vmem:[#allocation20 + $0x18] sm:$0xf]
          %v2895 = vld [vmem:[#allocation20 + $0x1c] sm:$0xf]
          %v2896 = vld [vmem:[#allocation20 + $0x20] sm:$0xf]
          %v2897 = vld [vmem:[#allocation20 + $0x24] sm:$0xf]
          %v2898 = vld [vmem:[#allocation20 + $0x28] sm:$0xf]
          %v2899 = vld [vmem:[#allocation20 + $0x2c] sm:$0xf]
          %v2900 = vld [vmem:[#allocation20 + $0x30] sm:$0xf]
          %v2901 = vld [vmem:[#allocation20 + $0x34] sm:$0xf]
          %v2902 = vld [vmem:[#allocation20 + $0x38] sm:$0xf]
          %v2903 = vld [vmem:[#allocation20 + $0x3c] sm:$0xf]
          %v2904 = vld [vmem:[%s15] sm:$0x1]
          %v2906 = vperm.slane %v2904, 0
          %v2924 = vunpack.c.l.b16 %v2888
          %v2925 = vunpack.c.l.b16 %v2889
          %v2926 = vunpack.c.l.b16 %v2890
          %v2927 = vunpack.c.l.b16 %v2891
          %v2928 = vunpack.c.l.b16 %v2892
          %v2929 = vunpack.c.l.b16 %v2893
          %v2930 = vunpack.c.l.b16 %v2894
          %v2931 = vunpack.c.l.b16 %v2895
          %v2932 = vunpack.c.l.b16 %v2896
          %v2933 = vunpack.c.l.b16 %v2897
          %v2934 = vunpack.c.l.b16 %v2898
          %v2935 = vunpack.c.l.b16 %v2899
          %v2936 = vunpack.c.l.b16 %v2900
          %v2937 = vunpack.c.l.b16 %v2901
          %v2938 = vunpack.c.l.b16 %v2902
          %v2939 = vunpack.c.l.b16 %v2903
          %v2940 = vpack.c.b16 %v2925, %v2924
          %v2941 = vpack.c.b16 %v2927, %v2926
          %v2942 = vpack.c.b16 %v2929, %v2928
          %v2943 = vpack.c.b16 %v2931, %v2930
          %v2944 = vpack.c.b16 %v2933, %v2932
          %v2945 = vpack.c.b16 %v2935, %v2934
          %v2946 = vpack.c.b16 %v2937, %v2936
          %v2947 = vpack.c.b16 %v2939, %v2938
          %2956 = vmatpush.bf16.msra.mxu0 %v2947
          %2957 = vmatpush.bf16.msra.mxu0 %v2946
          %2958 = vmatpush.bf16.msra.mxu0 %v2945
          %2959 = vmatpush.bf16.msra.mxu0 %v2944
          %2960 = vmatpush.bf16.msra.mxu0 %v2943
          %2961 = vmatpush.bf16.msra.mxu0 %v2942
          %2962 = vmatpush.bf16.msra.mxu0 %v2941
          %2963 = vmatpush.bf16.msra.mxu0 %v2940
          %2964 = vmatmul.bf16.gmra.mxu0 %v2887
          %v2965 = vpop.f32.mrf.mxu0
          %v2966 = vadd.f32 %v2906, %v2965
          %v2967 = vpop.f32.mrf.mxu0
          %2968 = vdwg.mxu0
          %2969 = vst [vmem:[#allocation23] sm:$0x3] %v2966
        $region144: #{tpu_custom_call.1} parent=87 // pred_fallthru
          _
        // Predicated region
        $region145: #{tpu_custom_call.1} parent=87 // pred_check
          %p2970 = pneg %p471
        $region146: #{tpu_custom_call.1} parent=87 // pred_check_branch
          %2972 = sbr.rel (%p2970) target = $region148
        $region147: #{tpu_custom_call.1} parent=87 // pred_region
          %2974 = vsyncadd [#allocation5], 0
          %s2976 = sshll.u32 [#allocation23], 4
          %s2977 = int_to_ptr.vmem [resolvable:$true] %s2976
          %s2978 = sshll.u32 %s17, 4
          %s2979 = int_to_ptr.hbm [resolvable:$true] %s2978
          %2981 = dma.vmem_to_hbm [thread:$0]  %s2977, 32, %s2979, [#allocation5]
        $region148: #{tpu_custom_call.1} parent=87 // pred_fallthru
          _
        // Predicated region
        $region149: #{tpu_custom_call.1} parent=87 // pred_check
          %p2982 = pneg %p471
        $region150: #{tpu_custom_call.1} parent=87 // pred_check_branch
          %2984 = sbr.rel (%p2982) target = $region152
        $region151: #{tpu_custom_call.1} parent=87 // pred_region
          %2986 = dma.done [#allocation5], 32
        $region152: #{tpu_custom_call.1} parent=87 // pred_fallthru
          _
      $region88: #{tpu_custom_call.1} parent=5 // pred_fallthru
        _
      %p2987 = scmp.le.s32.totalorder 2, %s41
      // Predicated region
      $region153: #{tpu_custom_call.1} parent=5 // pred_check
        %p2988 = pneg %p2987
      $region154: #{tpu_custom_call.1} parent=5 // pred_check_branch
        %2990 = sbr.rel (%p2988) target = $region156
      $region155: #{tpu_custom_call.1} parent=5 // pred_region
        %s2991 = ssub.s32 %s41, 2
      $region156: #{tpu_custom_call.1} parent=5 // pred_fallthru
        _
    $region6: #{tpu_custom_call.1} parent=1 // loop_footer
      %s45 = sadd.s32 1, %s41
    $region7: #{tpu_custom_call.1} parent=1 // loop_footer_branch
      %40 = sbr.rel target = $region3
    $region8: #{tpu_custom_call.1} parent=1 // loop_exit
      _
    %2992 = vsyncpa [#allocation4], 1
    %s2993 = scalar_lea.sflag [#allocation4], 1
    %2994 = vsyncpa %s2993, 1
    %2995 = vsyncpa [#allocation7], 1
    %s2996 = scalar_lea.sflag [#allocation7], 1
    %2997 = vsyncpa %s2996, 1
    %2998 = vsyncpa [#allocation10], 1
    %s2999 = scalar_lea.sflag [#allocation10], 1
    %3000 = vsyncpa %s2999, 1
    %3001 = vsyncpa [#allocation13], 1
    %s3002 = scalar_lea.sflag [#allocation13], 1
    %3003 = vsyncpa %s3002, 1
    %3004 = vsyncpa [#allocation16], 1
    %s3005 = scalar_lea.sflag [#allocation16], 1
    %3006 = vsyncpa %s3005, 1
    %3007 = vsyncpa [#allocation19], 1
    %s3008 = scalar_lea.sflag [#allocation19], 1
    %3009 = vsyncpa %s3008, 1
    %3010 = vsyncpa [#allocation22], 1
    %3011 = vsyncpa [#allocation5], 1
    %s3012 = scalar_lea.sflag [#allocation5], 1
    %3013 = vsyncpa %s3012, 1

</llo_original>
